<compile_context>
chip_gen: v7x
topology: tpu7x:2x2x1
jax: 0.10.0
libtpu: 0.0.40
codegen_flags: <defaults>
</compile_context>

<pallas_src>
import functools
import math

import jax
import jax.numpy as jnp
from jax import lax
from jax.experimental import pallas as pl
from jax.experimental.pallas import tpu as pltpu

LANE = 128


def _rup(v, m):
    return (v + m - 1) // m * m


def _pad2d(a, rows, cols):
    return jnp.pad(a, ((0, rows - a.shape[0]), (0, cols - a.shape[1])))


# --------------------------- fused forward kernel ---------------------------

def fused_forward_kernel(seed_ref, src_ref,
                         x_ref, ea_ref, dst_ref, batch_ref,
                         we12_ref, be12_ref,
                         w11_ref, b11_ref, w12_ref, b12_ref,
                         w21_ref, b21_ref, w22_ref, b22_ref,
                         wf1_ref, bf1_ref, wf2_ref, bf2_ref, wc_ref, bc_ref,
                         out_ref,
                         xw_ref, xj_ref,
                         *, eps, train, p_drop, num_edges):
    N = x_ref.shape[0]
    E = ea_ref.shape[0]
    G = out_ref.shape[0]

    # Scatter-add / pool one-hots, built once, already transposed for plain
    # jnp.dot; kept f32 so the feature accumulation is exact.
    row_n = lax.broadcasted_iota(jnp.int32, (N, E), 0)
    dst_oh_t = (dst_ref[...] == row_n).astype(jnp.float32)      # [N, E]
    row_g = lax.broadcasted_iota(jnp.int32, (G, N), 0)
    pool_oh = (batch_ref[...] == row_g).astype(jnp.float32)     # [G, N]

    # Fused edge projections for both conv layers: one [E,128]x[128,256] matmul.
    e12 = jnp.dot(ea_ref[...], we12_ref[...],
                  preferred_element_type=jnp.float32) + be12_ref[...]
    e1 = e12[:, :LANE]          # conv1 edge-lin output (lane-aligned slice)
    e2 = e12[:, LANE:]          # conv2 edge-lin output

    # Node features live in a VMEM scratch so both layers can row-gather them.
    xw_ref[...] = x_ref[...]
    # Rows for padded edges stay 0 (their messages are dropped by dst_oh_t).
    xj_ref[...] = jnp.zeros_like(xj_ref)

    def gine(e_lin, w1, b1, w2, b2):
        # Index-driven row gather x_j = x[src]: replaces the old [E,N] one-hot
        # MXU contraction.  num_edges is the true (small) edge count, static.
        for e in range(num_edges):
            s = src_ref[e]                                   # SMEM scalar
            xj_ref[pl.ds(e, 1), :] = xw_ref[pl.ds(s, 1), :]  # dyn sublane read
        msg = jnp.maximum(xj_ref[...] + e_lin, 0.0)
        # scatter-add at destination nodes (pre-transposed one-hot, f32 exact)
        agg = jnp.dot(dst_oh_t, msg, preferred_element_type=jnp.float32)
        x = xw_ref[...]
        if eps == 0.0:                       # statically elide the (1+eps)*x mul
            h = agg + x
        else:
            h = agg + (1.0 + eps) * x
        # nn = Linear -> ReLU -> Linear
        h = jnp.maximum(
            jnp.dot(h, w1, preferred_element_type=jnp.float32) + b1, 0.0)
        h = jnp.dot(h, w2, preferred_element_type=jnp.float32) + b2
        # outer F.relu from Custom_Classifier.forward
        xw_ref[...] = jnp.maximum(h, 0.0)

    gine(e1, w11_ref[...], b11_ref[...], w12_ref[...], b12_ref[...])
    gine(e2, w21_ref[...], b21_ref[...], w22_ref[...], b22_ref[...])

    # global_add_pool
    pooled = jnp.dot(pool_oh, xw_ref[...],
                     preferred_element_type=jnp.float32)          # [G, 128]

    # fc1 -> relu
    h = jnp.maximum(jnp.dot(pooled, wf1_ref[...],
                            preferred_element_type=jnp.float32) + bf1_ref[...],
                    0.0)

    if train:
        # F.dropout(p=0.6), inverted scaling.  Mask: raw PRNG bits vs uint32
        # threshold (no shift / convert / scale).
        # TODO(synk): RNG stream differs from torch; seed varies per step.
        pltpu.prng_seed(seed_ref[0])
        bits = pltpu.prng_random_bits(h.shape)
        if bits.dtype != jnp.uint32:
            bits = pltpu.bitcast(bits, jnp.uint32)
        thresh = jnp.uint32(min(int(p_drop * (2.0 ** 32)), 2 ** 32 - 1))
        keep = bits >= thresh
        h = jnp.where(keep, h * (1.0 / (1.0 - p_drop)), 0.0)

    # fc2 -> relu -> classifier -> sigmoid
    h = jnp.maximum(jnp.dot(h, wf2_ref[...],
                            preferred_element_type=jnp.float32) + bf2_ref[...],
                    0.0)
    logits = jnp.dot(h, wc_ref[...],
                     preferred_element_type=jnp.float32) + bc_ref[...]
    out_ref[...] = jax.nn.sigmoid(logits)


# ------------------------------- wrapper ------------------------------------

def custom_classifier_forward(params, x, edge_attr, src, dst, batch,
                              num_graphs, out_channels, eval=True,
                              p_drop=0.6, seed=0):
    N = x.shape[0]
    E = edge_attr.shape[0]
    # N and E land in the LANE dim of the one-hot / gather buffers -> pad to 128.
    N_pad = _rup(max(N, LANE), LANE)
    E_pad = _rup(max(E, LANE), LANE)
    G_pad = _rup(max(num_graphs, 8), 8)

    x_p = _pad2d(x.astype(jnp.float32), N_pad, LANE)
    ea_p = _pad2d(edge_attr.astype(jnp.float32), E_pad, LANE)
    # src lives in SMEM (scalar-indexed gather); padded edges point at node 0.
    src_p = jnp.pad(src.astype(jnp.int32), (0, E_pad - E))
    # padded edges -> dst = -1: their messages are dropped by the scatter one-hot
    dst_p = jnp.pad(dst.astype(jnp.int32), (0, E_pad - E),
                    constant_values=-1).reshape(1, E_pad)
    # padded nodes -> batch = -1: they do not contribute to global_add_pool
    batch_p = jnp.pad(batch.astype(jnp.int32), (0, N_pad - N),
                      constant_values=-1).reshape(1, N_pad)
    seed_arr = jnp.array([seed], jnp.int32)

    kern = functools.partial(fused_forward_kernel, eps=0.0,
                             train=not eval, p_drop=p_drop, num_edges=E)

    vmem = pl.BlockSpec(memory_space=pltpu.MemorySpace.VMEM)
    smem = pl.BlockSpec(memory_space=pltpu.MemorySpace.SMEM)

    flat_params = [params[k] for k in (
        "we12", "be12",
        "w11", "b11", "w12", "b12",
        "w21", "b21", "w22", "b22",
        "wf1", "bf1", "wf2", "bf2", "wc", "bc")]

    out = pl.pallas_call(
        kern,
        out_shape=jax.ShapeDtypeStruct((G_pad, LANE), jnp.float32),
        in_specs=[smem, smem] + [vmem] * (4 + len(flat_params)),
        out_specs=vmem,
        scratch_shapes=[pltpu.VMEM((N_pad, LANE), jnp.float32),   # node feats
                        pltpu.VMEM((E_pad, LANE), jnp.float32)],  # gathered x_j
        compiler_params=pltpu.CompilerParams(
            vmem_limit_bytes=32 * 1024 * 1024),
    )(seed_arr, src_p, x_p, ea_p, dst_p, batch_p, *flat_params)

    out = out[:num_graphs, :out_channels]
    if out_channels == 1:                      # torch .squeeze(dim=1)
        out = out[:, 0]
    return out


# ------------------------------ parameters ----------------------------------

def _linear(key, fan_in, fan_out):
    kw, kb = jax.random.split(key)
    bound = 1.0 / math.sqrt(fan_in)
    w = jax.random.uniform(kw, (fan_in, fan_out), jnp.float32, -bound, bound)
    b = jax.random.uniform(kb, (fan_out,), jnp.float32, -bound, bound)
    return w, b


def _padded(w, b):
    r = _rup(w.shape[0], LANE)
    c = _rup(w.shape[1], LANE)
    return _pad2d(w, r, c), _pad2d(b.reshape(1, -1), 1, c)


def init_params(key, in_channels, out_channels, edge_dim):
    h01, h02, h1, h2, h3, h4 = 64, 128, 256, 128, 64, 32
    ks = jax.random.split(key, 9)
    p = {}
    # conv1 / conv2 edge projections, fused into one [128, 256] weight.
    we1_p, be1_p = _padded(*_linear(ks[0], edge_dim, in_channels))
    we2_p, be2_p = _padded(*_linear(ks[3], edge_dim, h02))
    p["we12"] = jnp.concatenate([we1_p, we2_p], axis=1)
    p["be12"] = jnp.concatenate([be1_p, be2_p], axis=1)
    # conv1 nn = Lin(in,64)->ReLU->Lin(64,128)
    p["w11"], p["b11"] = _padded(*_linear(ks[1], in_channels, h01))
    p["w12"], p["b12"] = _padded(*_linear(ks[2], h01, h02))
    # conv2 nn = Lin(128,256)->ReLU->Lin(256,128)
    p["w21"], p["b21"] = _padded(*_linear(ks[4], h02, h1))
    p["w22"], p["b22"] = _padded(*_linear(ks[5], h1, h2))
    # head: fc1 (128->64), fc2 (64->32), classifier (32->out_channels)
    p["wf1"], p["bf1"] = _padded(*_linear(ks[6], h2, h3))
    p["wf2"], p["bf2"] = _padded(*_linear(ks[7], h3, h4))
    std = math.sqrt(2.0 / (h4 + out_channels))          # xavier_normal_
    wc = jax.random.normal(ks[8], (h4, out_channels), jnp.float32) * std
    bc = jnp.full((out_channels,), 0.1, jnp.float32)    # constant_(bias, 0.1)
    p["wc"], p["bc"] = _padded(wc, bc)
    return p


# -------------------------------- main ---------------------------------------

if __name__ == "__main__":
    key = jax.random.PRNGKey(0)
    N, E, G = 16, 32, 2                      # nodes, edges, graphs
    in_channels, edge_dim, out_channels = 12, 6, 3

    k_x, k_e, k_s, k_d, k_p = jax.random.split(key, 5)
    x = jax.random.normal(k_x, (N, in_channels), jnp.float32)
    edge_attr = jax.random.normal(k_e, (E, edge_dim), jnp.float32)
    src = jax.random.randint(k_s, (E,), 0, N, jnp.int32)   # edge_index[0]
    dst = jax.random.randint(k_d, (E,), 0, N, jnp.int32)   # edge_index[1]
    batch = jnp.concatenate([jnp.zeros((N // 2,), jnp.int32),
                             jnp.ones((N - N // 2,), jnp.int32)])

    params = init_params(k_p, in_channels, out_channels, edge_dim)

    # eval=True == Custom_Classifier.predict (dropout path implemented, off here)
    out = custom_classifier_forward(params, x, edge_attr, src, dst, batch,
                                    num_graphs=G, out_channels=out_channels,
                                    eval=True)
    jax.block_until_ready(out)
    assert out.shape == (G, out_channels)
    assert bool(jnp.all((out >= 0.0) & (out <= 1.0)))
    print("KERNEL_OK")
</pallas_src>

<mosaic_0001>
module attributes {stable_mosaic.version = 11 : i64} {
  func.func @fused_forward_kernel(%arg0: memref<1xi32, #tpu.memory_space<smem>>, %arg1: memref<128xi32, #tpu.memory_space<smem>>, %arg2: memref<128x128xf32, #tpu.memory_space<vmem>>, %arg3: memref<128x128xf32, #tpu.memory_space<vmem>>, %arg4: memref<1x128xi32, #tpu.memory_space<vmem>>, %arg5: memref<1x128xi32, #tpu.memory_space<vmem>>, %arg6: memref<128x256xf32, #tpu.memory_space<vmem>>, %arg7: memref<1x256xf32, #tpu.memory_space<vmem>>, %arg8: memref<128x128xf32, #tpu.memory_space<vmem>>, %arg9: memref<1x128xf32, #tpu.memory_space<vmem>>, %arg10: memref<128x128xf32, #tpu.memory_space<vmem>>, %arg11: memref<1x128xf32, #tpu.memory_space<vmem>>, %arg12: memref<128x256xf32, #tpu.memory_space<vmem>>, %arg13: memref<1x256xf32, #tpu.memory_space<vmem>>, %arg14: memref<256x128xf32, #tpu.memory_space<vmem>>, %arg15: memref<1x128xf32, #tpu.memory_space<vmem>>, %arg16: memref<128x128xf32, #tpu.memory_space<vmem>>, %arg17: memref<1x128xf32, #tpu.memory_space<vmem>>, %arg18: memref<128x128xf32, #tpu.memory_space<vmem>>, %arg19: memref<1x128xf32, #tpu.memory_space<vmem>>, %arg20: memref<128x128xf32, #tpu.memory_space<vmem>>, %arg21: memref<1x128xf32, #tpu.memory_space<vmem>>, %arg22: memref<8x128xf32, #tpu.memory_space<vmem>>, %arg23: memref<128x128xf32, #tpu.memory_space<vmem>>, %arg24: memref<128x128xf32, #tpu.memory_space<vmem>>) attributes {dimension_semantics = [], scalar_prefetch = 0 : i64, scratch_operands = 2 : i64, tpu.core_type = #tpu.core_type<tc>} {
    %0 = tpu.iota {dimensions = array<i32: 0>} : vector<128x128xi32>
    %c0 = arith.constant 0 : index
    %c0_0 = arith.constant 0 : index
    %1 = vector.load %arg4[%c0, %c0_0] : memref<1x128xi32, #tpu.memory_space<vmem>>, vector<1x128xi32>
    %2 = vector.broadcast %1 : vector<1x128xi32> to vector<128x128xi32>
    %3 = arith.cmpi eq, %2, %0 : vector<128x128xi32>
    %4 = arith.extui %3 : vector<128x128xi1> to vector<128x128xi32>
    %5 = arith.sitofp %4 : vector<128x128xi32> to vector<128x128xf32>
    %6 = tpu.iota {dimensions = array<i32: 0>} : vector<8x128xi32>
    %c0_1 = arith.constant 0 : index
    %c0_2 = arith.constant 0 : index
    %7 = vector.load %arg5[%c0_1, %c0_2] : memref<1x128xi32, #tpu.memory_space<vmem>>, vector<1x128xi32>
    %8 = vector.broadcast %7 : vector<1x128xi32> to vector<8x128xi32>
    %9 = arith.cmpi eq, %8, %6 : vector<8x128xi32>
    %10 = arith.extui %9 : vector<8x128xi1> to vector<8x128xi32>
    %11 = arith.sitofp %10 : vector<8x128xi32> to vector<8x128xf32>
    %c0_3 = arith.constant 0 : index
    %c0_4 = arith.constant 0 : index
    %12 = vector.load %arg3[%c0_3, %c0_4] : memref<128x128xf32, #tpu.memory_space<vmem>>, vector<128x128xf32>
    %c0_5 = arith.constant 0 : index
    %c0_6 = arith.constant 0 : index
    %13 = vector.load %arg6[%c0_5, %c0_6] : memref<128x256xf32, #tpu.memory_space<vmem>>, vector<128x256xf32>
    %cst = arith.constant dense<0.000000e+00> : vector<128x256xf32>
    %14 = tpu.matmul %12, %13, %cst {dimension_numbers = #tpu.dot_dimension_numbers<[1], [0], [0], [1], [0, 0, 1, 1], [], []>} : vector<128x128xf32>, vector<128x256xf32>, vector<128x256xf32> -> vector<128x256xf32>
    %c0_7 = arith.constant 0 : index
    %c0_8 = arith.constant 0 : index
    %15 = vector.load %arg7[%c0_7, %c0_8] : memref<1x256xf32, #tpu.memory_space<vmem>>, vector<1x256xf32>
    %16 = vector.broadcast %15 : vector<1x256xf32> to vector<128x256xf32>
    %17 = arith.addf %14, %16 : vector<128x256xf32>
    %18 = vector.extract_strided_slice %17 {offsets = [0, 0], sizes = [128, 128], strides = [1, 1]} : vector<128x256xf32> to vector<128x128xf32>
    %19 = vector.extract_strided_slice %17 {offsets = [0, 128], sizes = [128, 128], strides = [1, 1]} : vector<128x256xf32> to vector<128x128xf32>
    %c0_9 = arith.constant 0 : index
    %c0_10 = arith.constant 0 : index
    %20 = vector.load %arg2[%c0_9, %c0_10] : memref<128x128xf32, #tpu.memory_space<vmem>>, vector<128x128xf32>
    %c0_11 = arith.constant 0 : index
    %c0_12 = arith.constant 0 : index
    %21 = vector.load %arg23[%c0_11, %c0_12] : memref<128x128xf32, #tpu.memory_space<vmem>>, vector<128x128xf32>
    tpu.vector_store %arg23[%c0_11, %c0_12], %20 {strides = array<i32>} : memref<128x128xf32, #tpu.memory_space<vmem>>, vector<128x128xf32>,
    %cst_13 = arith.constant 0.000000e+00 : f32
    %22 = vector.broadcast %cst_13 : f32 to vector<128x128xf32>
    %c0_14 = arith.constant 0 : index
    %c0_15 = arith.constant 0 : index
    %23 = vector.load %arg24[%c0_14, %c0_15] : memref<128x128xf32, #tpu.memory_space<vmem>>, vector<128x128xf32>
    tpu.vector_store %arg24[%c0_14, %c0_15], %22 {strides = array<i32>} : memref<128x128xf32, #tpu.memory_space<vmem>>, vector<128x128xf32>,
    %c0_16 = arith.constant 0 : index
    %c0_17 = arith.constant 0 : index
    %24 = vector.load %arg8[%c0_16, %c0_17] : memref<128x128xf32, #tpu.memory_space<vmem>>, vector<128x128xf32>
    %c0_18 = arith.constant 0 : index
    %c0_19 = arith.constant 0 : index
    %25 = vector.load %arg9[%c0_18, %c0_19] : memref<1x128xf32, #tpu.memory_space<vmem>>, vector<1x128xf32>
    %c0_20 = arith.constant 0 : index
    %c0_21 = arith.constant 0 : index
    %26 = vector.load %arg10[%c0_20, %c0_21] : memref<128x128xf32, #tpu.memory_space<vmem>>, vector<128x128xf32>
    %c0_22 = arith.constant 0 : index
    %c0_23 = arith.constant 0 : index
    %27 = vector.load %arg11[%c0_22, %c0_23] : memref<1x128xf32, #tpu.memory_space<vmem>>, vector<1x128xf32>
    %c0_24 = arith.constant 0 : index
    %28 = memref.load %arg1[%c0_24] : memref<128xi32, #tpu.memory_space<smem>>
    %29 = arith.index_cast %28 : i32 to index
    %c0_25 = arith.constant 0 : index
    %30 = vector.load %arg23[%29, %c0_25] : memref<128x128xf32, #tpu.memory_space<vmem>>, vector<1x128xf32>
    %c0_26 = arith.constant 0 : index
    %c0_27 = arith.constant 0 : index
    %31 = vector.load %arg24[%c0_26, %c0_27] : memref<128x128xf32, #tpu.memory_space<vmem>>, vector<1x128xf32>
    tpu.vector_store %arg24[%c0_26, %c0_27], %30 {strides = array<i32>} : memref<128x128xf32, #tpu.memory_space<vmem>>, vector<1x128xf32>,
    %c1 = arith.constant 1 : index
    %32 = memref.load %arg1[%c1] : memref<128xi32, #tpu.memory_space<smem>>
    %33 = arith.index_cast %32 : i32 to index
    %c0_28 = arith.constant 0 : index
    %34 = vector.load %arg23[%33, %c0_28] : memref<128x128xf32, #tpu.memory_space<vmem>>, vector<1x128xf32>
    %c1_29 = arith.constant 1 : index
    %c0_30 = arith.constant 0 : index
    %35 = vector.load %arg24[%c1_29, %c0_30] : memref<128x128xf32, #tpu.memory_space<vmem>>, vector<1x128xf32>
    tpu.vector_store %arg24[%c1_29, %c0_30], %34 {strides = array<i32>} : memref<128x128xf32, #tpu.memory_space<vmem>>, vector<1x128xf32>,
    %c2 = arith.constant 2 : index
    %36 = memref.load %arg1[%c2] : memref<128xi32, #tpu.memory_space<smem>>
    %37 = arith.index_cast %36 : i32 to index
    %c0_31 = arith.constant 0 : index
    %38 = vector.load %arg23[%37, %c0_31] : memref<128x128xf32, #tpu.memory_space<vmem>>, vector<1x128xf32>
    %c2_32 = arith.constant 2 : index
    %c0_33 = arith.constant 0 : index
    %39 = vector.load %arg24[%c2_32, %c0_33] : memref<128x128xf32, #tpu.memory_space<vmem>>, vector<1x128xf32>
    tpu.vector_store %arg24[%c2_32, %c0_33], %38 {strides = array<i32>} : memref<128x128xf32, #tpu.memory_space<vmem>>, vector<1x128xf32>,
    %c3 = arith.constant 3 : index
    %40 = memref.load %arg1[%c3] : memref<128xi32, #tpu.memory_space<smem>>
    %41 = arith.index_cast %40 : i32 to index
    %c0_34 = arith.constant 0 : index
    %42 = vector.load %arg23[%41, %c0_34] : memref<128x128xf32, #tpu.memory_space<vmem>>, vector<1x128xf32>
    %c3_35 = arith.constant 3 : index
    %c0_36 = arith.constant 0 : index
    %43 = vector.load %arg24[%c3_35, %c0_36] : memref<128x128xf32, #tpu.memory_space<vmem>>, vector<1x128xf32>
    tpu.vector_store %arg24[%c3_35, %c0_36], %42 {strides = array<i32>} : memref<128x128xf32, #tpu.memory_space<vmem>>, vector<1x128xf32>,
    %c4 = arith.constant 4 : index
    %44 = memref.load %arg1[%c4] : memref<128xi32, #tpu.memory_space<smem>>
    %45 = arith.index_cast %44 : i32 to index
    %c0_37 = arith.constant 0 : index
    %46 = vector.load %arg23[%45, %c0_37] : memref<128x128xf32, #tpu.memory_space<vmem>>, vector<1x128xf32>
    %c4_38 = arith.constant 4 : index
    %c0_39 = arith.constant 0 : index
    %47 = vector.load %arg24[%c4_38, %c0_39] : memref<128x128xf32, #tpu.memory_space<vmem>>, vector<1x128xf32>
    tpu.vector_store %arg24[%c4_38, %c0_39], %46 {strides = array<i32>} : memref<128x128xf32, #tpu.memory_space<vmem>>, vector<1x128xf32>,
    %c5 = arith.constant 5 : index
    %48 = memref.load %arg1[%c5] : memref<128xi32, #tpu.memory_space<smem>>
    %49 = arith.index_cast %48 : i32 to index
    %c0_40 = arith.constant 0 : index
    %50 = vector.load %arg23[%49, %c0_40] : memref<128x128xf32, #tpu.memory_space<vmem>>, vector<1x128xf32>
    %c5_41 = arith.constant 5 : index
    %c0_42 = arith.constant 0 : index
    %51 = vector.load %arg24[%c5_41, %c0_42] : memref<128x128xf32, #tpu.memory_space<vmem>>, vector<1x128xf32>
    tpu.vector_store %arg24[%c5_41, %c0_42], %50 {strides = array<i32>} : memref<128x128xf32, #tpu.memory_space<vmem>>, vector<1x128xf32>,
    %c6 = arith.constant 6 : index
    %52 = memref.load %arg1[%c6] : memref<128xi32, #tpu.memory_space<smem>>
    %53 = arith.index_cast %52 : i32 to index
    %c0_43 = arith.constant 0 : index
    %54 = vector.load %arg23[%53, %c0_43] : memref<128x128xf32, #tpu.memory_space<vmem>>, vector<1x128xf32>
    %c6_44 = arith.constant 6 : index
    %c0_45 = arith.constant 0 : index
    %55 = vector.load %arg24[%c6_44, %c0_45] : memref<128x128xf32, #tpu.memory_space<vmem>>, vector<1x128xf32>
    tpu.vector_store %arg24[%c6_44, %c0_45], %54 {strides = array<i32>} : memref<128x128xf32, #tpu.memory_space<vmem>>, vector<1x128xf32>,
    %c7 = arith.constant 7 : index
    %56 = memref.load %arg1[%c7] : memref<128xi32, #tpu.memory_space<smem>>
    %57 = arith.index_cast %56 : i32 to index
    %c0_46 = arith.constant 0 : index
    %58 = vector.load %arg23[%57, %c0_46] : memref<128x128xf32, #tpu.memory_space<vmem>>, vector<1x128xf32>
    %c7_47 = arith.constant 7 : index
    %c0_48 = arith.constant 0 : index
    %59 = vector.load %arg24[%c7_47, %c0_48] : memref<128x128xf32, #tpu.memory_space<vmem>>, vector<1x128xf32>
    tpu.vector_store %arg24[%c7_47, %c0_48], %58 {strides = array<i32>} : memref<128x128xf32, #tpu.memory_space<vmem>>, vector<1x128xf32>,
    %c8 = arith.constant 8 : index
    %60 = memref.load %arg1[%c8] : memref<128xi32, #tpu.memory_space<smem>>
    %61 = arith.index_cast %60 : i32 to index
    %c0_49 = arith.constant 0 : index
    %62 = vector.load %arg23[%61, %c0_49] : memref<128x128xf32, #tpu.memory_space<vmem>>, vector<1x128xf32>
    %c8_50 = arith.constant 8 : index
    %c0_51 = arith.constant 0 : index
    %63 = vector.load %arg24[%c8_50, %c0_51] : memref<128x128xf32, #tpu.memory_space<vmem>>, vector<1x128xf32>
    tpu.vector_store %arg24[%c8_50, %c0_51], %62 {strides = array<i32>} : memref<128x128xf32, #tpu.memory_space<vmem>>, vector<1x128xf32>,
    %c9 = arith.constant 9 : index
    %64 = memref.load %arg1[%c9] : memref<128xi32, #tpu.memory_space<smem>>
    %65 = arith.index_cast %64 : i32 to index
    %c0_52 = arith.constant 0 : index
    %66 = vector.load %arg23[%65, %c0_52] : memref<128x128xf32, #tpu.memory_space<vmem>>, vector<1x128xf32>
    %c9_53 = arith.constant 9 : index
    %c0_54 = arith.constant 0 : index
    %67 = vector.load %arg24[%c9_53, %c0_54] : memref<128x128xf32, #tpu.memory_space<vmem>>, vector<1x128xf32>
    tpu.vector_store %arg24[%c9_53, %c0_54], %66 {strides = array<i32>} : memref<128x128xf32, #tpu.memory_space<vmem>>, vector<1x128xf32>,
    %c10 = arith.constant 10 : index
    %68 = memref.load %arg1[%c10] : memref<128xi32, #tpu.memory_space<smem>>
    %69 = arith.index_cast %68 : i32 to index
    %c0_55 = arith.constant 0 : index
    %70 = vector.load %arg23[%69, %c0_55] : memref<128x128xf32, #tpu.memory_space<vmem>>, vector<1x128xf32>
    %c10_56 = arith.constant 10 : index
    %c0_57 = arith.constant 0 : index
    %71 = vector.load %arg24[%c10_56, %c0_57] : memref<128x128xf32, #tpu.memory_space<vmem>>, vector<1x128xf32>
    tpu.vector_store %arg24[%c10_56, %c0_57], %70 {strides = array<i32>} : memref<128x128xf32, #tpu.memory_space<vmem>>, vector<1x128xf32>,
    %c11 = arith.constant 11 : index
    %72 = memref.load %arg1[%c11] : memref<128xi32, #tpu.memory_space<smem>>
    %73 = arith.index_cast %72 : i32 to index
    %c0_58 = arith.constant 0 : index
    %74 = vector.load %arg23[%73, %c0_58] : memref<128x128xf32, #tpu.memory_space<vmem>>, vector<1x128xf32>
    %c11_59 = arith.constant 11 : index
    %c0_60 = arith.constant 0 : index
    %75 = vector.load %arg24[%c11_59, %c0_60] : memref<128x128xf32, #tpu.memory_space<vmem>>, vector<1x128xf32>
    tpu.vector_store %arg24[%c11_59, %c0_60], %74 {strides = array<i32>} : memref<128x128xf32, #tpu.memory_space<vmem>>, vector<1x128xf32>,
    %c12 = arith.constant 12 : index
    %76 = memref.load %arg1[%c12] : memref<128xi32, #tpu.memory_space<smem>>
    %77 = arith.index_cast %76 : i32 to index
    %c0_61 = arith.constant 0 : index
    %78 = vector.load %arg23[%77, %c0_61] : memref<128x128xf32, #tpu.memory_space<vmem>>, vector<1x128xf32>
    %c12_62 = arith.constant 12 : index
    %c0_63 = arith.constant 0 : index
    %79 = vector.load %arg24[%c12_62, %c0_63] : memref<128x128xf32, #tpu.memory_space<vmem>>, vector<1x128xf32>
    tpu.vector_store %arg24[%c12_62, %c0_63], %78 {strides = array<i32>} : memref<128x128xf32, #tpu.memory_space<vmem>>, vector<1x128xf32>,
    %c13 = arith.constant 13 : index
    %80 = memref.load %arg1[%c13] : memref<128xi32, #tpu.memory_space<smem>>
    %81 = arith.index_cast %80 : i32 to index
    %c0_64 = arith.constant 0 : index
    %82 = vector.load %arg23[%81, %c0_64] : memref<128x128xf32, #tpu.memory_space<vmem>>, vector<1x128xf32>
    %c13_65 = arith.constant 13 : index
    %c0_66 = arith.constant 0 : index
    %83 = vector.load %arg24[%c13_65, %c0_66] : memref<128x128xf32, #tpu.memory_space<vmem>>, vector<1x128xf32>
    tpu.vector_store %arg24[%c13_65, %c0_66], %82 {strides = array<i32>} : memref<128x128xf32, #tpu.memory_space<vmem>>, vector<1x128xf32>,
    %c14 = arith.constant 14 : index
    %84 = memref.load %arg1[%c14] : memref<128xi32, #tpu.memory_space<smem>>
    %85 = arith.index_cast %84 : i32 to index
    %c0_67 = arith.constant 0 : index
    %86 = vector.load %arg23[%85, %c0_67] : memref<128x128xf32, #tpu.memory_space<vmem>>, vector<1x128xf32>
    %c14_68 = arith.constant 14 : index
    %c0_69 = arith.constant 0 : index
    %87 = vector.load %arg24[%c14_68, %c0_69] : memref<128x128xf32, #tpu.memory_space<vmem>>, vector<1x128xf32>
    tpu.vector_store %arg24[%c14_68, %c0_69], %86 {strides = array<i32>} : memref<128x128xf32, #tpu.memory_space<vmem>>, vector<1x128xf32>,
    %c15 = arith.constant 15 : index
    %88 = memref.load %arg1[%c15] : memref<128xi32, #tpu.memory_space<smem>>
    %89 = arith.index_cast %88 : i32 to index
    %c0_70 = arith.constant 0 : index
    %90 = vector.load %arg23[%89, %c0_70] : memref<128x128xf32, #tpu.memory_space<vmem>>, vector<1x128xf32>
    %c15_71 = arith.constant 15 : index
    %c0_72 = arith.constant 0 : index
    %91 = vector.load %arg24[%c15_71, %c0_72] : memref<128x128xf32, #tpu.memory_space<vmem>>, vector<1x128xf32>
    tpu.vector_store %arg24[%c15_71, %c0_72], %90 {strides = array<i32>} : memref<128x128xf32, #tpu.memory_space<vmem>>, vector<1x128xf32>,
    %c16 = arith.constant 16 : index
    %92 = memref.load %arg1[%c16] : memref<128xi32, #tpu.memory_space<smem>>
    %93 = arith.index_cast %92 : i32 to index
    %c0_73 = arith.constant 0 : index
    %94 = vector.load %arg23[%93, %c0_73] : memref<128x128xf32, #tpu.memory_space<vmem>>, vector<1x128xf32>
    %c16_74 = arith.constant 16 : index
    %c0_75 = arith.constant 0 : index
    %95 = vector.load %arg24[%c16_74, %c0_75] : memref<128x128xf32, #tpu.memory_space<vmem>>, vector<1x128xf32>
    tpu.vector_store %arg24[%c16_74, %c0_75], %94 {strides = array<i32>} : memref<128x128xf32, #tpu.memory_space<vmem>>, vector<1x128xf32>,
    %c17 = arith.constant 17 : index
    %96 = memref.load %arg1[%c17] : memref<128xi32, #tpu.memory_space<smem>>
    %97 = arith.index_cast %96 : i32 to index
    %c0_76 = arith.constant 0 : index
    %98 = vector.load %arg23[%97, %c0_76] : memref<128x128xf32, #tpu.memory_space<vmem>>, vector<1x128xf32>
    %c17_77 = arith.constant 17 : index
    %c0_78 = arith.constant 0 : index
    %99 = vector.load %arg24[%c17_77, %c0_78] : memref<128x128xf32, #tpu.memory_space<vmem>>, vector<1x128xf32>
    tpu.vector_store %arg24[%c17_77, %c0_78], %98 {strides = array<i32>} : memref<128x128xf32, #tpu.memory_space<vmem>>, vector<1x128xf32>,
    %c18 = arith.constant 18 : index
    %100 = memref.load %arg1[%c18] : memref<128xi32, #tpu.memory_space<smem>>
    %101 = arith.index_cast %100 : i32 to index
    %c0_79 = arith.constant 0 : index
    %102 = vector.load %arg23[%101, %c0_79] : memref<128x128xf32, #tpu.memory_space<vmem>>, vector<1x128xf32>
    %c18_80 = arith.constant 18 : index
    %c0_81 = arith.constant 0 : index
    %103 = vector.load %arg24[%c18_80, %c0_81] : memref<128x128xf32, #tpu.memory_space<vmem>>, vector<1x128xf32>
    tpu.vector_store %arg24[%c18_80, %c0_81], %102 {strides = array<i32>} : memref<128x128xf32, #tpu.memory_space<vmem>>, vector<1x128xf32>,
    %c19 = arith.constant 19 : index
    %104 = memref.load %arg1[%c19] : memref<128xi32, #tpu.memory_space<smem>>
    %105 = arith.index_cast %104 : i32 to index
    %c0_82 = arith.constant 0 : index
    %106 = vector.load %arg23[%105, %c0_82] : memref<128x128xf32, #tpu.memory_space<vmem>>, vector<1x128xf32>
    %c19_83 = arith.constant 19 : index
    %c0_84 = arith.constant 0 : index
    %107 = vector.load %arg24[%c19_83, %c0_84] : memref<128x128xf32, #tpu.memory_space<vmem>>, vector<1x128xf32>
    tpu.vector_store %arg24[%c19_83, %c0_84], %106 {strides = array<i32>} : memref<128x128xf32, #tpu.memory_space<vmem>>, vector<1x128xf32>,
    %c20 = arith.constant 20 : index
    %108 = memref.load %arg1[%c20] : memref<128xi32, #tpu.memory_space<smem>>
    %109 = arith.index_cast %108 : i32 to index
    %c0_85 = arith.constant 0 : index
    %110 = vector.load %arg23[%109, %c0_85] : memref<128x128xf32, #tpu.memory_space<vmem>>, vector<1x128xf32>
    %c20_86 = arith.constant 20 : index
    %c0_87 = arith.constant 0 : index
    %111 = vector.load %arg24[%c20_86, %c0_87] : memref<128x128xf32, #tpu.memory_space<vmem>>, vector<1x128xf32>
    tpu.vector_store %arg24[%c20_86, %c0_87], %110 {strides = array<i32>} : memref<128x128xf32, #tpu.memory_space<vmem>>, vector<1x128xf32>,
    %c21 = arith.constant 21 : index
    %112 = memref.load %arg1[%c21] : memref<128xi32, #tpu.memory_space<smem>>
    %113 = arith.index_cast %112 : i32 to index
    %c0_88 = arith.constant 0 : index
    %114 = vector.load %arg23[%113, %c0_88] : memref<128x128xf32, #tpu.memory_space<vmem>>, vector<1x128xf32>
    %c21_89 = arith.constant 21 : index
    %c0_90 = arith.constant 0 : index
    %115 = vector.load %arg24[%c21_89, %c0_90] : memref<128x128xf32, #tpu.memory_space<vmem>>, vector<1x128xf32>
    tpu.vector_store %arg24[%c21_89, %c0_90], %114 {strides = array<i32>} : memref<128x128xf32, #tpu.memory_space<vmem>>, vector<1x128xf32>,
    %c22 = arith.constant 22 : index
    %116 = memref.load %arg1[%c22] : memref<128xi32, #tpu.memory_space<smem>>
    %117 = arith.index_cast %116 : i32 to index
    %c0_91 = arith.constant 0 : index
    %118 = vector.load %arg23[%117, %c0_91] : memref<128x128xf32, #tpu.memory_space<vmem>>, vector<1x128xf32>
    %c22_92 = arith.constant 22 : index
    %c0_93 = arith.constant 0 : index
    %119 = vector.load %arg24[%c22_92, %c0_93] : memref<128x128xf32, #tpu.memory_space<vmem>>, vector<1x128xf32>
    tpu.vector_store %arg24[%c22_92, %c0_93], %118 {strides = array<i32>} : memref<128x128xf32, #tpu.memory_space<vmem>>, vector<1x128xf32>,
    %c23 = arith.constant 23 : index
    %120 = memref.load %arg1[%c23] : memref<128xi32, #tpu.memory_space<smem>>
    %121 = arith.index_cast %120 : i32 to index
    %c0_94 = arith.constant 0 : index
    %122 = vector.load %arg23[%121, %c0_94] : memref<128x128xf32, #tpu.memory_space<vmem>>, vector<1x128xf32>
    %c23_95 = arith.constant 23 : index
    %c0_96 = arith.constant 0 : index
    %123 = vector.load %arg24[%c23_95, %c0_96] : memref<128x128xf32, #tpu.memory_space<vmem>>, vector<1x128xf32>
    tpu.vector_store %arg24[%c23_95, %c0_96], %122 {strides = array<i32>} : memref<128x128xf32, #tpu.memory_space<vmem>>, vector<1x128xf32>,
    %c24 = arith.constant 24 : index
    %124 = memref.load %arg1[%c24] : memref<128xi32, #tpu.memory_space<smem>>
    %125 = arith.index_cast %124 : i32 to index
    %c0_97 = arith.constant 0 : index
    %126 = vector.load %arg23[%125, %c0_97] : memref<128x128xf32, #tpu.memory_space<vmem>>, vector<1x128xf32>
    %c24_98 = arith.constant 24 : index
    %c0_99 = arith.constant 0 : index
    %127 = vector.load %arg24[%c24_98, %c0_99] : memref<128x128xf32, #tpu.memory_space<vmem>>, vector<1x128xf32>
    tpu.vector_store %arg24[%c24_98, %c0_99], %126 {strides = array<i32>} : memref<128x128xf32, #tpu.memory_space<vmem>>, vector<1x128xf32>,
    %c25 = arith.constant 25 : index
    %128 = memref.load %arg1[%c25] : memref<128xi32, #tpu.memory_space<smem>>
    %129 = arith.index_cast %128 : i32 to index
    %c0_100 = arith.constant 0 : index
    %130 = vector.load %arg23[%129, %c0_100] : memref<128x128xf32, #tpu.memory_space<vmem>>, vector<1x128xf32>
    %c25_101 = arith.constant 25 : index
    %c0_102 = arith.constant 0 : index
    %131 = vector.load %arg24[%c25_101, %c0_102] : memref<128x128xf32, #tpu.memory_space<vmem>>, vector<1x128xf32>
    tpu.vector_store %arg24[%c25_101, %c0_102], %130 {strides = array<i32>} : memref<128x128xf32, #tpu.memory_space<vmem>>, vector<1x128xf32>,
    %c26 = arith.constant 26 : index
    %132 = memref.load %arg1[%c26] : memref<128xi32, #tpu.memory_space<smem>>
    %133 = arith.index_cast %132 : i32 to index
    %c0_103 = arith.constant 0 : index
    %134 = vector.load %arg23[%133, %c0_103] : memref<128x128xf32, #tpu.memory_space<vmem>>, vector<1x128xf32>
    %c26_104 = arith.constant 26 : index
    %c0_105 = arith.constant 0 : index
    %135 = vector.load %arg24[%c26_104, %c0_105] : memref<128x128xf32, #tpu.memory_space<vmem>>, vector<1x128xf32>
    tpu.vector_store %arg24[%c26_104, %c0_105], %134 {strides = array<i32>} : memref<128x128xf32, #tpu.memory_space<vmem>>, vector<1x128xf32>,
    %c27 = arith.constant 27 : index
    %136 = memref.load %arg1[%c27] : memref<128xi32, #tpu.memory_space<smem>>
    %137 = arith.index_cast %136 : i32 to index
    %c0_106 = arith.constant 0 : index
    %138 = vector.load %arg23[%137, %c0_106] : memref<128x128xf32, #tpu.memory_space<vmem>>, vector<1x128xf32>
    %c27_107 = arith.constant 27 : index
    %c0_108 = arith.constant 0 : index
    %139 = vector.load %arg24[%c27_107, %c0_108] : memref<128x128xf32, #tpu.memory_space<vmem>>, vector<1x128xf32>
    tpu.vector_store %arg24[%c27_107, %c0_108], %138 {strides = array<i32>} : memref<128x128xf32, #tpu.memory_space<vmem>>, vector<1x128xf32>,
    %c28 = arith.constant 28 : index
    %140 = memref.load %arg1[%c28] : memref<128xi32, #tpu.memory_space<smem>>
    %141 = arith.index_cast %140 : i32 to index
    %c0_109 = arith.constant 0 : index
    %142 = vector.load %arg23[%141, %c0_109] : memref<128x128xf32, #tpu.memory_space<vmem>>, vector<1x128xf32>
    %c28_110 = arith.constant 28 : index
    %c0_111 = arith.constant 0 : index
    %143 = vector.load %arg24[%c28_110, %c0_111] : memref<128x128xf32, #tpu.memory_space<vmem>>, vector<1x128xf32>
    tpu.vector_store %arg24[%c28_110, %c0_111], %142 {strides = array<i32>} : memref<128x128xf32, #tpu.memory_space<vmem>>, vector<1x128xf32>,
    %c29 = arith.constant 29 : index
    %144 = memref.load %arg1[%c29] : memref<128xi32, #tpu.memory_space<smem>>
    %145 = arith.index_cast %144 : i32 to index
    %c0_112 = arith.constant 0 : index
    %146 = vector.load %arg23[%145, %c0_112] : memref<128x128xf32, #tpu.memory_space<vmem>>, vector<1x128xf32>
    %c29_113 = arith.constant 29 : index
    %c0_114 = arith.constant 0 : index
    %147 = vector.load %arg24[%c29_113, %c0_114] : memref<128x128xf32, #tpu.memory_space<vmem>>, vector<1x128xf32>
    tpu.vector_store %arg24[%c29_113, %c0_114], %146 {strides = array<i32>} : memref<128x128xf32, #tpu.memory_space<vmem>>, vector<1x128xf32>,
    %c30 = arith.constant 30 : index
    %148 = memref.load %arg1[%c30] : memref<128xi32, #tpu.memory_space<smem>>
    %149 = arith.index_cast %148 : i32 to index
    %c0_115 = arith.constant 0 : index
    %150 = vector.load %arg23[%149, %c0_115] : memref<128x128xf32, #tpu.memory_space<vmem>>, vector<1x128xf32>
    %c30_116 = arith.constant 30 : index
    %c0_117 = arith.constant 0 : index
    %151 = vector.load %arg24[%c30_116, %c0_117] : memref<128x128xf32, #tpu.memory_space<vmem>>, vector<1x128xf32>
    tpu.vector_store %arg24[%c30_116, %c0_117], %150 {strides = array<i32>} : memref<128x128xf32, #tpu.memory_space<vmem>>, vector<1x128xf32>,
    %c31 = arith.constant 31 : index
    %152 = memref.load %arg1[%c31] : memref<128xi32, #tpu.memory_space<smem>>
    %153 = arith.index_cast %152 : i32 to index
    %c0_118 = arith.constant 0 : index
    %154 = vector.load %arg23[%153, %c0_118] : memref<128x128xf32, #tpu.memory_space<vmem>>, vector<1x128xf32>
    %c31_119 = arith.constant 31 : index
    %c0_120 = arith.constant 0 : index
    %155 = vector.load %arg24[%c31_119, %c0_120] : memref<128x128xf32, #tpu.memory_space<vmem>>, vector<1x128xf32>
    tpu.vector_store %arg24[%c31_119, %c0_120], %154 {strides = array<i32>} : memref<128x128xf32, #tpu.memory_space<vmem>>, vector<1x128xf32>,
    %c0_121 = arith.constant 0 : index
    %c0_122 = arith.constant 0 : index
    %156 = vector.load %arg24[%c0_121, %c0_122] : memref<128x128xf32, #tpu.memory_space<vmem>>, vector<128x128xf32>
    %157 = arith.addf %156, %18 : vector<128x128xf32>
    %cst_123 = arith.constant 0.000000e+00 : f32
    %158 = vector.broadcast %cst_123 : f32 to vector<128x128xf32>
    %159 = arith.maximumf %157, %158 : vector<128x128xf32>
    %cst_124 = arith.constant dense<0.000000e+00> : vector<128x128xf32>
    %160 = tpu.matmul %5, %159, %cst_124 {dimension_numbers = #tpu.dot_dimension_numbers<[1], [0], [0], [1], [0, 0, 1, 1], [], []>} : vector<128x128xf32>, vector<128x128xf32>, vector<128x128xf32> -> vector<128x128xf32>
    %c0_125 = arith.constant 0 : index
    %c0_126 = arith.constant 0 : index
    %161 = vector.load %arg23[%c0_125, %c0_126] : memref<128x128xf32, #tpu.memory_space<vmem>>, vector<128x128xf32>
    %162 = arith.addf %160, %161 : vector<128x128xf32>
    %cst_127 = arith.constant dense<0.000000e+00> : vector<128x128xf32>
    %163 = tpu.matmul %162, %24, %cst_127 {dimension_numbers = #tpu.dot_dimension_numbers<[1], [0], [0], [1], [0, 0, 1, 1], [], []>} : vector<128x128xf32>, vector<128x128xf32>, vector<128x128xf32> -> vector<128x128xf32>
    %164 = vector.broadcast %25 : vector<1x128xf32> to vector<128x128xf32>
    %165 = arith.addf %163, %164 : vector<128x128xf32>
    %cst_128 = arith.constant 0.000000e+00 : f32
    %166 = vector.broadcast %cst_128 : f32 to vector<128x128xf32>
    %167 = arith.maximumf %165, %166 : vector<128x128xf32>
    %cst_129 = arith.constant dense<0.000000e+00> : vector<128x128xf32>
    %168 = tpu.matmul %167, %26, %cst_129 {dimension_numbers = #tpu.dot_dimension_numbers<[1], [0], [0], [1], [0, 0, 1, 1], [], []>} : vector<128x128xf32>, vector<128x128xf32>, vector<128x128xf32> -> vector<128x128xf32>
    %169 = vector.broadcast %27 : vector<1x128xf32> to vector<128x128xf32>
    %170 = arith.addf %168, %169 : vector<128x128xf32>
    %cst_130 = arith.constant 0.000000e+00 : f32
    %171 = vector.broadcast %cst_130 : f32 to vector<128x128xf32>
    %172 = arith.maximumf %170, %171 : vector<128x128xf32>
    %c0_131 = arith.constant 0 : index
    %c0_132 = arith.constant 0 : index
    %173 = vector.load %arg23[%c0_131, %c0_132] : memref<128x128xf32, #tpu.memory_space<vmem>>, vector<128x128xf32>
    tpu.vector_store %arg23[%c0_131, %c0_132], %172 {strides = array<i32>} : memref<128x128xf32, #tpu.memory_space<vmem>>, vector<128x128xf32>,
    %c0_133 = arith.constant 0 : index
    %c0_134 = arith.constant 0 : index
    %174 = vector.load %arg12[%c0_133, %c0_134] : memref<128x256xf32, #tpu.memory_space<vmem>>, vector<128x256xf32>
    %c0_135 = arith.constant 0 : index
    %c0_136 = arith.constant 0 : index
    %175 = vector.load %arg13[%c0_135, %c0_136] : memref<1x256xf32, #tpu.memory_space<vmem>>, vector<1x256xf32>
    %c0_137 = arith.constant 0 : index
    %c0_138 = arith.constant 0 : index
    %176 = vector.load %arg14[%c0_137, %c0_138] : memref<256x128xf32, #tpu.memory_space<vmem>>, vector<256x128xf32>
    %c0_139 = arith.constant 0 : index
    %c0_140 = arith.constant 0 : index
    %177 = vector.load %arg15[%c0_139, %c0_140] : memref<1x128xf32, #tpu.memory_space<vmem>>, vector<1x128xf32>
    %c0_141 = arith.constant 0 : index
    %178 = memref.load %arg1[%c0_141] : memref<128xi32, #tpu.memory_space<smem>>
    %179 = arith.index_cast %178 : i32 to index
    %c0_142 = arith.constant 0 : index
    %180 = vector.load %arg23[%179, %c0_142] : memref<128x128xf32, #tpu.memory_space<vmem>>, vector<1x128xf32>
    %c0_143 = arith.constant 0 : index
    %c0_144 = arith.constant 0 : index
    %181 = vector.load %arg24[%c0_143, %c0_144] : memref<128x128xf32, #tpu.memory_space<vmem>>, vector<1x128xf32>
    tpu.vector_store %arg24[%c0_143, %c0_144], %180 {strides = array<i32>} : memref<128x128xf32, #tpu.memory_space<vmem>>, vector<1x128xf32>,
    %c1_145 = arith.constant 1 : index
    %182 = memref.load %arg1[%c1_145] : memref<128xi32, #tpu.memory_space<smem>>
    %183 = arith.index_cast %182 : i32 to index
    %c0_146 = arith.constant 0 : index
    %184 = vector.load %arg23[%183, %c0_146] : memref<128x128xf32, #tpu.memory_space<vmem>>, vector<1x128xf32>
    %c1_147 = arith.constant 1 : index
    %c0_148 = arith.constant 0 : index
    %185 = vector.load %arg24[%c1_147, %c0_148] : memref<128x128xf32, #tpu.memory_space<vmem>>, vector<1x128xf32>
    tpu.vector_store %arg24[%c1_147, %c0_148], %184 {strides = array<i32>} : memref<128x128xf32, #tpu.memory_space<vmem>>, vector<1x128xf32>,
    %c2_149 = arith.constant 2 : index
    %186 = memref.load %arg1[%c2_149] : memref<128xi32, #tpu.memory_space<smem>>
    %187 = arith.index_cast %186 : i32 to index
    %c0_150 = arith.constant 0 : index
    %188 = vector.load %arg23[%187, %c0_150] : memref<128x128xf32, #tpu.memory_space<vmem>>, vector<1x128xf32>
    %c2_151 = arith.constant 2 : index
    %c0_152 = arith.constant 0 : index
    %189 = vector.load %arg24[%c2_151, %c0_152] : memref<128x128xf32, #tpu.memory_space<vmem>>, vector<1x128xf32>
    tpu.vector_store %arg24[%c2_151, %c0_152], %188 {strides = array<i32>} : memref<128x128xf32, #tpu.memory_space<vmem>>, vector<1x128xf32>,
    %c3_153 = arith.constant 3 : index
    %190 = memref.load %arg1[%c3_153] : memref<128xi32, #tpu.memory_space<smem>>
    %191 = arith.index_cast %190 : i32 to index
    %c0_154 = arith.constant 0 : index
    %192 = vector.load %arg23[%191, %c0_154] : memref<128x128xf32, #tpu.memory_space<vmem>>, vector<1x128xf32>
    %c3_155 = arith.constant 3 : index
    %c0_156 = arith.constant 0 : index
    %193 = vector.load %arg24[%c3_155, %c0_156] : memref<128x128xf32, #tpu.memory_space<vmem>>, vector<1x128xf32>
    tpu.vector_store %arg24[%c3_155, %c0_156], %192 {strides = array<i32>} : memref<128x128xf32, #tpu.memory_space<vmem>>, vector<1x128xf32>,
    %c4_157 = arith.constant 4 : index
    %194 = memref.load %arg1[%c4_157] : memref<128xi32, #tpu.memory_space<smem>>
    %195 = arith.index_cast %194 : i32 to index
    %c0_158 = arith.constant 0 : index
    %196 = vector.load %arg23[%195, %c0_158] : memref<128x128xf32, #tpu.memory_space<vmem>>, vector<1x128xf32>
    %c4_159 = arith.constant 4 : index
    %c0_160 = arith.constant 0 : index
    %197 = vector.load %arg24[%c4_159, %c0_160] : memref<128x128xf32, #tpu.memory_space<vmem>>, vector<1x128xf32>
    tpu.vector_store %arg24[%c4_159, %c0_160], %196 {strides = array<i32>} : memref<128x128xf32, #tpu.memory_space<vmem>>, vector<1x128xf32>,
    %c5_161 = arith.constant 5 : index
    %198 = memref.load %arg1[%c5_161] : memref<128xi32, #tpu.memory_space<smem>>
    %199 = arith.index_cast %198 : i32 to index
    %c0_162 = arith.constant 0 : index
    %200 = vector.load %arg23[%199, %c0_162] : memref<128x128xf32, #tpu.memory_space<vmem>>, vector<1x128xf32>
    %c5_163 = arith.constant 5 : index
    %c0_164 = arith.constant 0 : index
    %201 = vector.load %arg24[%c5_163, %c0_164] : memref<128x128xf32, #tpu.memory_space<vmem>>, vector<1x128xf32>
    tpu.vector_store %arg24[%c5_163, %c0_164], %200 {strides = array<i32>} : memref<128x128xf32, #tpu.memory_space<vmem>>, vector<1x128xf32>,
    %c6_165 = arith.constant 6 : index
    %202 = memref.load %arg1[%c6_165] : memref<128xi32, #tpu.memory_space<smem>>
    %203 = arith.index_cast %202 : i32 to index
    %c0_166 = arith.constant 0 : index
    %204 = vector.load %arg23[%203, %c0_166] : memref<128x128xf32, #tpu.memory_space<vmem>>, vector<1x128xf32>
    %c6_167 = arith.constant 6 : index
    %c0_168 = arith.constant 0 : index
    %205 = vector.load %arg24[%c6_167, %c0_168] : memref<128x128xf32, #tpu.memory_space<vmem>>, vector<1x128xf32>
    tpu.vector_store %arg24[%c6_167, %c0_168], %204 {strides = array<i32>} : memref<128x128xf32, #tpu.memory_space<vmem>>, vector<1x128xf32>,
    %c7_169 = arith.constant 7 : index
    %206 = memref.load %arg1[%c7_169] : memref<128xi32, #tpu.memory_space<smem>>
    %207 = arith.index_cast %206 : i32 to index
    %c0_170 = arith.constant 0 : index
    %208 = vector.load %arg23[%207, %c0_170] : memref<128x128xf32, #tpu.memory_space<vmem>>, vector<1x128xf32>
    %c7_171 = arith.constant 7 : index
    %c0_172 = arith.constant 0 : index
    %209 = vector.load %arg24[%c7_171, %c0_172] : memref<128x128xf32, #tpu.memory_space<vmem>>, vector<1x128xf32>
    tpu.vector_store %arg24[%c7_171, %c0_172], %208 {strides = array<i32>} : memref<128x128xf32, #tpu.memory_space<vmem>>, vector<1x128xf32>,
    %c8_173 = arith.constant 8 : index
    %210 = memref.load %arg1[%c8_173] : memref<128xi32, #tpu.memory_space<smem>>
    %211 = arith.index_cast %210 : i32 to index
    %c0_174 = arith.constant 0 : index
    %212 = vector.load %arg23[%211, %c0_174] : memref<128x128xf32, #tpu.memory_space<vmem>>, vector<1x128xf32>
    %c8_175 = arith.constant 8 : index
    %c0_176 = arith.constant 0 : index
    %213 = vector.load %arg24[%c8_175, %c0_176] : memref<128x128xf32, #tpu.memory_space<vmem>>, vector<1x128xf32>
    tpu.vector_store %arg24[%c8_175, %c0_176], %212 {strides = array<i32>} : memref<128x128xf32, #tpu.memory_space<vmem>>, vector<1x128xf32>,
    %c9_177 = arith.constant 9 : index
    %214 = memref.load %arg1[%c9_177] : memref<128xi32, #tpu.memory_space<smem>>
    %215 = arith.index_cast %214 : i32 to index
    %c0_178 = arith.constant 0 : index
    %216 = vector.load %arg23[%215, %c0_178] : memref<128x128xf32, #tpu.memory_space<vmem>>, vector<1x128xf32>
    %c9_179 = arith.constant 9 : index
    %c0_180 = arith.constant 0 : index
    %217 = vector.load %arg24[%c9_179, %c0_180] : memref<128x128xf32, #tpu.memory_space<vmem>>, vector<1x128xf32>
    tpu.vector_store %arg24[%c9_179, %c0_180], %216 {strides = array<i32>} : memref<128x128xf32, #tpu.memory_space<vmem>>, vector<1x128xf32>,
    %c10_181 = arith.constant 10 : index
    %218 = memref.load %arg1[%c10_181] : memref<128xi32, #tpu.memory_space<smem>>
    %219 = arith.index_cast %218 : i32 to index
    %c0_182 = arith.constant 0 : index
    %220 = vector.load %arg23[%219, %c0_182] : memref<128x128xf32, #tpu.memory_space<vmem>>, vector<1x128xf32>
    %c10_183 = arith.constant 10 : index
    %c0_184 = arith.constant 0 : index
    %221 = vector.load %arg24[%c10_183, %c0_184] : memref<128x128xf32, #tpu.memory_space<vmem>>, vector<1x128xf32>
    tpu.vector_store %arg24[%c10_183, %c0_184], %220 {strides = array<i32>} : memref<128x128xf32, #tpu.memory_space<vmem>>, vector<1x128xf32>,
    %c11_185 = arith.constant 11 : index
    %222 = memref.load %arg1[%c11_185] : memref<128xi32, #tpu.memory_space<smem>>
    %223 = arith.index_cast %222 : i32 to index
    %c0_186 = arith.constant 0 : index
    %224 = vector.load %arg23[%223, %c0_186] : memref<128x128xf32, #tpu.memory_space<vmem>>, vector<1x128xf32>
    %c11_187 = arith.constant 11 : index
    %c0_188 = arith.constant 0 : index
    %225 = vector.load %arg24[%c11_187, %c0_188] : memref<128x128xf32, #tpu.memory_space<vmem>>, vector<1x128xf32>
    tpu.vector_store %arg24[%c11_187, %c0_188], %224 {strides = array<i32>} : memref<128x128xf32, #tpu.memory_space<vmem>>, vector<1x128xf32>,
    %c12_189 = arith.constant 12 : index
    %226 = memref.load %arg1[%c12_189] : memref<128xi32, #tpu.memory_space<smem>>
    %227 = arith.index_cast %226 : i32 to index
    %c0_190 = arith.constant 0 : index
    %228 = vector.load %arg23[%227, %c0_190] : memref<128x128xf32, #tpu.memory_space<vmem>>, vector<1x128xf32>
    %c12_191 = arith.constant 12 : index
    %c0_192 = arith.constant 0 : index
    %229 = vector.load %arg24[%c12_191, %c0_192] : memref<128x128xf32, #tpu.memory_space<vmem>>, vector<1x128xf32>
    tpu.vector_store %arg24[%c12_191, %c0_192], %228 {strides = array<i32>} : memref<128x128xf32, #tpu.memory_space<vmem>>, vector<1x128xf32>,
    %c13_193 = arith.constant 13 : index
    %230 = memref.load %arg1[%c13_193] : memref<128xi32, #tpu.memory_space<smem>>
    %231 = arith.index_cast %230 : i32 to index
    %c0_194 = arith.constant 0 : index
    %232 = vector.load %arg23[%231, %c0_194] : memref<128x128xf32, #tpu.memory_space<vmem>>, vector<1x128xf32>
    %c13_195 = arith.constant 13 : index
    %c0_196 = arith.constant 0 : index
    %233 = vector.load %arg24[%c13_195, %c0_196] : memref<128x128xf32, #tpu.memory_space<vmem>>, vector<1x128xf32>
    tpu.vector_store %arg24[%c13_195, %c0_196], %232 {strides = array<i32>} : memref<128x128xf32, #tpu.memory_space<vmem>>, vector<1x128xf32>,
    %c14_197 = arith.constant 14 : index
    %234 = memref.load %arg1[%c14_197] : memref<128xi32, #tpu.memory_space<smem>>
    %235 = arith.index_cast %234 : i32 to index
    %c0_198 = arith.constant 0 : index
    %236 = vector.load %arg23[%235, %c0_198] : memref<128x128xf32, #tpu.memory_space<vmem>>, vector<1x128xf32>
    %c14_199 = arith.constant 14 : index
    %c0_200 = arith.constant 0 : index
    %237 = vector.load %arg24[%c14_199, %c0_200] : memref<128x128xf32, #tpu.memory_space<vmem>>, vector<1x128xf32>
    tpu.vector_store %arg24[%c14_199, %c0_200], %236 {strides = array<i32>} : memref<128x128xf32, #tpu.memory_space<vmem>>, vector<1x128xf32>,
    %c15_201 = arith.constant 15 : index
    %238 = memref.load %arg1[%c15_201] : memref<128xi32, #tpu.memory_space<smem>>
    %239 = arith.index_cast %238 : i32 to index
    %c0_202 = arith.constant 0 : index
    %240 = vector.load %arg23[%239, %c0_202] : memref<128x128xf32, #tpu.memory_space<vmem>>, vector<1x128xf32>
    %c15_203 = arith.constant 15 : index
    %c0_204 = arith.constant 0 : index
    %241 = vector.load %arg24[%c15_203, %c0_204] : memref<128x128xf32, #tpu.memory_space<vmem>>, vector<1x128xf32>
    tpu.vector_store %arg24[%c15_203, %c0_204], %240 {strides = array<i32>} : memref<128x128xf32, #tpu.memory_space<vmem>>, vector<1x128xf32>,
    %c16_205 = arith.constant 16 : index
    %242 = memref.load %arg1[%c16_205] : memref<128xi32, #tpu.memory_space<smem>>
    %243 = arith.index_cast %242 : i32 to index
    %c0_206 = arith.constant 0 : index
    %244 = vector.load %arg23[%243, %c0_206] : memref<128x128xf32, #tpu.memory_space<vmem>>, vector<1x128xf32>
    %c16_207 = arith.constant 16 : index
    %c0_208 = arith.constant 0 : index
    %245 = vector.load %arg24[%c16_207, %c0_208] : memref<128x128xf32, #tpu.memory_space<vmem>>, vector<1x128xf32>
    tpu.vector_store %arg24[%c16_207, %c0_208], %244 {strides = array<i32>} : memref<128x128xf32, #tpu.memory_space<vmem>>, vector<1x128xf32>,
    %c17_209 = arith.constant 17 : index
    %246 = memref.load %arg1[%c17_209] : memref<128xi32, #tpu.memory_space<smem>>
    %247 = arith.index_cast %246 : i32 to index
    %c0_210 = arith.constant 0 : index
    %248 = vector.load %arg23[%247, %c0_210] : memref<128x128xf32, #tpu.memory_space<vmem>>, vector<1x128xf32>
    %c17_211 = arith.constant 17 : index
    %c0_212 = arith.constant 0 : index
    %249 = vector.load %arg24[%c17_211, %c0_212] : memref<128x128xf32, #tpu.memory_space<vmem>>, vector<1x128xf32>
    tpu.vector_store %arg24[%c17_211, %c0_212], %248 {strides = array<i32>} : memref<128x128xf32, #tpu.memory_space<vmem>>, vector<1x128xf32>,
    %c18_213 = arith.constant 18 : index
    %250 = memref.load %arg1[%c18_213] : memref<128xi32, #tpu.memory_space<smem>>
    %251 = arith.index_cast %250 : i32 to index
    %c0_214 = arith.constant 0 : index
    %252 = vector.load %arg23[%251, %c0_214] : memref<128x128xf32, #tpu.memory_space<vmem>>, vector<1x128xf32>
    %c18_215 = arith.constant 18 : index
    %c0_216 = arith.constant 0 : index
    %253 = vector.load %arg24[%c18_215, %c0_216] : memref<128x128xf32, #tpu.memory_space<vmem>>, vector<1x128xf32>
    tpu.vector_store %arg24[%c18_215, %c0_216], %252 {strides = array<i32>} : memref<128x128xf32, #tpu.memory_space<vmem>>, vector<1x128xf32>,
    %c19_217 = arith.constant 19 : index
    %254 = memref.load %arg1[%c19_217] : memref<128xi32, #tpu.memory_space<smem>>
    %255 = arith.index_cast %254 : i32 to index
    %c0_218 = arith.constant 0 : index
    %256 = vector.load %arg23[%255, %c0_218] : memref<128x128xf32, #tpu.memory_space<vmem>>, vector<1x128xf32>
    %c19_219 = arith.constant 19 : index
    %c0_220 = arith.constant 0 : index
    %257 = vector.load %arg24[%c19_219, %c0_220] : memref<128x128xf32, #tpu.memory_space<vmem>>, vector<1x128xf32>
    tpu.vector_store %arg24[%c19_219, %c0_220], %256 {strides = array<i32>} : memref<128x128xf32, #tpu.memory_space<vmem>>, vector<1x128xf32>,
    %c20_221 = arith.constant 20 : index
    %258 = memref.load %arg1[%c20_221] : memref<128xi32, #tpu.memory_space<smem>>
    %259 = arith.index_cast %258 : i32 to index
    %c0_222 = arith.constant 0 : index
    %260 = vector.load %arg23[%259, %c0_222] : memref<128x128xf32, #tpu.memory_space<vmem>>, vector<1x128xf32>
    %c20_223 = arith.constant 20 : index
    %c0_224 = arith.constant 0 : index
    %261 = vector.load %arg24[%c20_223, %c0_224] : memref<128x128xf32, #tpu.memory_space<vmem>>, vector<1x128xf32>
    tpu.vector_store %arg24[%c20_223, %c0_224], %260 {strides = array<i32>} : memref<128x128xf32, #tpu.memory_space<vmem>>, vector<1x128xf32>,
    %c21_225 = arith.constant 21 : index
    %262 = memref.load %arg1[%c21_225] : memref<128xi32, #tpu.memory_space<smem>>
    %263 = arith.index_cast %262 : i32 to index
    %c0_226 = arith.constant 0 : index
    %264 = vector.load %arg23[%263, %c0_226] : memref<128x128xf32, #tpu.memory_space<vmem>>, vector<1x128xf32>
    %c21_227 = arith.constant 21 : index
    %c0_228 = arith.constant 0 : index
    %265 = vector.load %arg24[%c21_227, %c0_228] : memref<128x128xf32, #tpu.memory_space<vmem>>, vector<1x128xf32>
    tpu.vector_store %arg24[%c21_227, %c0_228], %264 {strides = array<i32>} : memref<128x128xf32, #tpu.memory_space<vmem>>, vector<1x128xf32>,
    %c22_229 = arith.constant 22 : index
    %266 = memref.load %arg1[%c22_229] : memref<128xi32, #tpu.memory_space<smem>>
    %267 = arith.index_cast %266 : i32 to index
    %c0_230 = arith.constant 0 : index
    %268 = vector.load %arg23[%267, %c0_230] : memref<128x128xf32, #tpu.memory_space<vmem>>, vector<1x128xf32>
    %c22_231 = arith.constant 22 : index
    %c0_232 = arith.constant 0 : index
    %269 = vector.load %arg24[%c22_231, %c0_232] : memref<128x128xf32, #tpu.memory_space<vmem>>, vector<1x128xf32>
    tpu.vector_store %arg24[%c22_231, %c0_232], %268 {strides = array<i32>} : memref<128x128xf32, #tpu.memory_space<vmem>>, vector<1x128xf32>,
    %c23_233 = arith.constant 23 : index
    %270 = memref.load %arg1[%c23_233] : memref<128xi32, #tpu.memory_space<smem>>
    %271 = arith.index_cast %270 : i32 to index
    %c0_234 = arith.constant 0 : index
    %272 = vector.load %arg23[%271, %c0_234] : memref<128x128xf32, #tpu.memory_space<vmem>>, vector<1x128xf32>
    %c23_235 = arith.constant 23 : index
    %c0_236 = arith.constant 0 : index
    %273 = vector.load %arg24[%c23_235, %c0_236] : memref<128x128xf32, #tpu.memory_space<vmem>>, vector<1x128xf32>
    tpu.vector_store %arg24[%c23_235, %c0_236], %272 {strides = array<i32>} : memref<128x128xf32, #tpu.memory_space<vmem>>, vector<1x128xf32>,
    %c24_237 = arith.constant 24 : index
    %274 = memref.load %arg1[%c24_237] : memref<128xi32, #tpu.memory_space<smem>>
    %275 = arith.index_cast %274 : i32 to index
    %c0_238 = arith.constant 0 : index
    %276 = vector.load %arg23[%275, %c0_238] : memref<128x128xf32, #tpu.memory_space<vmem>>, vector<1x128xf32>
    %c24_239 = arith.constant 24 : index
    %c0_240 = arith.constant 0 : index
    %277 = vector.load %arg24[%c24_239, %c0_240] : memref<128x128xf32, #tpu.memory_space<vmem>>, vector<1x128xf32>
    tpu.vector_store %arg24[%c24_239, %c0_240], %276 {strides = array<i32>} : memref<128x128xf32, #tpu.memory_space<vmem>>, vector<1x128xf32>,
    %c25_241 = arith.constant 25 : index
    %278 = memref.load %arg1[%c25_241] : memref<128xi32, #tpu.memory_space<smem>>
    %279 = arith.index_cast %278 : i32 to index
    %c0_242 = arith.constant 0 : index
    %280 = vector.load %arg23[%279, %c0_242] : memref<128x128xf32, #tpu.memory_space<vmem>>, vector<1x128xf32>
    %c25_243 = arith.constant 25 : index
    %c0_244 = arith.constant 0 : index
    %281 = vector.load %arg24[%c25_243, %c0_244] : memref<128x128xf32, #tpu.memory_space<vmem>>, vector<1x128xf32>
    tpu.vector_store %arg24[%c25_243, %c0_244], %280 {strides = array<i32>} : memref<128x128xf32, #tpu.memory_space<vmem>>, vector<1x128xf32>,
    %c26_245 = arith.constant 26 : index
    %282 = memref.load %arg1[%c26_245] : memref<128xi32, #tpu.memory_space<smem>>
    %283 = arith.index_cast %282 : i32 to index
    %c0_246 = arith.constant 0 : index
    %284 = vector.load %arg23[%283, %c0_246] : memref<128x128xf32, #tpu.memory_space<vmem>>, vector<1x128xf32>
    %c26_247 = arith.constant 26 : index
    %c0_248 = arith.constant 0 : index
    %285 = vector.load %arg24[%c26_247, %c0_248] : memref<128x128xf32, #tpu.memory_space<vmem>>, vector<1x128xf32>
    tpu.vector_store %arg24[%c26_247, %c0_248], %284 {strides = array<i32>} : memref<128x128xf32, #tpu.memory_space<vmem>>, vector<1x128xf32>,
    %c27_249 = arith.constant 27 : index
    %286 = memref.load %arg1[%c27_249] : memref<128xi32, #tpu.memory_space<smem>>
    %287 = arith.index_cast %286 : i32 to index
    %c0_250 = arith.constant 0 : index
    %288 = vector.load %arg23[%287, %c0_250] : memref<128x128xf32, #tpu.memory_space<vmem>>, vector<1x128xf32>
    %c27_251 = arith.constant 27 : index
    %c0_252 = arith.constant 0 : index
    %289 = vector.load %arg24[%c27_251, %c0_252] : memref<128x128xf32, #tpu.memory_space<vmem>>, vector<1x128xf32>
    tpu.vector_store %arg24[%c27_251, %c0_252], %288 {strides = array<i32>} : memref<128x128xf32, #tpu.memory_space<vmem>>, vector<1x128xf32>,
    %c28_253 = arith.constant 28 : index
    %290 = memref.load %arg1[%c28_253] : memref<128xi32, #tpu.memory_space<smem>>
    %291 = arith.index_cast %290 : i32 to index
    %c0_254 = arith.constant 0 : index
    %292 = vector.load %arg23[%291, %c0_254] : memref<128x128xf32, #tpu.memory_space<vmem>>, vector<1x128xf32>
    %c28_255 = arith.constant 28 : index
    %c0_256 = arith.constant 0 : index
    %293 = vector.load %arg24[%c28_255, %c0_256] : memref<128x128xf32, #tpu.memory_space<vmem>>, vector<1x128xf32>
    tpu.vector_store %arg24[%c28_255, %c0_256], %292 {strides = array<i32>} : memref<128x128xf32, #tpu.memory_space<vmem>>, vector<1x128xf32>,
    %c29_257 = arith.constant 29 : index
    %294 = memref.load %arg1[%c29_257] : memref<128xi32, #tpu.memory_space<smem>>
    %295 = arith.index_cast %294 : i32 to index
    %c0_258 = arith.constant 0 : index
    %296 = vector.load %arg23[%295, %c0_258] : memref<128x128xf32, #tpu.memory_space<vmem>>, vector<1x128xf32>
    %c29_259 = arith.constant 29 : index
    %c0_260 = arith.constant 0 : index
    %297 = vector.load %arg24[%c29_259, %c0_260] : memref<128x128xf32, #tpu.memory_space<vmem>>, vector<1x128xf32>
    tpu.vector_store %arg24[%c29_259, %c0_260], %296 {strides = array<i32>} : memref<128x128xf32, #tpu.memory_space<vmem>>, vector<1x128xf32>,
    %c30_261 = arith.constant 30 : index
    %298 = memref.load %arg1[%c30_261] : memref<128xi32, #tpu.memory_space<smem>>
    %299 = arith.index_cast %298 : i32 to index
    %c0_262 = arith.constant 0 : index
    %300 = vector.load %arg23[%299, %c0_262] : memref<128x128xf32, #tpu.memory_space<vmem>>, vector<1x128xf32>
    %c30_263 = arith.constant 30 : index
    %c0_264 = arith.constant 0 : index
    %301 = vector.load %arg24[%c30_263, %c0_264] : memref<128x128xf32, #tpu.memory_space<vmem>>, vector<1x128xf32>
    tpu.vector_store %arg24[%c30_263, %c0_264], %300 {strides = array<i32>} : memref<128x128xf32, #tpu.memory_space<vmem>>, vector<1x128xf32>,
    %c31_265 = arith.constant 31 : index
    %302 = memref.load %arg1[%c31_265] : memref<128xi32, #tpu.memory_space<smem>>
    %303 = arith.index_cast %302 : i32 to index
    %c0_266 = arith.constant 0 : index
    %304 = vector.load %arg23[%303, %c0_266] : memref<128x128xf32, #tpu.memory_space<vmem>>, vector<1x128xf32>
    %c31_267 = arith.constant 31 : index
    %c0_268 = arith.constant 0 : index
    %305 = vector.load %arg24[%c31_267, %c0_268] : memref<128x128xf32, #tpu.memory_space<vmem>>, vector<1x128xf32>
    tpu.vector_store %arg24[%c31_267, %c0_268], %304 {strides = array<i32>} : memref<128x128xf32, #tpu.memory_space<vmem>>, vector<1x128xf32>,
    %c0_269 = arith.constant 0 : index
    %c0_270 = arith.constant 0 : index
    %306 = vector.load %arg24[%c0_269, %c0_270] : memref<128x128xf32, #tpu.memory_space<vmem>>, vector<128x128xf32>
    %307 = arith.addf %306, %19 : vector<128x128xf32>
    %cst_271 = arith.constant 0.000000e+00 : f32
    %308 = vector.broadcast %cst_271 : f32 to vector<128x128xf32>
    %309 = arith.maximumf %307, %308 : vector<128x128xf32>
    %cst_272 = arith.constant dense<0.000000e+00> : vector<128x128xf32>
    %310 = tpu.matmul %5, %309, %cst_272 {dimension_numbers = #tpu.dot_dimension_numbers<[1], [0], [0], [1], [0, 0, 1, 1], [], []>} : vector<128x128xf32>, vector<128x128xf32>, vector<128x128xf32> -> vector<128x128xf32>
    %c0_273 = arith.constant 0 : index
    %c0_274 = arith.constant 0 : index
    %311 = vector.load %arg23[%c0_273, %c0_274] : memref<128x128xf32, #tpu.memory_space<vmem>>, vector<128x128xf32>
    %312 = arith.addf %310, %311 : vector<128x128xf32>
    %cst_275 = arith.constant dense<0.000000e+00> : vector<128x256xf32>
    %313 = tpu.matmul %312, %174, %cst_275 {dimension_numbers = #tpu.dot_dimension_numbers<[1], [0], [0], [1], [0, 0, 1, 1], [], []>} : vector<128x128xf32>, vector<128x256xf32>, vector<128x256xf32> -> vector<128x256xf32>
    %314 = vector.broadcast %175 : vector<1x256xf32> to vector<128x256xf32>
    %315 = arith.addf %313, %314 : vector<128x256xf32>
    %cst_276 = arith.constant 0.000000e+00 : f32
    %316 = vector.broadcast %cst_276 : f32 to vector<128x256xf32>
    %317 = arith.maximumf %315, %316 : vector<128x256xf32>
    %cst_277 = arith.constant dense<0.000000e+00> : vector<128x128xf32>
    %318 = tpu.matmul %317, %176, %cst_277 {dimension_numbers = #tpu.dot_dimension_numbers<[1], [0], [0], [1], [0, 0, 1, 1], [], []>} : vector<128x256xf32>, vector<256x128xf32>, vector<128x128xf32> -> vector<128x128xf32>
    %319 = vector.broadcast %177 : vector<1x128xf32> to vector<128x128xf32>
    %320 = arith.addf %318, %319 : vector<128x128xf32>
    %cst_278 = arith.constant 0.000000e+00 : f32
    %321 = vector.broadcast %cst_278 : f32 to vector<128x128xf32>
    %322 = arith.maximumf %320, %321 : vector<128x128xf32>
    %c0_279 = arith.constant 0 : index
    %c0_280 = arith.constant 0 : index
    %323 = vector.load %arg23[%c0_279, %c0_280] : memref<128x128xf32, #tpu.memory_space<vmem>>, vector<128x128xf32>
    tpu.vector_store %arg23[%c0_279, %c0_280], %322 {strides = array<i32>} : memref<128x128xf32, #tpu.memory_space<vmem>>, vector<128x128xf32>,
    %c0_281 = arith.constant 0 : index
    %c0_282 = arith.constant 0 : index
    %324 = vector.load %arg23[%c0_281, %c0_282] : memref<128x128xf32, #tpu.memory_space<vmem>>, vector<128x128xf32>
    %cst_283 = arith.constant dense<0.000000e+00> : vector<8x128xf32>
    %325 = tpu.matmul %11, %324, %cst_283 {dimension_numbers = #tpu.dot_dimension_numbers<[1], [0], [0], [1], [0, 0, 1, 1], [], []>} : vector<8x128xf32>, vector<128x128xf32>, vector<8x128xf32> -> vector<8x128xf32>
    %c0_284 = arith.constant 0 : index
    %c0_285 = arith.constant 0 : index
    %326 = vector.load %arg16[%c0_284, %c0_285] : memref<128x128xf32, #tpu.memory_space<vmem>>, vector<128x128xf32>
    %cst_286 = arith.constant dense<0.000000e+00> : vector<8x128xf32>
    %327 = tpu.matmul %325, %326, %cst_286 {dimension_numbers = #tpu.dot_dimension_numbers<[1], [0], [0], [1], [0, 0, 1, 1], [], []>} : vector<8x128xf32>, vector<128x128xf32>, vector<8x128xf32> -> vector<8x128xf32>
    %c0_287 = arith.constant 0 : index
    %c0_288 = arith.constant 0 : index
    %328 = vector.load %arg17[%c0_287, %c0_288] : memref<1x128xf32, #tpu.memory_space<vmem>>, vector<1x128xf32>
    %329 = vector.broadcast %328 : vector<1x128xf32> to vector<8x128xf32>
    %330 = arith.addf %327, %329 : vector<8x128xf32>
    %cst_289 = arith.constant 0.000000e+00 : f32
    %331 = vector.broadcast %cst_289 : f32 to vector<8x128xf32>
    %332 = arith.maximumf %330, %331 : vector<8x128xf32>
    %c0_290 = arith.constant 0 : index
    %c0_291 = arith.constant 0 : index
    %333 = vector.load %arg18[%c0_290, %c0_291] : memref<128x128xf32, #tpu.memory_space<vmem>>, vector<128x128xf32>
    %cst_292 = arith.constant dense<0.000000e+00> : vector<8x128xf32>
    %334 = tpu.matmul %332, %333, %cst_292 {dimension_numbers = #tpu.dot_dimension_numbers<[1], [0], [0], [1], [0, 0, 1, 1], [], []>} : vector<8x128xf32>, vector<128x128xf32>, vector<8x128xf32> -> vector<8x128xf32>
    %c0_293 = arith.constant 0 : index
    %c0_294 = arith.constant 0 : index
    %335 = vector.load %arg19[%c0_293, %c0_294] : memref<1x128xf32, #tpu.memory_space<vmem>>, vector<1x128xf32>
    %336 = vector.broadcast %335 : vector<1x128xf32> to vector<8x128xf32>
    %337 = arith.addf %334, %336 : vector<8x128xf32>
    %cst_295 = arith.constant 0.000000e+00 : f32
    %338 = vector.broadcast %cst_295 : f32 to vector<8x128xf32>
    %339 = arith.maximumf %337, %338 : vector<8x128xf32>
    %c0_296 = arith.constant 0 : index
    %c0_297 = arith.constant 0 : index
    %340 = vector.load %arg20[%c0_296, %c0_297] : memref<128x128xf32, #tpu.memory_space<vmem>>, vector<128x128xf32>
    %cst_298 = arith.constant dense<0.000000e+00> : vector<8x128xf32>
    %341 = tpu.matmul %339, %340, %cst_298 {dimension_numbers = #tpu.dot_dimension_numbers<[1], [0], [0], [1], [0, 0, 1, 1], [], []>} : vector<8x128xf32>, vector<128x128xf32>, vector<8x128xf32> -> vector<8x128xf32>
    %c0_299 = arith.constant 0 : index
    %c0_300 = arith.constant 0 : index
    %342 = vector.load %arg21[%c0_299, %c0_300] : memref<1x128xf32, #tpu.memory_space<vmem>>, vector<1x128xf32>
    %343 = vector.broadcast %342 : vector<1x128xf32> to vector<8x128xf32>
    %344 = arith.addf %341, %343 : vector<8x128xf32>
    %345 = arith.negf %344 : vector<8x128xf32>
    %346 = math.exp %345 : vector<8x128xf32>
    %cst_301 = arith.constant 1.000000e+00 : f32
    %347 = vector.broadcast %cst_301 : f32 to vector<8x128xf32>
    %348 = arith.addf %347, %346 : vector<8x128xf32>
    %349 = arith.divf %347, %348 : vector<8x128xf32>
    %c0_302 = arith.constant 0 : index
    %c0_303 = arith.constant 0 : index
    %350 = vector.load %arg22[%c0_302, %c0_303] : memref<8x128xf32, #tpu.memory_space<vmem>>, vector<8x128xf32>
    tpu.vector_store %arg22[%c0_302, %c0_303], %349 {strides = array<i32>} : memref<8x128xf32, #tpu.memory_space<vmem>>, vector<8x128xf32>,
    return
  }
}

</mosaic_0001>

<llo_original>
// kernel: tpu_custom_call.1
$region0: #{tpu_custom_call.1}
  #allocation0 [shape = 'u32[]', space=smem, size = 0x4, offset = 0x4, fixed_abs, tag = 'smem constant byte address 0x4 - core index']
  #allocation1 [shape = 'u32[144,128]{1,0:T(1,128)}', space=vmem, size = 0x12000, scoped, tag = 'internal scratch']
  #allocation2 [shape = 'f32[128,128]{1,0:T(8,128)}', space=vmem, size = 0x10000, scoped, tag = 'scratch operand']
  #allocation3 [shape = 'f32[128,128]{1,0:T(8,128)}', space=vmem, size = 0x10000, scoped, tag = 'scratch operand']
  #allocation4 [shape = 's32[1]{0:T(128)S(6)}', space=smem, size = 0x200, scoped, tag = 'scoped memory for tpu_custom_call.1']
  %s0 = inlined_call_operand.<no memory space> [shape: s32[1], index: 0, kind: input, shape index: {}]
  %s1 = inlined_call_operand.vmem [shape: s32[128], index: 1, kind: input, shape index: {}]
  %s2 = inlined_call_operand.hbm [shape: f32[128,128], index: 2, kind: input, shape index: {}]
  %s3 = inlined_call_operand.hbm [shape: f32[128,128], index: 3, kind: input, shape index: {}]
  %s4 = inlined_call_operand.vmem [shape: s32[1,128], index: 4, kind: input, shape index: {}]
  %s5 = inlined_call_operand.vmem [shape: s32[1,128], index: 5, kind: input, shape index: {}]
  %s6 = inlined_call_operand.hbm [shape: f32[128,256], index: 6, kind: input, shape index: {}]
  %s7 = inlined_call_operand.vmem [shape: f32[1,256], index: 7, kind: input, shape index: {}]
  %s8 = inlined_call_operand.hbm [shape: f32[128,128], index: 8, kind: input, shape index: {}]
  %s9 = inlined_call_operand.vmem [shape: f32[1,128], index: 9, kind: input, shape index: {}]
  %s10 = inlined_call_operand.hbm [shape: f32[128,128], index: 10, kind: input, shape index: {}]
  %s11 = inlined_call_operand.vmem [shape: f32[1,128], index: 11, kind: input, shape index: {}]
  %s12 = inlined_call_operand.hbm [shape: f32[128,256], index: 12, kind: input, shape index: {}]
  %s13 = inlined_call_operand.vmem [shape: f32[1,256], index: 13, kind: input, shape index: {}]
  %s14 = inlined_call_operand.hbm [shape: f32[256,128], index: 14, kind: input, shape index: {}]
  %s15 = inlined_call_operand.vmem [shape: f32[1,128], index: 15, kind: input, shape index: {}]
  %s16 = inlined_call_operand.hbm [shape: f32[128,128], index: 16, kind: input, shape index: {}]
  %s17 = inlined_call_operand.vmem [shape: f32[1,128], index: 17, kind: input, shape index: {}]
  %s18 = inlined_call_operand.hbm [shape: f32[128,128], index: 18, kind: input, shape index: {}]
  %s19 = inlined_call_operand.vmem [shape: f32[1,128], index: 19, kind: input, shape index: {}]
  %s20 = inlined_call_operand.hbm [shape: f32[128,128], index: 20, kind: input, shape index: {}]
  %s21 = inlined_call_operand.vmem [shape: f32[1,128], index: 21, kind: input, shape index: {}]
  %s22 = inlined_call_operand.hbm [shape: f32[8,128], index: 22, kind: output, shape index: {}]
  %s23 = sld [smem:[#allocation0]]
  $region142: #{tpu_custom_call.1} parent=0
    _
  %s25 = ssub.s32 1, %s23
  %s26 = scalar_select 0, %s25, %s23
  %27 = sst [smem:[#allocation4]] %s0
  $region1: #{tpu_custom_call.1} parent=0
    #allocation5 [shape = 'u8[512]{0}', space=smem, size = 0x200, scoped, tag = 'input window, operand 1, single buffered']
    #allocation6 [shape = 's32[1]{0}', space=sflag, size = 0x4, scoped, tag = 'scoped memory for tpu_custom_call.1']
    #allocation7 [shape = 's32[1]{0}', space=sflag, size = 0x4, scoped, tag = 'scoped memory for tpu_custom_call.1']
    #allocation8 [shape = 's32[1]{0}', space=sflag, size = 0x4, scoped, tag = 'scoped memory for tpu_custom_call.1']
    #allocation9 [shape = 'u8[65536]{0}', space=vmem, size = 0x10000, scoped, tag = 'input window, operand 2, single buffered']
    #allocation10 [shape = 'u8[65536]{0}', space=vmem, size = 0x10000, scoped, tag = 'input window, operand 3, single buffered']
    #allocation11 [shape = 's32[1]{0}', space=sflag, size = 0x4, scoped, tag = 'scoped memory for tpu_custom_call.1']
    #allocation12 [shape = 'u8[131072]{0}', space=vmem, size = 0x20000, scoped, tag = 'input window, operand 6, single buffered']
    #allocation13 [shape = 'u8[65536]{0}', space=vmem, size = 0x10000, scoped, tag = 'input window, operand 8, single buffered']
    #allocation14 [shape = 's32[1]{0}', space=sflag, size = 0x4, scoped, tag = 'scoped memory for tpu_custom_call.1']
    #allocation15 [shape = 'u8[65536]{0}', space=vmem, size = 0x10000, scoped, tag = 'input window, operand 10, single buffered']
    #allocation16 [shape = 'u8[131072]{0}', space=vmem, size = 0x20000, scoped, tag = 'input window, operand 12, single buffered']
    #allocation17 [shape = 's32[1]{0}', space=sflag, size = 0x4, scoped, tag = 'scoped memory for tpu_custom_call.1']
    #allocation18 [shape = 'u8[131072]{0}', space=vmem, size = 0x20000, scoped, tag = 'input window, operand 14, single buffered']
    #allocation19 [shape = 'u8[65536]{0}', space=vmem, size = 0x10000, scoped, tag = 'input window, operand 16, single buffered']
    #allocation20 [shape = 's32[1]{0}', space=sflag, size = 0x4, scoped, tag = 'scoped memory for tpu_custom_call.1']
    #allocation21 [shape = 'u8[65536]{0}', space=vmem, size = 0x10000, scoped, tag = 'input window, operand 18, single buffered']
    #allocation22 [shape = 'u8[65536]{0}', space=vmem, size = 0x10000, scoped, tag = 'input window, operand 20, single buffered']
    #allocation23 [shape = 's32[1]{0}', space=sflag, size = 0x4, scoped, tag = 'scoped memory for tpu_custom_call.1']
    #allocation24 [shape = 'u8[4096]{0}', space=vmem, size = 0x1000, scoped, tag = 'output window, operand 0, single buffered']
    %28 = vsyncpa [#allocation8], 0
    %29 = vsyncpa [#allocation6], 0
    %30 = vsyncpa [#allocation11], 0
    %31 = vsyncpa [#allocation14], 0
    %32 = vsyncpa [#allocation17], 0
    %33 = vsyncpa [#allocation20], 0
    %34 = vsyncpa [#allocation23], 0
    %35 = vsyncpa [#allocation7], 0
    // Predicated region
    $region2: #{tpu_custom_call.1} parent=1 // pred_check
      _
    $region3: #{tpu_custom_call.1} parent=1 // pred_check_branch
      %37 = sbr.rel (0) target = $region5
    $region4: #{tpu_custom_call.1} parent=1 // pred_region
      _
    $region5: #{tpu_custom_call.1} parent=1 // pred_fallthru
      _
    // Predicated region
    $region6: #{tpu_custom_call.1} parent=1 // pred_check
      _
    $region7: #{tpu_custom_call.1} parent=1 // pred_check_branch
      %39 = sbr.rel (0) target = $region9
    $region8: #{tpu_custom_call.1} parent=1 // pred_region
      %s41 = ssub.s32 16, 16
      %42 = vsyncadd [#allocation8], %s41
      %s44 = sshll.u32 %s1, 4
      %s45 = int_to_ptr.vmem [resolvable:$true] %s44
      %47 = dma.vmem_to_smem %s45, 16, [#allocation5], [#allocation8]
    $region9: #{tpu_custom_call.1} parent=1 // pred_fallthru
      _
    // Predicated region
    $region10: #{tpu_custom_call.1} parent=1 // pred_check
      _
    $region11: #{tpu_custom_call.1} parent=1 // pred_check_branch
      %49 = sbr.rel (0) target = $region13
    $region12: #{tpu_custom_call.1} parent=1 // pred_region
      %s51 = ssub.s32 2048, 2048
      %52 = vsyncadd [#allocation6], %s51
      %s53 = sshll.u32 [#allocation9], 4
      %s54 = int_to_ptr.vmem [resolvable:$true] %s53
      %59 = dma.hbm_to_vmem [thread:$0]  %s2, 2048, %s54, [#allocation6], 128, 128, 8
    $region13: #{tpu_custom_call.1} parent=1 // pred_fallthru
      _
    // Predicated region
    $region14: #{tpu_custom_call.1} parent=1 // pred_check
      _
    $region15: #{tpu_custom_call.1} parent=1 // pred_check_branch
      %61 = sbr.rel (0) target = $region17
    $region16: #{tpu_custom_call.1} parent=1 // pred_region
      %s63 = ssub.s32 2048, 2048
      %64 = vsyncadd [#allocation11], %s63
      %s65 = sshll.u32 [#allocation10], 4
      %s66 = int_to_ptr.vmem [resolvable:$true] %s65
      %71 = dma.hbm_to_vmem [thread:$0]  %s3, 2048, %s66, [#allocation11], 128, 128, 8
    $region17: #{tpu_custom_call.1} parent=1 // pred_fallthru
      _
    // Predicated region
    $region18: #{tpu_custom_call.1} parent=1 // pred_check
      _
    $region19: #{tpu_custom_call.1} parent=1 // pred_check_branch
      %73 = sbr.rel (0) target = $region21
    $region20: #{tpu_custom_call.1} parent=1 // pred_region
      _
    $region21: #{tpu_custom_call.1} parent=1 // pred_fallthru
      _
    // Predicated region
    $region22: #{tpu_custom_call.1} parent=1 // pred_check
      _
    $region23: #{tpu_custom_call.1} parent=1 // pred_check_branch
      %75 = sbr.rel (0) target = $region25
    $region24: #{tpu_custom_call.1} parent=1 // pred_region
      _
    $region25: #{tpu_custom_call.1} parent=1 // pred_fallthru
      _
    // Predicated region
    $region26: #{tpu_custom_call.1} parent=1 // pred_check
      _
    $region27: #{tpu_custom_call.1} parent=1 // pred_check_branch
      %77 = sbr.rel (0) target = $region29
    $region28: #{tpu_custom_call.1} parent=1 // pred_region
      %s79 = ssub.s32 4096, 4096
      %80 = vsyncadd [#allocation11], %s79
      %s81 = sshll.u32 [#allocation12], 4
      %s82 = int_to_ptr.vmem [resolvable:$true] %s81
      %87 = dma.hbm_to_vmem [thread:$0]  %s6, 4096, %s82, [#allocation11], 256, 256, 16
    $region29: #{tpu_custom_call.1} parent=1 // pred_fallthru
      _
    // Predicated region
    $region30: #{tpu_custom_call.1} parent=1 // pred_check
      _
    $region31: #{tpu_custom_call.1} parent=1 // pred_check_branch
      %89 = sbr.rel (0) target = $region33
    $region32: #{tpu_custom_call.1} parent=1 // pred_region
      _
    $region33: #{tpu_custom_call.1} parent=1 // pred_fallthru
      _
    // Predicated region
    $region34: #{tpu_custom_call.1} parent=1 // pred_check
      _
    $region35: #{tpu_custom_call.1} parent=1 // pred_check_branch
      %91 = sbr.rel (0) target = $region37
    $region36: #{tpu_custom_call.1} parent=1 // pred_region
      %s93 = ssub.s32 2048, 2048
      %94 = vsyncadd [#allocation14], %s93
      %s95 = sshll.u32 [#allocation13], 4
      %s96 = int_to_ptr.vmem [resolvable:$true] %s95
      %101 = dma.hbm_to_vmem [thread:$0]  %s8, 2048, %s96, [#allocation14], 128, 128, 8
    $region37: #{tpu_custom_call.1} parent=1 // pred_fallthru
      _
    // Predicated region
    $region38: #{tpu_custom_call.1} parent=1 // pred_check
      _
    $region39: #{tpu_custom_call.1} parent=1 // pred_check_branch
      %103 = sbr.rel (0) target = $region41
    $region40: #{tpu_custom_call.1} parent=1 // pred_region
      _
    $region41: #{tpu_custom_call.1} parent=1 // pred_fallthru
      _
    // Predicated region
    $region42: #{tpu_custom_call.1} parent=1 // pred_check
      _
    $region43: #{tpu_custom_call.1} parent=1 // pred_check_branch
      %105 = sbr.rel (0) target = $region45
    $region44: #{tpu_custom_call.1} parent=1 // pred_region
      %s107 = ssub.s32 2048, 2048
      %108 = vsyncadd [#allocation14], %s107
      %s109 = sshll.u32 [#allocation15], 4
      %s110 = int_to_ptr.vmem [resolvable:$true] %s109
      %115 = dma.hbm_to_vmem [thread:$0]  %s10, 2048, %s110, [#allocation14], 128, 128, 8
    $region45: #{tpu_custom_call.1} parent=1 // pred_fallthru
      _
    // Predicated region
    $region46: #{tpu_custom_call.1} parent=1 // pred_check
      _
    $region47: #{tpu_custom_call.1} parent=1 // pred_check_branch
      %117 = sbr.rel (0) target = $region49
    $region48: #{tpu_custom_call.1} parent=1 // pred_region
      _
    $region49: #{tpu_custom_call.1} parent=1 // pred_fallthru
      _
    // Predicated region
    $region50: #{tpu_custom_call.1} parent=1 // pred_check
      _
    $region51: #{tpu_custom_call.1} parent=1 // pred_check_branch
      %119 = sbr.rel (0) target = $region53
    $region52: #{tpu_custom_call.1} parent=1 // pred_region
      %s121 = ssub.s32 4096, 4096
      %122 = vsyncadd [#allocation17], %s121
      %s123 = sshll.u32 [#allocation16], 4
      %s124 = int_to_ptr.vmem [resolvable:$true] %s123
      %129 = dma.hbm_to_vmem [thread:$0]  %s12, 4096, %s124, [#allocation17], 256, 256, 16
    $region53: #{tpu_custom_call.1} parent=1 // pred_fallthru
      _
    // Predicated region
    $region54: #{tpu_custom_call.1} parent=1 // pred_check
      _
    $region55: #{tpu_custom_call.1} parent=1 // pred_check_branch
      %131 = sbr.rel (0) target = $region57
    $region56: #{tpu_custom_call.1} parent=1 // pred_region
      _
    $region57: #{tpu_custom_call.1} parent=1 // pred_fallthru
      _
    // Predicated region
    $region58: #{tpu_custom_call.1} parent=1 // pred_check
      _
    $region59: #{tpu_custom_call.1} parent=1 // pred_check_branch
      %133 = sbr.rel (0) target = $region61
    $region60: #{tpu_custom_call.1} parent=1 // pred_region
      %s135 = ssub.s32 4096, 4096
      %136 = vsyncadd [#allocation17], %s135
      %s137 = sshll.u32 [#allocation18], 4
      %s138 = int_to_ptr.vmem [resolvable:$true] %s137
      %143 = dma.hbm_to_vmem [thread:$0]  %s14, 4096, %s138, [#allocation17], 128, 128, 8
    $region61: #{tpu_custom_call.1} parent=1 // pred_fallthru
      _
    // Predicated region
    $region62: #{tpu_custom_call.1} parent=1 // pred_check
      _
    $region63: #{tpu_custom_call.1} parent=1 // pred_check_branch
      %145 = sbr.rel (0) target = $region65
    $region64: #{tpu_custom_call.1} parent=1 // pred_region
      _
    $region65: #{tpu_custom_call.1} parent=1 // pred_fallthru
      _
    // Predicated region
    $region66: #{tpu_custom_call.1} parent=1 // pred_check
      _
    $region67: #{tpu_custom_call.1} parent=1 // pred_check_branch
      %147 = sbr.rel (0) target = $region69
    $region68: #{tpu_custom_call.1} parent=1 // pred_region
      %s149 = ssub.s32 2048, 2048
      %150 = vsyncadd [#allocation20], %s149
      %s151 = sshll.u32 [#allocation19], 4
      %s152 = int_to_ptr.vmem [resolvable:$true] %s151
      %157 = dma.hbm_to_vmem [thread:$0]  %s16, 2048, %s152, [#allocation20], 128, 128, 8
    $region69: #{tpu_custom_call.1} parent=1 // pred_fallthru
      _
    // Predicated region
    $region70: #{tpu_custom_call.1} parent=1 // pred_check
      _
    $region71: #{tpu_custom_call.1} parent=1 // pred_check_branch
      %159 = sbr.rel (0) target = $region73
    $region72: #{tpu_custom_call.1} parent=1 // pred_region
      _
    $region73: #{tpu_custom_call.1} parent=1 // pred_fallthru
      _
    // Predicated region
    $region74: #{tpu_custom_call.1} parent=1 // pred_check
      _
    $region75: #{tpu_custom_call.1} parent=1 // pred_check_branch
      %161 = sbr.rel (0) target = $region77
    $region76: #{tpu_custom_call.1} parent=1 // pred_region
      %s163 = ssub.s32 2048, 2048
      %164 = vsyncadd [#allocation20], %s163
      %s165 = sshll.u32 [#allocation21], 4
      %s166 = int_to_ptr.vmem [resolvable:$true] %s165
      %171 = dma.hbm_to_vmem [thread:$0]  %s18, 2048, %s166, [#allocation20], 128, 128, 8
    $region77: #{tpu_custom_call.1} parent=1 // pred_fallthru
      _
    // Predicated region
    $region78: #{tpu_custom_call.1} parent=1 // pred_check
      _
    $region79: #{tpu_custom_call.1} parent=1 // pred_check_branch
      %173 = sbr.rel (0) target = $region81
    $region80: #{tpu_custom_call.1} parent=1 // pred_region
      _
    $region81: #{tpu_custom_call.1} parent=1 // pred_fallthru
      _
    // Predicated region
    $region82: #{tpu_custom_call.1} parent=1 // pred_check
      _
    $region83: #{tpu_custom_call.1} parent=1 // pred_check_branch
      %175 = sbr.rel (0) target = $region85
    $region84: #{tpu_custom_call.1} parent=1 // pred_region
      %s177 = ssub.s32 2048, 2048
      %178 = vsyncadd [#allocation23], %s177
      %s179 = sshll.u32 [#allocation22], 4
      %s180 = int_to_ptr.vmem [resolvable:$true] %s179
      %185 = dma.hbm_to_vmem [thread:$0]  %s20, 2048, %s180, [#allocation23], 128, 128, 8
    $region85: #{tpu_custom_call.1} parent=1 // pred_fallthru
      _
    // Predicated region
    $region86: #{tpu_custom_call.1} parent=1 // pred_check
      _
    $region87: #{tpu_custom_call.1} parent=1 // pred_check_branch
      %187 = sbr.rel (0) target = $region89
    $region88: #{tpu_custom_call.1} parent=1 // pred_region
      _
    $region89: #{tpu_custom_call.1} parent=1 // pred_fallthru
      _
    // Predicated region
    $region90: #{tpu_custom_call.1} parent=1 // pred_check
      _
    $region91: #{tpu_custom_call.1} parent=1 // pred_check_branch
      %189 = sbr.rel (0) target = $region93
    $region92: #{tpu_custom_call.1} parent=1 // pred_region
      %190 = dma.done [#allocation8], 16
    $region93: #{tpu_custom_call.1} parent=1 // pred_fallthru
      _
    // Predicated region
    $region94: #{tpu_custom_call.1} parent=1 // pred_check
      _
    $region95: #{tpu_custom_call.1} parent=1 // pred_check_branch
      %192 = sbr.rel (0) target = $region97
    $region96: #{tpu_custom_call.1} parent=1 // pred_region
      %193 = dma.done [#allocation6], 2048
    $region97: #{tpu_custom_call.1} parent=1 // pred_fallthru
      _
    // Predicated region
    $region98: #{tpu_custom_call.1} parent=1 // pred_check
      _
    $region99: #{tpu_custom_call.1} parent=1 // pred_check_branch
      %195 = sbr.rel (0) target = $region101
    $region100: #{tpu_custom_call.1} parent=1 // pred_region
      %196 = dma.done [#allocation11], 2048
    $region101: #{tpu_custom_call.1} parent=1 // pred_fallthru
      _
    // Predicated region
    $region102: #{tpu_custom_call.1} parent=1 // pred_check
      _
    $region103: #{tpu_custom_call.1} parent=1 // pred_check_branch
      %198 = sbr.rel (0) target = $region105
    $region104: #{tpu_custom_call.1} parent=1 // pred_region
      %199 = dma.done [#allocation11], 4096
    $region105: #{tpu_custom_call.1} parent=1 // pred_fallthru
      _
    // Predicated region
    $region106: #{tpu_custom_call.1} parent=1 // pred_check
      _
    $region107: #{tpu_custom_call.1} parent=1 // pred_check_branch
      %201 = sbr.rel (0) target = $region109
    $region108: #{tpu_custom_call.1} parent=1 // pred_region
      %202 = dma.done [#allocation14], 2048
    $region109: #{tpu_custom_call.1} parent=1 // pred_fallthru
      _
    // Predicated region
    $region110: #{tpu_custom_call.1} parent=1 // pred_check
      _
    $region111: #{tpu_custom_call.1} parent=1 // pred_check_branch
      %204 = sbr.rel (0) target = $region113
    $region112: #{tpu_custom_call.1} parent=1 // pred_region
      %205 = dma.done [#allocation14], 2048
    $region113: #{tpu_custom_call.1} parent=1 // pred_fallthru
      _
    // Predicated region
    $region114: #{tpu_custom_call.1} parent=1 // pred_check
      _
    $region115: #{tpu_custom_call.1} parent=1 // pred_check_branch
      %207 = sbr.rel (0) target = $region117
    $region116: #{tpu_custom_call.1} parent=1 // pred_region
      %208 = dma.done [#allocation17], 4096
    $region117: #{tpu_custom_call.1} parent=1 // pred_fallthru
      _
    // Predicated region
    $region118: #{tpu_custom_call.1} parent=1 // pred_check
      _
    $region119: #{tpu_custom_call.1} parent=1 // pred_check_branch
      %210 = sbr.rel (0) target = $region121
    $region120: #{tpu_custom_call.1} parent=1 // pred_region
      %211 = dma.done [#allocation17], 4096
    $region121: #{tpu_custom_call.1} parent=1 // pred_fallthru
      _
    // Predicated region
    $region122: #{tpu_custom_call.1} parent=1 // pred_check
      _
    $region123: #{tpu_custom_call.1} parent=1 // pred_check_branch
      %213 = sbr.rel (0) target = $region125
    $region124: #{tpu_custom_call.1} parent=1 // pred_region
      %214 = dma.done [#allocation20], 2048
    $region125: #{tpu_custom_call.1} parent=1 // pred_fallthru
      _
    // Predicated region
    $region126: #{tpu_custom_call.1} parent=1 // pred_check
      _
    $region127: #{tpu_custom_call.1} parent=1 // pred_check_branch
      %216 = sbr.rel (0) target = $region129
    $region128: #{tpu_custom_call.1} parent=1 // pred_region
      %217 = dma.done [#allocation20], 2048
    $region129: #{tpu_custom_call.1} parent=1 // pred_fallthru
      _
    // Predicated region
    $region130: #{tpu_custom_call.1} parent=1 // pred_check
      _
    $region131: #{tpu_custom_call.1} parent=1 // pred_check_branch
      %219 = sbr.rel (0) target = $region133
    $region132: #{tpu_custom_call.1} parent=1 // pred_region
      %220 = dma.done [#allocation23], 2048
    $region133: #{tpu_custom_call.1} parent=1 // pred_fallthru
      _
    %221 = sfence
    %v222 = vlaneseq
    %v223 = vshrl.u32 %v222, 7
    %v224 = vadd.s32 %v223, 8
    %v225 = vadd.s32 %v223, 16
    %v226 = vadd.s32 %v223, 24
    %v227 = vadd.s32 %v223, 32
    %v228 = vadd.s32 %v223, 40
    %v229 = vadd.s32 %v223, 48
    %v230 = vadd.s32 %v223, 56
    %v231 = vadd.s32 %v223, 64
    %v232 = vadd.s32 %v223, 72
    %v233 = vadd.s32 %v223, 80
    %v234 = vadd.s32 %v223, 88
    %v235 = vadd.s32 %v223, 96
    %v236 = vadd.s32 %v223, 104
    %v237 = vadd.s32 %v223, 112
    %v238 = vadd.s32 %v223, 120
    %v239 = vld [vmem:[%s4] sm:$0x1]
    %v240 = vlaneseq
    %v241 = vshrl.u32 %v240, 7
    %v242 = vsub.s32 0, %v241
    %v243 = vrot.slane %v239, %v242
    %vm244 = vcmp.eq.s32.totalorder %v243, %v223
    %vm245 = vcmp.eq.s32.totalorder %v243, %v224
    %vm246 = vcmp.eq.s32.totalorder %v243, %v225
    %vm247 = vcmp.eq.s32.totalorder %v243, %v226
    %vm248 = vcmp.eq.s32.totalorder %v243, %v227
    %vm249 = vcmp.eq.s32.totalorder %v243, %v228
    %vm250 = vcmp.eq.s32.totalorder %v243, %v229
    %vm251 = vcmp.eq.s32.totalorder %v243, %v230
    %vm252 = vcmp.eq.s32.totalorder %v243, %v231
    %vm253 = vcmp.eq.s32.totalorder %v243, %v232
    %vm254 = vcmp.eq.s32.totalorder %v243, %v233
    %vm255 = vcmp.eq.s32.totalorder %v243, %v234
    %vm256 = vcmp.eq.s32.totalorder %v243, %v235
    %vm257 = vcmp.eq.s32.totalorder %v243, %v236
    %vm258 = vcmp.eq.s32.totalorder %v243, %v237
    %vm259 = vcmp.eq.s32.totalorder %v243, %v238
    %v260 = vsel %vm244, 1, 0
    %v261 = vsel %vm245, 1, 0
    %v262 = vsel %vm246, 1, 0
    %v263 = vsel %vm247, 1, 0
    %v264 = vsel %vm248, 1, 0
    %v265 = vsel %vm249, 1, 0
    %v266 = vsel %vm250, 1, 0
    %v267 = vsel %vm251, 1, 0
    %v268 = vsel %vm252, 1, 0
    %v269 = vsel %vm253, 1, 0
    %v270 = vsel %vm254, 1, 0
    %v271 = vsel %vm255, 1, 0
    %v272 = vsel %vm256, 1, 0
    %v273 = vsel %vm257, 1, 0
    %v274 = vsel %vm258, 1, 0
    %v275 = vsel %vm259, 1, 0
    %v276 = vcvt.s32.f32 %v260
    %v277 = vcvt.s32.f32 %v261
    %v278 = vcvt.s32.f32 %v262
    %v279 = vcvt.s32.f32 %v263
    %v280 = vcvt.s32.f32 %v264
    %v281 = vcvt.s32.f32 %v265
    %v282 = vcvt.s32.f32 %v266
    %v283 = vcvt.s32.f32 %v267
    %v284 = vcvt.s32.f32 %v268
    %v285 = vcvt.s32.f32 %v269
    %v286 = vcvt.s32.f32 %v270
    %v287 = vcvt.s32.f32 %v271
    %v288 = vcvt.s32.f32 %v272
    %v289 = vcvt.s32.f32 %v273
    %v290 = vcvt.s32.f32 %v274
    %v291 = vcvt.s32.f32 %v275
    %v292 = vld [vmem:[%s5] sm:$0x1]
    %v293 = vlaneseq
    %v294 = vshrl.u32 %v293, 7
    %v295 = vsub.s32 0, %v294
    %v296 = vrot.slane %v292, %v295
    %vm297 = vcmp.eq.s32.totalorder %v296, %v223
    %v298 = vsel %vm297, 1, 0
    %v299 = vcvt.s32.f32 %v298
    %v300 = vld [vmem:[#allocation10] sm:$0xff]
    %v301 = vld [vmem:[#allocation10 + $0x8] sm:$0xff]
    %v302 = vld [vmem:[#allocation10 + $0x10] sm:$0xff]
    %v303 = vld [vmem:[#allocation10 + $0x18] sm:$0xff]
    %v304 = vld [vmem:[#allocation10 + $0x20] sm:$0xff]
    %v305 = vld [vmem:[#allocation10 + $0x28] sm:$0xff]
    %v306 = vld [vmem:[#allocation10 + $0x30] sm:$0xff]
    %v307 = vld [vmem:[#allocation10 + $0x38] sm:$0xff]
    %v308 = vld [vmem:[#allocation10 + $0x40] sm:$0xff]
    %v309 = vld [vmem:[#allocation10 + $0x48] sm:$0xff]
    %v310 = vld [vmem:[#allocation10 + $0x50] sm:$0xff]
    %v311 = vld [vmem:[#allocation10 + $0x58] sm:$0xff]
    %v312 = vld [vmem:[#allocation10 + $0x60] sm:$0xff]
    %v313 = vld [vmem:[#allocation10 + $0x68] sm:$0xff]
    %v314 = vld [vmem:[#allocation10 + $0x70] sm:$0xff]
    %v315 = vld [vmem:[#allocation10 + $0x78] sm:$0xff]
    %v316 = vld [vmem:[#allocation12] sm:$0xff]
    %v317 = vld [vmem:[#allocation12 + $0x8] sm:$0xff]
    %v318 = vld [vmem:[#allocation12 + $0x10] sm:$0xff]
    %v319 = vld [vmem:[#allocation12 + $0x18] sm:$0xff]
    %v320 = vld [vmem:[#allocation12 + $0x20] sm:$0xff]
    %v321 = vld [vmem:[#allocation12 + $0x28] sm:$0xff]
    %v322 = vld [vmem:[#allocation12 + $0x30] sm:$0xff]
    %v323 = vld [vmem:[#allocation12 + $0x38] sm:$0xff]
    %v324 = vld [vmem:[#allocation12 + $0x40] sm:$0xff]
    %v325 = vld [vmem:[#allocation12 + $0x48] sm:$0xff]
    %v326 = vld [vmem:[#allocation12 + $0x50] sm:$0xff]
    %v327 = vld [vmem:[#allocation12 + $0x58] sm:$0xff]
    %v328 = vld [vmem:[#allocation12 + $0x60] sm:$0xff]
    %v329 = vld [vmem:[#allocation12 + $0x68] sm:$0xff]
    %v330 = vld [vmem:[#allocation12 + $0x70] sm:$0xff]
    %v331 = vld [vmem:[#allocation12 + $0x78] sm:$0xff]
    %v332 = vld [vmem:[#allocation12 + $0x80] sm:$0xff]
    %v333 = vld [vmem:[#allocation12 + $0x88] sm:$0xff]
    %v334 = vld [vmem:[#allocation12 + $0x90] sm:$0xff]
    %v335 = vld [vmem:[#allocation12 + $0x98] sm:$0xff]
    %v336 = vld [vmem:[#allocation12 + $0xa0] sm:$0xff]
    %v337 = vld [vmem:[#allocation12 + $0xa8] sm:$0xff]
    %v338 = vld [vmem:[#allocation12 + $0xb0] sm:$0xff]
    %v339 = vld [vmem:[#allocation12 + $0xb8] sm:$0xff]
    %v340 = vld [vmem:[#allocation12 + $0xc0] sm:$0xff]
    %v341 = vld [vmem:[#allocation12 + $0xc8] sm:$0xff]
    %v342 = vld [vmem:[#allocation12 + $0xd0] sm:$0xff]
    %v343 = vld [vmem:[#allocation12 + $0xd8] sm:$0xff]
    %v344 = vld [vmem:[#allocation12 + $0xe0] sm:$0xff]
    %v345 = vld [vmem:[#allocation12 + $0xe8] sm:$0xff]
    %v346 = vld [vmem:[#allocation12 + $0xf0] sm:$0xff]
    %v347 = vld [vmem:[#allocation12 + $0xf8] sm:$0xff]
    %v348 = vld [vmem:[%s7] sm:$0x3]
    %v350 = vlaneseq
    %v351 = vshrl.u32 %v350, 7
    %v352 = vsub.s32 0, %v351
    %v353 = vrot.slane %v348, %v352
    %v354 = vlaneseq
    %v355 = vshrl.u32 %v354, 7
    %v356 = vsub.s32 1, %v355
    %v357 = vrot.slane %v348, %v356
    %360 = vmatprep.subr.mxu0 %v317
    %361 = vmatpush1.msra.mxu0 %v316
    %362 = vmatprep.subr.mxu0 %v319
    %363 = vmatpush1.msra.mxu0 %v318
    %364 = vmatprep.subr.mxu0 %v321
    %365 = vmatpush1.msra.mxu0 %v320
    %366 = vmatprep.subr.mxu0 %v323
    %367 = vmatpush1.msra.mxu0 %v322
    %368 = vmatprep.subr.mxu0 %v325
    %369 = vmatpush1.msra.mxu0 %v324
    %370 = vmatprep.subr.mxu0 %v327
    %371 = vmatpush1.msra.mxu0 %v326
    %372 = vmatprep.subr.mxu0 %v329
    %373 = vmatpush1.msra.mxu0 %v328
    %374 = vmatprep.subr.mxu0 %v331
    %375 = vmatpush1.msra.mxu0 %v330
    %376 = vmatprep.subr.mxu0 %v333
    %377 = vmatpush1.msra.mxu0 %v332
    %378 = vmatprep.subr.mxu0 %v335
    %379 = vmatpush1.msra.mxu0 %v334
    %380 = vmatprep.subr.mxu0 %v337
    %381 = vmatpush1.msra.mxu0 %v336
    %382 = vmatprep.subr.mxu0 %v339
    %383 = vmatpush1.msra.mxu0 %v338
    %384 = vmatprep.subr.mxu0 %v341
    %385 = vmatpush1.msra.mxu0 %v340
    %386 = vmatprep.subr.mxu0 %v343
    %387 = vmatpush1.msra.mxu0 %v342
    %388 = vmatprep.subr.mxu0 %v345
    %389 = vmatpush1.msra.mxu0 %v344
    %390 = vmatprep.subr.mxu0 %v347
    %391 = vmatpush1.msra.mxu0 %v346
    %392 = vmatprep.subr.mxu0 0.0
    %393 = vmatpush1.msra.mxu0 0.0
    %394 = vmatprep.subr.mxu0 0.0
    %395 = vmatpush1.msra.mxu0 0.0
    %396 = vmatprep.subr.mxu0 0.0
    %397 = vmatpush1.msra.mxu0 0.0
    %398 = vmatprep.subr.mxu0 0.0
    %399 = vmatpush1.msra.mxu0 0.0
    %400 = vmatprep.subr.mxu0 0.0
    %401 = vmatpush1.msra.mxu0 0.0
    %402 = vmatprep.subr.mxu0 0.0
    %403 = vmatpush1.msra.mxu0 0.0
    %404 = vmatprep.subr.mxu0 0.0
    %405 = vmatpush1.msra.mxu0 0.0
    %406 = vmatprep.subr.mxu0 0.0
    %407 = vmatpush1.msra.mxu0 0.0
    %408 = vmatprep.subr.mxu0 0.0
    %409 = vmatpush1.msra.mxu0 0.0
    %410 = vmatprep.subr.mxu0 0.0
    %411 = vmatpush1.msra.mxu0 0.0
    %412 = vmatprep.subr.mxu0 0.0
    %413 = vmatpush1.msra.mxu0 0.0
    %414 = vmatprep.subr.mxu0 0.0
    %415 = vmatpush1.msra.mxu0 0.0
    %416 = vmatprep.subr.mxu0 0.0
    %417 = vmatpush1.msra.mxu0 0.0
    %418 = vmatprep.subr.mxu0 0.0
    %419 = vmatpush1.msra.mxu0 0.0
    %420 = vmatprep.subr.mxu0 0.0
    %421 = vmatpush1.msra.mxu0 0.0
    %422 = vmatprep.subr.mxu0 0.0
    %423 = vmatpush1.msra.mxu0 0.0
    %424 = vmatprep.mubr.f32.mxu0 0.0
    %425 = vmatmul.mubr.f32.gmra.mrb[0].mxu0 %v300
    %v426 = vpop.f32.mrb[0].mxu0
    %v427 = vadd.f32 %v353, %v426
    %v428 = vpop.f32.mrb[0].mxu0
    %v429 = vadd.f32 %v357, %v428
    %430 = vmatprep.mubr.f32.mxu0 0.0
    %431 = vmatmul.mubr.f32.gmra.mrb[0].mxu0 %v301
    %v432 = vpop.f32.mrb[0].mxu0
    %v433 = vadd.f32 %v353, %v432
    %v434 = vpop.f32.mrb[0].mxu0
    %v435 = vadd.f32 %v357, %v434
    %436 = vmatprep.mubr.f32.mxu0 0.0
    %437 = vmatmul.mubr.f32.gmra.mrb[0].mxu0 %v302
    %v438 = vpop.f32.mrb[0].mxu0
    %v439 = vadd.f32 %v353, %v438
    %v440 = vpop.f32.mrb[0].mxu0
    %v441 = vadd.f32 %v357, %v440
    %442 = vmatprep.mubr.f32.mxu0 0.0
    %443 = vmatmul.mubr.f32.gmra.mrb[0].mxu0 %v303
    %v444 = vpop.f32.mrb[0].mxu0
    %v445 = vadd.f32 %v353, %v444
    %v446 = vpop.f32.mrb[0].mxu0
    %v447 = vadd.f32 %v357, %v446
    %448 = vmatprep.mubr.f32.mxu0 0.0
    %449 = vmatmul.mubr.f32.gmra.mrb[0].mxu0 %v304
    %v450 = vpop.f32.mrb[0].mxu0
    %v451 = vadd.f32 %v353, %v450
    %v452 = vpop.f32.mrb[0].mxu0
    %v453 = vadd.f32 %v357, %v452
    %454 = vmatprep.mubr.f32.mxu0 0.0
    %455 = vmatmul.mubr.f32.gmra.mrb[0].mxu0 %v305
    %v456 = vpop.f32.mrb[0].mxu0
    %v457 = vadd.f32 %v353, %v456
    %v458 = vpop.f32.mrb[0].mxu0
    %v459 = vadd.f32 %v357, %v458
    %460 = vmatprep.mubr.f32.mxu0 0.0
    %461 = vmatmul.mubr.f32.gmra.mrb[0].mxu0 %v306
    %v462 = vpop.f32.mrb[0].mxu0
    %v463 = vadd.f32 %v353, %v462
    %v464 = vpop.f32.mrb[0].mxu0
    %v465 = vadd.f32 %v357, %v464
    %466 = vmatprep.mubr.f32.mxu0 0.0
    %467 = vmatmul.mubr.f32.gmra.mrb[0].mxu0 %v307
    %v468 = vpop.f32.mrb[0].mxu0
    %v469 = vadd.f32 %v353, %v468
    %v470 = vpop.f32.mrb[0].mxu0
    %v471 = vadd.f32 %v357, %v470
    %472 = vmatprep.mubr.f32.mxu0 0.0
    %473 = vmatmul.mubr.f32.gmra.mrb[0].mxu0 %v308
    %v474 = vpop.f32.mrb[0].mxu0
    %v475 = vadd.f32 %v353, %v474
    %v476 = vpop.f32.mrb[0].mxu0
    %v477 = vadd.f32 %v357, %v476
    %478 = vmatprep.mubr.f32.mxu0 0.0
    %479 = vmatmul.mubr.f32.gmra.mrb[0].mxu0 %v309
    %v480 = vpop.f32.mrb[0].mxu0
    %v481 = vadd.f32 %v353, %v480
    %v482 = vpop.f32.mrb[0].mxu0
    %v483 = vadd.f32 %v357, %v482
    %484 = vmatprep.mubr.f32.mxu0 0.0
    %485 = vmatmul.mubr.f32.gmra.mrb[0].mxu0 %v310
    %v486 = vpop.f32.mrb[0].mxu0
    %v487 = vadd.f32 %v353, %v486
    %v488 = vpop.f32.mrb[0].mxu0
    %v489 = vadd.f32 %v357, %v488
    %490 = vmatprep.mubr.f32.mxu0 0.0
    %491 = vmatmul.mubr.f32.gmra.mrb[0].mxu0 %v311
    %v492 = vpop.f32.mrb[0].mxu0
    %v493 = vadd.f32 %v353, %v492
    %v494 = vpop.f32.mrb[0].mxu0
    %v495 = vadd.f32 %v357, %v494
    %496 = vmatprep.mubr.f32.mxu0 0.0
    %497 = vmatmul.mubr.f32.gmra.mrb[0].mxu0 %v312
    %v498 = vpop.f32.mrb[0].mxu0
    %v499 = vadd.f32 %v353, %v498
    %v500 = vpop.f32.mrb[0].mxu0
    %v501 = vadd.f32 %v357, %v500
    %502 = vmatprep.mubr.f32.mxu0 0.0
    %503 = vmatmul.mubr.f32.gmra.mrb[0].mxu0 %v313
    %v504 = vpop.f32.mrb[0].mxu0
    %v505 = vadd.f32 %v353, %v504
    %v506 = vpop.f32.mrb[0].mxu0
    %v507 = vadd.f32 %v357, %v506
    %508 = vmatprep.mubr.f32.mxu0 0.0
    %509 = vmatmul.mubr.f32.gmra.mrb[0].mxu0 %v314
    %v510 = vpop.f32.mrb[0].mxu0
    %v511 = vadd.f32 %v353, %v510
    %v512 = vpop.f32.mrb[0].mxu0
    %v513 = vadd.f32 %v357, %v512
    %514 = vmatprep.mubr.f32.mxu0 0.0
    %515 = vmatmul.mubr.f32.gmra.mrb[0].mxu0 %v315
    %v516 = vpop.f32.mrb[0].mxu0
    %v517 = vadd.f32 %v353, %v516
    %v518 = vpop.f32.mrb[0].mxu0
    %v519 = vadd.f32 %v357, %v518
    %520 = vdwg.mxu0
    %v521 = vld [vmem:[#allocation9] sm:$0xff]
    %v522 = vld [vmem:[#allocation9 + $0x8] sm:$0xff]
    %v523 = vld [vmem:[#allocation9 + $0x10] sm:$0xff]
    %v524 = vld [vmem:[#allocation9 + $0x18] sm:$0xff]
    %v525 = vld [vmem:[#allocation9 + $0x20] sm:$0xff]
    %v526 = vld [vmem:[#allocation9 + $0x28] sm:$0xff]
    %v527 = vld [vmem:[#allocation9 + $0x30] sm:$0xff]
    %v528 = vld [vmem:[#allocation9 + $0x38] sm:$0xff]
    %v529 = vld [vmem:[#allocation9 + $0x40] sm:$0xff]
    %v530 = vld [vmem:[#allocation9 + $0x48] sm:$0xff]
    %v531 = vld [vmem:[#allocation9 + $0x50] sm:$0xff]
    %v532 = vld [vmem:[#allocation9 + $0x58] sm:$0xff]
    %v533 = vld [vmem:[#allocation9 + $0x60] sm:$0xff]
    %v534 = vld [vmem:[#allocation9 + $0x68] sm:$0xff]
    %v535 = vld [vmem:[#allocation9 + $0x70] sm:$0xff]
    %v536 = vld [vmem:[#allocation9 + $0x78] sm:$0xff]
    %537 = vst [vmem:[#allocation2] sm:$0xff] %v521
    %538 = vst [vmem:[#allocation2 + $0x8] sm:$0xff] %v522
    %539 = vst [vmem:[#allocation2 + $0x10] sm:$0xff] %v523
    %540 = vst [vmem:[#allocation2 + $0x18] sm:$0xff] %v524
    %541 = vst [vmem:[#allocation2 + $0x20] sm:$0xff] %v525
    %542 = vst [vmem:[#allocation2 + $0x28] sm:$0xff] %v526
    %543 = vst [vmem:[#allocation2 + $0x30] sm:$0xff] %v527
    %544 = vst [vmem:[#allocation2 + $0x38] sm:$0xff] %v528
    %545 = vst [vmem:[#allocation2 + $0x40] sm:$0xff] %v529
    %546 = vst [vmem:[#allocation2 + $0x48] sm:$0xff] %v530
    %547 = vst [vmem:[#allocation2 + $0x50] sm:$0xff] %v531
    %548 = vst [vmem:[#allocation2 + $0x58] sm:$0xff] %v532
    %549 = vst [vmem:[#allocation2 + $0x60] sm:$0xff] %v533
    %550 = vst [vmem:[#allocation2 + $0x68] sm:$0xff] %v534
    %551 = vst [vmem:[#allocation2 + $0x70] sm:$0xff] %v535
    %552 = vst [vmem:[#allocation2 + $0x78] sm:$0xff] %v536
    %553 = vst [vmem:[#allocation3] sm:$0xff] 0.0
    %554 = vst [vmem:[#allocation3 + $0x8] sm:$0xff] 0.0
    %555 = vst [vmem:[#allocation3 + $0x10] sm:$0xff] 0.0
    %556 = vst [vmem:[#allocation3 + $0x18] sm:$0xff] 0.0
    %557 = vst [vmem:[#allocation3 + $0x20] sm:$0xff] 0.0
    %558 = vst [vmem:[#allocation3 + $0x28] sm:$0xff] 0.0
    %559 = vst [vmem:[#allocation3 + $0x30] sm:$0xff] 0.0
    %560 = vst [vmem:[#allocation3 + $0x38] sm:$0xff] 0.0
    %561 = vst [vmem:[#allocation3 + $0x40] sm:$0xff] 0.0
    %562 = vst [vmem:[#allocation3 + $0x48] sm:$0xff] 0.0
    %563 = vst [vmem:[#allocation3 + $0x50] sm:$0xff] 0.0
    %564 = vst [vmem:[#allocation3 + $0x58] sm:$0xff] 0.0
    %565 = vst [vmem:[#allocation3 + $0x60] sm:$0xff] 0.0
    %566 = vst [vmem:[#allocation3 + $0x68] sm:$0xff] 0.0
    %567 = vst [vmem:[#allocation3 + $0x70] sm:$0xff] 0.0
    %568 = vst [vmem:[#allocation3 + $0x78] sm:$0xff] 0.0
    %v569 = vld [vmem:[#allocation13] sm:$0xff]
    %v570 = vld [vmem:[#allocation13 + $0x8] sm:$0xff]
    %v571 = vld [vmem:[#allocation13 + $0x10] sm:$0xff]
    %v572 = vld [vmem:[#allocation13 + $0x18] sm:$0xff]
    %v573 = vld [vmem:[#allocation13 + $0x20] sm:$0xff]
    %v574 = vld [vmem:[#allocation13 + $0x28] sm:$0xff]
    %v575 = vld [vmem:[#allocation13 + $0x30] sm:$0xff]
    %v576 = vld [vmem:[#allocation13 + $0x38] sm:$0xff]
    %v577 = vld [vmem:[#allocation13 + $0x40] sm:$0xff]
    %v578 = vld [vmem:[#allocation13 + $0x48] sm:$0xff]
    %v579 = vld [vmem:[#allocation13 + $0x50] sm:$0xff]
    %v580 = vld [vmem:[#allocation13 + $0x58] sm:$0xff]
    %v581 = vld [vmem:[#allocation13 + $0x60] sm:$0xff]
    %v582 = vld [vmem:[#allocation13 + $0x68] sm:$0xff]
    %v583 = vld [vmem:[#allocation13 + $0x70] sm:$0xff]
    %v584 = vld [vmem:[#allocation13 + $0x78] sm:$0xff]
    %v585 = vld [vmem:[%s9] sm:$0x1]
    %v586 = vld [vmem:[#allocation15] sm:$0xff]
    %v587 = vld [vmem:[#allocation15 + $0x8] sm:$0xff]
    %v588 = vld [vmem:[#allocation15 + $0x10] sm:$0xff]
    %v589 = vld [vmem:[#allocation15 + $0x18] sm:$0xff]
    %v590 = vld [vmem:[#allocation15 + $0x20] sm:$0xff]
    %v591 = vld [vmem:[#allocation15 + $0x28] sm:$0xff]
    %v592 = vld [vmem:[#allocation15 + $0x30] sm:$0xff]
    %v593 = vld [vmem:[#allocation15 + $0x38] sm:$0xff]
    %v594 = vld [vmem:[#allocation15 + $0x40] sm:$0xff]
    %v595 = vld [vmem:[#allocation15 + $0x48] sm:$0xff]
    %v596 = vld [vmem:[#allocation15 + $0x50] sm:$0xff]
    %v597 = vld [vmem:[#allocation15 + $0x58] sm:$0xff]
    %v598 = vld [vmem:[#allocation15 + $0x60] sm:$0xff]
    %v599 = vld [vmem:[#allocation15 + $0x68] sm:$0xff]
    %v600 = vld [vmem:[#allocation15 + $0x70] sm:$0xff]
    %v601 = vld [vmem:[#allocation15 + $0x78] sm:$0xff]
    %v602 = vld [vmem:[%s11] sm:$0x1]
    %s603 = sld [smem:[#allocation5]]
    %s604 = scalar_lea.vmem [#allocation2], %s603
    %v605 = vld [vmem:[%s604] sm:$0x1]
    %606 = vst [vmem:[#allocation3] sm:$0x1] %v605
    %s607 = sld [smem:[#allocation5 + $0x1]]
    %s608 = scalar_lea.vmem [#allocation2], %s607
    %v609 = vld [vmem:[%s608] sm:$0x1]
    %610 = vst [vmem:[#allocation3 + $0x1] sm:$0x1] %v609
    %s611 = sld [smem:[#allocation5 + $0x2]]
    %s612 = scalar_lea.vmem [#allocation2], %s611
    %v613 = vld [vmem:[%s612] sm:$0x1]
    %614 = vst [vmem:[#allocation3 + $0x2] sm:$0x1] %v613
    %s615 = sld [smem:[#allocation5 + $0x3]]
    %s616 = scalar_lea.vmem [#allocation2], %s615
    %v617 = vld [vmem:[%s616] sm:$0x1]
    %618 = vst [vmem:[#allocation3 + $0x3] sm:$0x1] %v617
    %s619 = sld [smem:[#allocation5 + $0x4]]
    %s620 = scalar_lea.vmem [#allocation2], %s619
    %v621 = vld [vmem:[%s620] sm:$0x1]
    %622 = vst [vmem:[#allocation3 + $0x4] sm:$0x1] %v621
    %s623 = sld [smem:[#allocation5 + $0x5]]
    %s624 = scalar_lea.vmem [#allocation2], %s623
    %v625 = vld [vmem:[%s624] sm:$0x1]
    %626 = vst [vmem:[#allocation3 + $0x5] sm:$0x1] %v625
    %s627 = sld [smem:[#allocation5 + $0x6]]
    %s628 = scalar_lea.vmem [#allocation2], %s627
    %v629 = vld [vmem:[%s628] sm:$0x1]
    %630 = vst [vmem:[#allocation3 + $0x6] sm:$0x1] %v629
    %s631 = sld [smem:[#allocation5 + $0x7]]
    %s632 = scalar_lea.vmem [#allocation2], %s631
    %v633 = vld [vmem:[%s632] sm:$0x1]
    %634 = vst [vmem:[#allocation3 + $0x7] sm:$0x1] %v633
    %s635 = sld [smem:[#allocation5 + $0x8]]
    %s636 = scalar_lea.vmem [#allocation2], %s635
    %v637 = vld [vmem:[%s636] sm:$0x1]
    %638 = vst [vmem:[#allocation3 + $0x8] sm:$0x1] %v637
    %s639 = sld [smem:[#allocation5 + $0x9]]
    %s640 = scalar_lea.vmem [#allocation2], %s639
    %v641 = vld [vmem:[%s640] sm:$0x1]
    %642 = vst [vmem:[#allocation3 + $0x9] sm:$0x1] %v641
    %s643 = sld [smem:[#allocation5 + $0xa]]
    %s644 = scalar_lea.vmem [#allocation2], %s643
    %v645 = vld [vmem:[%s644] sm:$0x1]
    %646 = vst [vmem:[#allocation3 + $0xa] sm:$0x1] %v645
    %s647 = sld [smem:[#allocation5 + $0xb]]
    %s648 = scalar_lea.vmem [#allocation2], %s647
    %v649 = vld [vmem:[%s648] sm:$0x1]
    %650 = vst [vmem:[#allocation3 + $0xb] sm:$0x1] %v649
    %s651 = sld [smem:[#allocation5 + $0xc]]
    %s652 = scalar_lea.vmem [#allocation2], %s651
    %v653 = vld [vmem:[%s652] sm:$0x1]
    %654 = vst [vmem:[#allocation3 + $0xc] sm:$0x1] %v653
    %s655 = sld [smem:[#allocation5 + $0xd]]
    %s656 = scalar_lea.vmem [#allocation2], %s655
    %v657 = vld [vmem:[%s656] sm:$0x1]
    %658 = vst [vmem:[#allocation3 + $0xd] sm:$0x1] %v657
    %s659 = sld [smem:[#allocation5 + $0xe]]
    %s660 = scalar_lea.vmem [#allocation2], %s659
    %v661 = vld [vmem:[%s660] sm:$0x1]
    %662 = vst [vmem:[#allocation3 + $0xe] sm:$0x1] %v661
    %s663 = sld [smem:[#allocation5 + $0xf]]
    %s664 = scalar_lea.vmem [#allocation2], %s663
    %v665 = vld [vmem:[%s664] sm:$0x1]
    %666 = vst [vmem:[#allocation3 + $0xf] sm:$0x1] %v665
    %s667 = sld [smem:[#allocation5 + $0x10]]
    %s668 = scalar_lea.vmem [#allocation2], %s667
    %v669 = vld [vmem:[%s668] sm:$0x1]
    %670 = vst [vmem:[#allocation3 + $0x10] sm:$0x1] %v669
    %s671 = sld [smem:[#allocation5 + $0x11]]
    %s672 = scalar_lea.vmem [#allocation2], %s671
    %v673 = vld [vmem:[%s672] sm:$0x1]
    %674 = vst [vmem:[#allocation3 + $0x11] sm:$0x1] %v673
    %s675 = sld [smem:[#allocation5 + $0x12]]
    %s676 = scalar_lea.vmem [#allocation2], %s675
    %v677 = vld [vmem:[%s676] sm:$0x1]
    %678 = vst [vmem:[#allocation3 + $0x12] sm:$0x1] %v677
    %s679 = sld [smem:[#allocation5 + $0x13]]
    %s680 = scalar_lea.vmem [#allocation2], %s679
    %v681 = vld [vmem:[%s680] sm:$0x1]
    %682 = vst [vmem:[#allocation3 + $0x13] sm:$0x1] %v681
    %s683 = sld [smem:[#allocation5 + $0x14]]
    %s684 = scalar_lea.vmem [#allocation2], %s683
    %v685 = vld [vmem:[%s684] sm:$0x1]
    %686 = vst [vmem:[#allocation3 + $0x14] sm:$0x1] %v685
    %s687 = sld [smem:[#allocation5 + $0x15]]
    %s688 = scalar_lea.vmem [#allocation2], %s687
    %v689 = vld [vmem:[%s688] sm:$0x1]
    %690 = vst [vmem:[#allocation3 + $0x15] sm:$0x1] %v689
    %s691 = sld [smem:[#allocation5 + $0x16]]
    %s692 = scalar_lea.vmem [#allocation2], %s691
    %v693 = vld [vmem:[%s692] sm:$0x1]
    %694 = vst [vmem:[#allocation3 + $0x16] sm:$0x1] %v693
    %s695 = sld [smem:[#allocation5 + $0x17]]
    %s696 = scalar_lea.vmem [#allocation2], %s695
    %v697 = vld [vmem:[%s696] sm:$0x1]
    %698 = vst [vmem:[#allocation3 + $0x17] sm:$0x1] %v697
    %s699 = sld [smem:[#allocation5 + $0x18]]
    %s700 = scalar_lea.vmem [#allocation2], %s699
    %v701 = vld [vmem:[%s700] sm:$0x1]
    %702 = vst [vmem:[#allocation3 + $0x18] sm:$0x1] %v701
    %s703 = sld [smem:[#allocation5 + $0x19]]
    %s704 = scalar_lea.vmem [#allocation2], %s703
    %v705 = vld [vmem:[%s704] sm:$0x1]
    %706 = vst [vmem:[#allocation3 + $0x19] sm:$0x1] %v705
    %s707 = sld [smem:[#allocation5 + $0x1a]]
    %s708 = scalar_lea.vmem [#allocation2], %s707
    %v709 = vld [vmem:[%s708] sm:$0x1]
    %710 = vst [vmem:[#allocation3 + $0x1a] sm:$0x1] %v709
    %s711 = sld [smem:[#allocation5 + $0x1b]]
    %s712 = scalar_lea.vmem [#allocation2], %s711
    %v713 = vld [vmem:[%s712] sm:$0x1]
    %714 = vst [vmem:[#allocation3 + $0x1b] sm:$0x1] %v713
    %s715 = sld [smem:[#allocation5 + $0x1c]]
    %s716 = scalar_lea.vmem [#allocation2], %s715
    %v717 = vld [vmem:[%s716] sm:$0x1]
    %718 = vst [vmem:[#allocation3 + $0x1c] sm:$0x1] %v717
    %s719 = sld [smem:[#allocation5 + $0x1d]]
    %s720 = scalar_lea.vmem [#allocation2], %s719
    %v721 = vld [vmem:[%s720] sm:$0x1]
    %722 = vst [vmem:[#allocation3 + $0x1d] sm:$0x1] %v721
    %s723 = sld [smem:[#allocation5 + $0x1e]]
    %s724 = scalar_lea.vmem [#allocation2], %s723
    %v725 = vld [vmem:[%s724] sm:$0x1]
    %726 = vst [vmem:[#allocation3 + $0x1e] sm:$0x1] %v725
    %s727 = sld [smem:[#allocation5 + $0x1f]]
    %s728 = scalar_lea.vmem [#allocation2], %s727
    %v729 = vld [vmem:[%s728] sm:$0x1]
    %730 = vst [vmem:[#allocation3 + $0x1f] sm:$0x1] %v729
    %v731 = vld [vmem:[#allocation3] sm:$0xff]
    %v732 = vld [vmem:[#allocation3 + $0x8] sm:$0xff]
    %v733 = vld [vmem:[#allocation3 + $0x10] sm:$0xff]
    %v734 = vld [vmem:[#allocation3 + $0x18] sm:$0xff]
    %v735 = vld [vmem:[#allocation3 + $0x20] sm:$0xff]
    %v736 = vld [vmem:[#allocation3 + $0x28] sm:$0xff]
    %v737 = vld [vmem:[#allocation3 + $0x30] sm:$0xff]
    %v738 = vld [vmem:[#allocation3 + $0x38] sm:$0xff]
    %v739 = vld [vmem:[#allocation3 + $0x40] sm:$0xff]
    %v740 = vld [vmem:[#allocation3 + $0x48] sm:$0xff]
    %v741 = vld [vmem:[#allocation3 + $0x50] sm:$0xff]
    %v742 = vld [vmem:[#allocation3 + $0x58] sm:$0xff]
    %v743 = vld [vmem:[#allocation3 + $0x60] sm:$0xff]
    %v744 = vld [vmem:[#allocation3 + $0x68] sm:$0xff]
    %v745 = vld [vmem:[#allocation3 + $0x70] sm:$0xff]
    %v746 = vld [vmem:[#allocation3 + $0x78] sm:$0xff]
    %v747 = vadd.f32 %v731, %v427
    %v748 = vadd.f32 %v732, %v433
    %v749 = vadd.f32 %v733, %v439
    %v750 = vadd.f32 %v734, %v445
    %v751 = vadd.f32 %v735, %v451
    %v752 = vadd.f32 %v736, %v457
    %v753 = vadd.f32 %v737, %v463
    %v754 = vadd.f32 %v738, %v469
    %v755 = vadd.f32 %v739, %v475
    %v756 = vadd.f32 %v740, %v481
    %v757 = vadd.f32 %v741, %v487
    %v758 = vadd.f32 %v742, %v493
    %v759 = vadd.f32 %v743, %v499
    %v760 = vadd.f32 %v744, %v505
    %v761 = vadd.f32 %v745, %v511
    %v762 = vadd.f32 %v746, %v517
    %v763 = vmax.f32 %v747, 0.0
    %v764 = vmax.f32 %v748, 0.0
    %v765 = vmax.f32 %v749, 0.0
    %v766 = vmax.f32 %v750, 0.0
    %v767 = vmax.f32 %v751, 0.0
    %v768 = vmax.f32 %v752, 0.0
    %v769 = vmax.f32 %v753, 0.0
    %v770 = vmax.f32 %v754, 0.0
    %v771 = vmax.f32 %v755, 0.0
    %v772 = vmax.f32 %v756, 0.0
    %v773 = vmax.f32 %v757, 0.0
    %v774 = vmax.f32 %v758, 0.0
    %v775 = vmax.f32 %v759, 0.0
    %v776 = vmax.f32 %v760, 0.0
    %v777 = vmax.f32 %v761, 0.0
    %v778 = vmax.f32 %v762, 0.0
    %v779 = vld [vmem:[#allocation2] sm:$0xff]
    %v780 = vld [vmem:[#allocation2 + $0x8] sm:$0xff]
    %v781 = vld [vmem:[#allocation2 + $0x10] sm:$0xff]
    %v782 = vld [vmem:[#allocation2 + $0x18] sm:$0xff]
    %v783 = vld [vmem:[#allocation2 + $0x20] sm:$0xff]
    %v784 = vld [vmem:[#allocation2 + $0x28] sm:$0xff]
    %v785 = vld [vmem:[#allocation2 + $0x30] sm:$0xff]
    %v786 = vld [vmem:[#allocation2 + $0x38] sm:$0xff]
    %v787 = vld [vmem:[#allocation2 + $0x40] sm:$0xff]
    %v788 = vld [vmem:[#allocation2 + $0x48] sm:$0xff]
    %v789 = vld [vmem:[#allocation2 + $0x50] sm:$0xff]
    %v790 = vld [vmem:[#allocation2 + $0x58] sm:$0xff]
    %v791 = vld [vmem:[#allocation2 + $0x60] sm:$0xff]
    %v792 = vld [vmem:[#allocation2 + $0x68] sm:$0xff]
    %v793 = vld [vmem:[#allocation2 + $0x70] sm:$0xff]
    %v794 = vld [vmem:[#allocation2 + $0x78] sm:$0xff]
    %795 = vmatprep.subr.mxu0 0.0
    %796 = vmatpush1.msra.mxu0 %v763
    %797 = vmatprep.subr.mxu0 0.0
    %798 = vmatpush1.msra.mxu0 %v764
    %799 = vmatprep.subr.mxu0 0.0
    %800 = vmatpush1.msra.mxu0 %v765
    %801 = vmatprep.subr.mxu0 0.0
    %802 = vmatpush1.msra.mxu0 %v766
    %803 = vmatprep.subr.mxu0 0.0
    %804 = vmatpush1.msra.mxu0 %v767
    %805 = vmatprep.subr.mxu0 0.0
    %806 = vmatpush1.msra.mxu0 %v768
    %807 = vmatprep.subr.mxu0 0.0
    %808 = vmatpush1.msra.mxu0 %v769
    %809 = vmatprep.subr.mxu0 0.0
    %810 = vmatpush1.msra.mxu0 %v770
    %811 = vmatprep.subr.mxu0 0.0
    %812 = vmatpush1.msra.mxu0 %v771
    %813 = vmatprep.subr.mxu0 0.0
    %814 = vmatpush1.msra.mxu0 %v772
    %815 = vmatprep.subr.mxu0 0.0
    %816 = vmatpush1.msra.mxu0 %v773
    %817 = vmatprep.subr.mxu0 0.0
    %818 = vmatpush1.msra.mxu0 %v774
    %819 = vmatprep.subr.mxu0 0.0
    %820 = vmatpush1.msra.mxu0 %v775
    %821 = vmatprep.subr.mxu0 0.0
    %822 = vmatpush1.msra.mxu0 %v776
    %823 = vmatprep.subr.mxu0 0.0
    %824 = vmatpush1.msra.mxu0 %v777
    %825 = vmatprep.subr.mxu0 0.0
    %826 = vmatpush1.msra.mxu0 %v778
    %827 = vmatprep.subr.mxu0 0.0
    %828 = vmatpush1.msra.mxu0 0.0
    %829 = vmatprep.subr.mxu0 0.0
    %830 = vmatpush1.msra.mxu0 0.0
    %831 = vmatprep.subr.mxu0 0.0
    %832 = vmatpush1.msra.mxu0 0.0
    %833 = vmatprep.subr.mxu0 0.0
    %834 = vmatpush1.msra.mxu0 0.0
    %835 = vmatprep.subr.mxu0 0.0
    %836 = vmatpush1.msra.mxu0 0.0
    %837 = vmatprep.subr.mxu0 0.0
    %838 = vmatpush1.msra.mxu0 0.0
    %839 = vmatprep.subr.mxu0 0.0
    %840 = vmatpush1.msra.mxu0 0.0
    %841 = vmatprep.subr.mxu0 0.0
    %842 = vmatpush1.msra.mxu0 0.0
    %843 = vmatprep.subr.mxu0 0.0
    %844 = vmatpush1.msra.mxu0 0.0
    %845 = vmatprep.subr.mxu0 0.0
    %846 = vmatpush1.msra.mxu0 0.0
    %847 = vmatprep.subr.mxu0 0.0
    %848 = vmatpush1.msra.mxu0 0.0
    %849 = vmatprep.subr.mxu0 0.0
    %850 = vmatpush1.msra.mxu0 0.0
    %851 = vmatprep.subr.mxu0 0.0
    %852 = vmatpush1.msra.mxu0 0.0
    %853 = vmatprep.subr.mxu0 0.0
    %854 = vmatpush1.msra.mxu0 0.0
    %855 = vmatprep.subr.mxu0 0.0
    %856 = vmatpush1.msra.mxu0 0.0
    %857 = vmatprep.subr.mxu0 0.0
    %858 = vmatpush1.msra.mxu0 0.0
    %859 = vmatprep.mubr.f32.mxu0 0.0
    %860 = vmatmul.mubr.f32.gmra.mrb[0].mxu0 %v276
    %v861 = vpop.f32.mrb[0].mxu0
    %v862 = vadd.f32 %v779, %v861
    %v863 = vpop.f32.mrb[0].mxu0
    %864 = vmatprep.mubr.f32.mxu0 0.0
    %865 = vmatmul.mubr.f32.gmra.mrb[0].mxu0 %v277
    %v866 = vpop.f32.mrb[0].mxu0
    %v867 = vadd.f32 %v780, %v866
    %v868 = vpop.f32.mrb[0].mxu0
    %869 = vmatprep.mubr.f32.mxu0 0.0
    %870 = vmatmul.mubr.f32.gmra.mrb[0].mxu0 %v278
    %v871 = vpop.f32.mrb[0].mxu0
    %v872 = vadd.f32 %v781, %v871
    %v873 = vpop.f32.mrb[0].mxu0
    %874 = vmatprep.mubr.f32.mxu0 0.0
    %875 = vmatmul.mubr.f32.gmra.mrb[0].mxu0 %v279
    %v876 = vpop.f32.mrb[0].mxu0
    %v877 = vadd.f32 %v782, %v876
    %v878 = vpop.f32.mrb[0].mxu0
    %879 = vmatprep.mubr.f32.mxu0 0.0
    %880 = vmatmul.mubr.f32.gmra.mrb[0].mxu0 %v280
    %v881 = vpop.f32.mrb[0].mxu0
    %v882 = vadd.f32 %v783, %v881
    %v883 = vpop.f32.mrb[0].mxu0
    %884 = vmatprep.mubr.f32.mxu0 0.0
    %885 = vmatmul.mubr.f32.gmra.mrb[0].mxu0 %v281
    %v886 = vpop.f32.mrb[0].mxu0
    %v887 = vadd.f32 %v784, %v886
    %v888 = vpop.f32.mrb[0].mxu0
    %889 = vmatprep.mubr.f32.mxu0 0.0
    %890 = vmatmul.mubr.f32.gmra.mrb[0].mxu0 %v282
    %v891 = vpop.f32.mrb[0].mxu0
    %v892 = vadd.f32 %v785, %v891
    %v893 = vpop.f32.mrb[0].mxu0
    %894 = vmatprep.mubr.f32.mxu0 0.0
    %895 = vmatmul.mubr.f32.gmra.mrb[0].mxu0 %v283
    %v896 = vpop.f32.mrb[0].mxu0
    %v897 = vadd.f32 %v786, %v896
    %v898 = vpop.f32.mrb[0].mxu0
    %899 = vmatprep.mubr.f32.mxu0 0.0
    %900 = vmatmul.mubr.f32.gmra.mrb[0].mxu0 %v284
    %v901 = vpop.f32.mrb[0].mxu0
    %v902 = vadd.f32 %v787, %v901
    %v903 = vpop.f32.mrb[0].mxu0
    %904 = vmatprep.mubr.f32.mxu0 0.0
    %905 = vmatmul.mubr.f32.gmra.mrb[0].mxu0 %v285
    %v906 = vpop.f32.mrb[0].mxu0
    %v907 = vadd.f32 %v788, %v906
    %v908 = vpop.f32.mrb[0].mxu0
    %909 = vmatprep.mubr.f32.mxu0 0.0
    %910 = vmatmul.mubr.f32.gmra.mrb[0].mxu0 %v286
    %v911 = vpop.f32.mrb[0].mxu0
    %v912 = vadd.f32 %v789, %v911
    %v913 = vpop.f32.mrb[0].mxu0
    %914 = vmatprep.mubr.f32.mxu0 0.0
    %915 = vmatmul.mubr.f32.gmra.mrb[0].mxu0 %v287
    %v916 = vpop.f32.mrb[0].mxu0
    %v917 = vadd.f32 %v790, %v916
    %v918 = vpop.f32.mrb[0].mxu0
    %919 = vmatprep.mubr.f32.mxu0 0.0
    %920 = vmatmul.mubr.f32.gmra.mrb[0].mxu0 %v288
    %v921 = vpop.f32.mrb[0].mxu0
    %v922 = vadd.f32 %v791, %v921
    %v923 = vpop.f32.mrb[0].mxu0
    %924 = vmatprep.mubr.f32.mxu0 0.0
    %925 = vmatmul.mubr.f32.gmra.mrb[0].mxu0 %v289
    %v926 = vpop.f32.mrb[0].mxu0
    %v927 = vadd.f32 %v792, %v926
    %v928 = vpop.f32.mrb[0].mxu0
    %929 = vmatprep.mubr.f32.mxu0 0.0
    %930 = vmatmul.mubr.f32.gmra.mrb[0].mxu0 %v290
    %v931 = vpop.f32.mrb[0].mxu0
    %v932 = vadd.f32 %v793, %v931
    %v933 = vpop.f32.mrb[0].mxu0
    %934 = vmatprep.mubr.f32.mxu0 0.0
    %935 = vmatmul.mubr.f32.gmra.mrb[0].mxu0 %v291
    %v936 = vpop.f32.mrb[0].mxu0
    %v937 = vadd.f32 %v794, %v936
    %v938 = vpop.f32.mrb[0].mxu0
    %939 = vdwg.mxu0
    %v941 = vlaneseq
    %v942 = vshrl.u32 %v941, 7
    %v943 = vsub.s32 0, %v942
    %v944 = vrot.slane %v585, %v943
    %946 = vmatprep.subr.mxu0 0.0
    %947 = vmatpush1.msra.mxu0 %v569
    %948 = vmatprep.subr.mxu0 0.0
    %949 = vmatpush1.msra.mxu0 %v570
    %950 = vmatprep.subr.mxu0 0.0
    %951 = vmatpush1.msra.mxu0 %v571
    %952 = vmatprep.subr.mxu0 0.0
    %953 = vmatpush1.msra.mxu0 %v572
    %954 = vmatprep.subr.mxu0 0.0
    %955 = vmatpush1.msra.mxu0 %v573
    %956 = vmatprep.subr.mxu0 0.0
    %957 = vmatpush1.msra.mxu0 %v574
    %958 = vmatprep.subr.mxu0 0.0
    %959 = vmatpush1.msra.mxu0 %v575
    %960 = vmatprep.subr.mxu0 0.0
    %961 = vmatpush1.msra.mxu0 %v576
    %962 = vmatprep.subr.mxu0 0.0
    %963 = vmatpush1.msra.mxu0 %v577
    %964 = vmatprep.subr.mxu0 0.0
    %965 = vmatpush1.msra.mxu0 %v578
    %966 = vmatprep.subr.mxu0 0.0
    %967 = vmatpush1.msra.mxu0 %v579
    %968 = vmatprep.subr.mxu0 0.0
    %969 = vmatpush1.msra.mxu0 %v580
    %970 = vmatprep.subr.mxu0 0.0
    %971 = vmatpush1.msra.mxu0 %v581
    %972 = vmatprep.subr.mxu0 0.0
    %973 = vmatpush1.msra.mxu0 %v582
    %974 = vmatprep.subr.mxu0 0.0
    %975 = vmatpush1.msra.mxu0 %v583
    %976 = vmatprep.subr.mxu0 0.0
    %977 = vmatpush1.msra.mxu0 %v584
    %978 = vmatprep.subr.mxu0 0.0
    %979 = vmatpush1.msra.mxu0 0.0
    %980 = vmatprep.subr.mxu0 0.0
    %981 = vmatpush1.msra.mxu0 0.0
    %982 = vmatprep.subr.mxu0 0.0
    %983 = vmatpush1.msra.mxu0 0.0
    %984 = vmatprep.subr.mxu0 0.0
    %985 = vmatpush1.msra.mxu0 0.0
    %986 = vmatprep.subr.mxu0 0.0
    %987 = vmatpush1.msra.mxu0 0.0
    %988 = vmatprep.subr.mxu0 0.0
    %989 = vmatpush1.msra.mxu0 0.0
    %990 = vmatprep.subr.mxu0 0.0
    %991 = vmatpush1.msra.mxu0 0.0
    %992 = vmatprep.subr.mxu0 0.0
    %993 = vmatpush1.msra.mxu0 0.0
    %994 = vmatprep.subr.mxu0 0.0
    %995 = vmatpush1.msra.mxu0 0.0
    %996 = vmatprep.subr.mxu0 0.0
    %997 = vmatpush1.msra.mxu0 0.0
    %998 = vmatprep.subr.mxu0 0.0
    %999 = vmatpush1.msra.mxu0 0.0
    %1000 = vmatprep.subr.mxu0 0.0
    %1001 = vmatpush1.msra.mxu0 0.0
    %1002 = vmatprep.subr.mxu0 0.0
    %1003 = vmatpush1.msra.mxu0 0.0
    %1004 = vmatprep.subr.mxu0 0.0
    %1005 = vmatpush1.msra.mxu0 0.0
    %1006 = vmatprep.subr.mxu0 0.0
    %1007 = vmatpush1.msra.mxu0 0.0
    %1008 = vmatprep.subr.mxu0 0.0
    %1009 = vmatpush1.msra.mxu0 0.0
    %1010 = vmatprep.mubr.f32.mxu0 0.0
    %1011 = vmatmul.mubr.f32.gmra.mrb[0].mxu0 %v862
    %v1012 = vpop.f32.mrb[0].mxu0
    %v1013 = vadd.f32 %v944, %v1012
    %v1014 = vpop.f32.mrb[0].mxu0
    %1015 = vmatprep.mubr.f32.mxu0 0.0
    %1016 = vmatmul.mubr.f32.gmra.mrb[0].mxu0 %v867
    %v1017 = vpop.f32.mrb[0].mxu0
    %v1018 = vadd.f32 %v944, %v1017
    %v1019 = vpop.f32.mrb[0].mxu0
    %1020 = vmatprep.mubr.f32.mxu0 0.0
    %1021 = vmatmul.mubr.f32.gmra.mrb[0].mxu0 %v872
    %v1022 = vpop.f32.mrb[0].mxu0
    %v1023 = vadd.f32 %v944, %v1022
    %v1024 = vpop.f32.mrb[0].mxu0
    %1025 = vmatprep.mubr.f32.mxu0 0.0
    %1026 = vmatmul.mubr.f32.gmra.mrb[0].mxu0 %v877
    %v1027 = vpop.f32.mrb[0].mxu0
    %v1028 = vadd.f32 %v944, %v1027
    %v1029 = vpop.f32.mrb[0].mxu0
    %1030 = vmatprep.mubr.f32.mxu0 0.0
    %1031 = vmatmul.mubr.f32.gmra.mrb[0].mxu0 %v882
    %v1032 = vpop.f32.mrb[0].mxu0
    %v1033 = vadd.f32 %v944, %v1032
    %v1034 = vpop.f32.mrb[0].mxu0
    %1035 = vmatprep.mubr.f32.mxu0 0.0
    %1036 = vmatmul.mubr.f32.gmra.mrb[0].mxu0 %v887
    %v1037 = vpop.f32.mrb[0].mxu0
    %v1038 = vadd.f32 %v944, %v1037
    %v1039 = vpop.f32.mrb[0].mxu0
    %1040 = vmatprep.mubr.f32.mxu0 0.0
    %1041 = vmatmul.mubr.f32.gmra.mrb[0].mxu0 %v892
    %v1042 = vpop.f32.mrb[0].mxu0
    %v1043 = vadd.f32 %v944, %v1042
    %v1044 = vpop.f32.mrb[0].mxu0
    %1045 = vmatprep.mubr.f32.mxu0 0.0
    %1046 = vmatmul.mubr.f32.gmra.mrb[0].mxu0 %v897
    %v1047 = vpop.f32.mrb[0].mxu0
    %v1048 = vadd.f32 %v944, %v1047
    %v1049 = vpop.f32.mrb[0].mxu0
    %1050 = vmatprep.mubr.f32.mxu0 0.0
    %1051 = vmatmul.mubr.f32.gmra.mrb[0].mxu0 %v902
    %v1052 = vpop.f32.mrb[0].mxu0
    %v1053 = vadd.f32 %v944, %v1052
    %v1054 = vpop.f32.mrb[0].mxu0
    %1055 = vmatprep.mubr.f32.mxu0 0.0
    %1056 = vmatmul.mubr.f32.gmra.mrb[0].mxu0 %v907
    %v1057 = vpop.f32.mrb[0].mxu0
    %v1058 = vadd.f32 %v944, %v1057
    %v1059 = vpop.f32.mrb[0].mxu0
    %1060 = vmatprep.mubr.f32.mxu0 0.0
    %1061 = vmatmul.mubr.f32.gmra.mrb[0].mxu0 %v912
    %v1062 = vpop.f32.mrb[0].mxu0
    %v1063 = vadd.f32 %v944, %v1062
    %v1064 = vpop.f32.mrb[0].mxu0
    %1065 = vmatprep.mubr.f32.mxu0 0.0
    %1066 = vmatmul.mubr.f32.gmra.mrb[0].mxu0 %v917
    %v1067 = vpop.f32.mrb[0].mxu0
    %v1068 = vadd.f32 %v944, %v1067
    %v1069 = vpop.f32.mrb[0].mxu0
    %1070 = vmatprep.mubr.f32.mxu0 0.0
    %1071 = vmatmul.mubr.f32.gmra.mrb[0].mxu0 %v922
    %v1072 = vpop.f32.mrb[0].mxu0
    %v1073 = vadd.f32 %v944, %v1072
    %v1074 = vpop.f32.mrb[0].mxu0
    %1075 = vmatprep.mubr.f32.mxu0 0.0
    %1076 = vmatmul.mubr.f32.gmra.mrb[0].mxu0 %v927
    %v1077 = vpop.f32.mrb[0].mxu0
    %v1078 = vadd.f32 %v944, %v1077
    %v1079 = vpop.f32.mrb[0].mxu0
    %1080 = vmatprep.mubr.f32.mxu0 0.0
    %1081 = vmatmul.mubr.f32.gmra.mrb[0].mxu0 %v932
    %v1082 = vpop.f32.mrb[0].mxu0
    %v1083 = vadd.f32 %v944, %v1082
    %v1084 = vpop.f32.mrb[0].mxu0
    %1085 = vmatprep.mubr.f32.mxu0 0.0
    %1086 = vmatmul.mubr.f32.gmra.mrb[0].mxu0 %v937
    %v1087 = vpop.f32.mrb[0].mxu0
    %v1088 = vadd.f32 %v944, %v1087
    %v1089 = vpop.f32.mrb[0].mxu0
    %1090 = vdwg.mxu0
    %v1091 = vmax.f32 %v1013, 0.0
    %v1092 = vmax.f32 %v1018, 0.0
    %v1093 = vmax.f32 %v1023, 0.0
    %v1094 = vmax.f32 %v1028, 0.0
    %v1095 = vmax.f32 %v1033, 0.0
    %v1096 = vmax.f32 %v1038, 0.0
    %v1097 = vmax.f32 %v1043, 0.0
    %v1098 = vmax.f32 %v1048, 0.0
    %v1099 = vmax.f32 %v1053, 0.0
    %v1100 = vmax.f32 %v1058, 0.0
    %v1101 = vmax.f32 %v1063, 0.0
    %v1102 = vmax.f32 %v1068, 0.0
    %v1103 = vmax.f32 %v1073, 0.0
    %v1104 = vmax.f32 %v1078, 0.0
    %v1105 = vmax.f32 %v1083, 0.0
    %v1106 = vmax.f32 %v1088, 0.0
    %v1108 = vlaneseq
    %v1109 = vshrl.u32 %v1108, 7
    %v1110 = vsub.s32 0, %v1109
    %v1111 = vrot.slane %v602, %v1110
    %1113 = vmatprep.subr.mxu0 0.0
    %1114 = vmatpush1.msra.mxu0 %v586
    %1115 = vmatprep.subr.mxu0 0.0
    %1116 = vmatpush1.msra.mxu0 %v587
    %1117 = vmatprep.subr.mxu0 0.0
    %1118 = vmatpush1.msra.mxu0 %v588
    %1119 = vmatprep.subr.mxu0 0.0
    %1120 = vmatpush1.msra.mxu0 %v589
    %1121 = vmatprep.subr.mxu0 0.0
    %1122 = vmatpush1.msra.mxu0 %v590
    %1123 = vmatprep.subr.mxu0 0.0
    %1124 = vmatpush1.msra.mxu0 %v591
    %1125 = vmatprep.subr.mxu0 0.0
    %1126 = vmatpush1.msra.mxu0 %v592
    %1127 = vmatprep.subr.mxu0 0.0
    %1128 = vmatpush1.msra.mxu0 %v593
    %1129 = vmatprep.subr.mxu0 0.0
    %1130 = vmatpush1.msra.mxu0 %v594
    %1131 = vmatprep.subr.mxu0 0.0
    %1132 = vmatpush1.msra.mxu0 %v595
    %1133 = vmatprep.subr.mxu0 0.0
    %1134 = vmatpush1.msra.mxu0 %v596
    %1135 = vmatprep.subr.mxu0 0.0
    %1136 = vmatpush1.msra.mxu0 %v597
    %1137 = vmatprep.subr.mxu0 0.0
    %1138 = vmatpush1.msra.mxu0 %v598
    %1139 = vmatprep.subr.mxu0 0.0
    %1140 = vmatpush1.msra.mxu0 %v599
    %1141 = vmatprep.subr.mxu0 0.0
    %1142 = vmatpush1.msra.mxu0 %v600
    %1143 = vmatprep.subr.mxu0 0.0
    %1144 = vmatpush1.msra.mxu0 %v601
    %1145 = vmatprep.subr.mxu0 0.0
    %1146 = vmatpush1.msra.mxu0 0.0
    %1147 = vmatprep.subr.mxu0 0.0
    %1148 = vmatpush1.msra.mxu0 0.0
    %1149 = vmatprep.subr.mxu0 0.0
    %1150 = vmatpush1.msra.mxu0 0.0
    %1151 = vmatprep.subr.mxu0 0.0
    %1152 = vmatpush1.msra.mxu0 0.0
    %1153 = vmatprep.subr.mxu0 0.0
    %1154 = vmatpush1.msra.mxu0 0.0
    %1155 = vmatprep.subr.mxu0 0.0
    %1156 = vmatpush1.msra.mxu0 0.0
    %1157 = vmatprep.subr.mxu0 0.0
    %1158 = vmatpush1.msra.mxu0 0.0
    %1159 = vmatprep.subr.mxu0 0.0
    %1160 = vmatpush1.msra.mxu0 0.0
    %1161 = vmatprep.subr.mxu0 0.0
    %1162 = vmatpush1.msra.mxu0 0.0
    %1163 = vmatprep.subr.mxu0 0.0
    %1164 = vmatpush1.msra.mxu0 0.0
    %1165 = vmatprep.subr.mxu0 0.0
    %1166 = vmatpush1.msra.mxu0 0.0
    %1167 = vmatprep.subr.mxu0 0.0
    %1168 = vmatpush1.msra.mxu0 0.0
    %1169 = vmatprep.subr.mxu0 0.0
    %1170 = vmatpush1.msra.mxu0 0.0
    %1171 = vmatprep.subr.mxu0 0.0
    %1172 = vmatpush1.msra.mxu0 0.0
    %1173 = vmatprep.subr.mxu0 0.0
    %1174 = vmatpush1.msra.mxu0 0.0
    %1175 = vmatprep.subr.mxu0 0.0
    %1176 = vmatpush1.msra.mxu0 0.0
    %1177 = vmatprep.mubr.f32.mxu0 0.0
    %1178 = vmatmul.mubr.f32.gmra.mrb[0].mxu0 %v1091
    %v1179 = vpop.f32.mrb[0].mxu0
    %v1180 = vadd.f32 %v1111, %v1179
    %v1181 = vpop.f32.mrb[0].mxu0
    %1182 = vmatprep.mubr.f32.mxu0 0.0
    %1183 = vmatmul.mubr.f32.gmra.mrb[0].mxu0 %v1092
    %v1184 = vpop.f32.mrb[0].mxu0
    %v1185 = vadd.f32 %v1111, %v1184
    %v1186 = vpop.f32.mrb[0].mxu0
    %1187 = vmatprep.mubr.f32.mxu0 0.0
    %1188 = vmatmul.mubr.f32.gmra.mrb[0].mxu0 %v1093
    %v1189 = vpop.f32.mrb[0].mxu0
    %v1190 = vadd.f32 %v1111, %v1189
    %v1191 = vpop.f32.mrb[0].mxu0
    %1192 = vmatprep.mubr.f32.mxu0 0.0
    %1193 = vmatmul.mubr.f32.gmra.mrb[0].mxu0 %v1094
    %v1194 = vpop.f32.mrb[0].mxu0
    %v1195 = vadd.f32 %v1111, %v1194
    %v1196 = vpop.f32.mrb[0].mxu0
    %1197 = vmatprep.mubr.f32.mxu0 0.0
    %1198 = vmatmul.mubr.f32.gmra.mrb[0].mxu0 %v1095
    %v1199 = vpop.f32.mrb[0].mxu0
    %v1200 = vadd.f32 %v1111, %v1199
    %v1201 = vpop.f32.mrb[0].mxu0
    %1202 = vmatprep.mubr.f32.mxu0 0.0
    %1203 = vmatmul.mubr.f32.gmra.mrb[0].mxu0 %v1096
    %v1204 = vpop.f32.mrb[0].mxu0
    %v1205 = vadd.f32 %v1111, %v1204
    %v1206 = vpop.f32.mrb[0].mxu0
    %1207 = vmatprep.mubr.f32.mxu0 0.0
    %1208 = vmatmul.mubr.f32.gmra.mrb[0].mxu0 %v1097
    %v1209 = vpop.f32.mrb[0].mxu0
    %v1210 = vadd.f32 %v1111, %v1209
    %v1211 = vpop.f32.mrb[0].mxu0
    %1212 = vmatprep.mubr.f32.mxu0 0.0
    %1213 = vmatmul.mubr.f32.gmra.mrb[0].mxu0 %v1098
    %v1214 = vpop.f32.mrb[0].mxu0
    %v1215 = vadd.f32 %v1111, %v1214
    %v1216 = vpop.f32.mrb[0].mxu0
    %1217 = vmatprep.mubr.f32.mxu0 0.0
    %1218 = vmatmul.mubr.f32.gmra.mrb[0].mxu0 %v1099
    %v1219 = vpop.f32.mrb[0].mxu0
    %v1220 = vadd.f32 %v1111, %v1219
    %v1221 = vpop.f32.mrb[0].mxu0
    %1222 = vmatprep.mubr.f32.mxu0 0.0
    %1223 = vmatmul.mubr.f32.gmra.mrb[0].mxu0 %v1100
    %v1224 = vpop.f32.mrb[0].mxu0
    %v1225 = vadd.f32 %v1111, %v1224
    %v1226 = vpop.f32.mrb[0].mxu0
    %1227 = vmatprep.mubr.f32.mxu0 0.0
    %1228 = vmatmul.mubr.f32.gmra.mrb[0].mxu0 %v1101
    %v1229 = vpop.f32.mrb[0].mxu0
    %v1230 = vadd.f32 %v1111, %v1229
    %v1231 = vpop.f32.mrb[0].mxu0
    %1232 = vmatprep.mubr.f32.mxu0 0.0
    %1233 = vmatmul.mubr.f32.gmra.mrb[0].mxu0 %v1102
    %v1234 = vpop.f32.mrb[0].mxu0
    %v1235 = vadd.f32 %v1111, %v1234
    %v1236 = vpop.f32.mrb[0].mxu0
    %1237 = vmatprep.mubr.f32.mxu0 0.0
    %1238 = vmatmul.mubr.f32.gmra.mrb[0].mxu0 %v1103
    %v1239 = vpop.f32.mrb[0].mxu0
    %v1240 = vadd.f32 %v1111, %v1239
    %v1241 = vpop.f32.mrb[0].mxu0
    %1242 = vmatprep.mubr.f32.mxu0 0.0
    %1243 = vmatmul.mubr.f32.gmra.mrb[0].mxu0 %v1104
    %v1244 = vpop.f32.mrb[0].mxu0
    %v1245 = vadd.f32 %v1111, %v1244
    %v1246 = vpop.f32.mrb[0].mxu0
    %1247 = vmatprep.mubr.f32.mxu0 0.0
    %1248 = vmatmul.mubr.f32.gmra.mrb[0].mxu0 %v1105
    %v1249 = vpop.f32.mrb[0].mxu0
    %v1250 = vadd.f32 %v1111, %v1249
    %v1251 = vpop.f32.mrb[0].mxu0
    %1252 = vmatprep.mubr.f32.mxu0 0.0
    %1253 = vmatmul.mubr.f32.gmra.mrb[0].mxu0 %v1106
    %v1254 = vpop.f32.mrb[0].mxu0
    %v1255 = vadd.f32 %v1111, %v1254
    %v1256 = vpop.f32.mrb[0].mxu0
    %1257 = vdwg.mxu0
    %v1258 = vmax.f32 %v1180, 0.0
    %v1259 = vmax.f32 %v1185, 0.0
    %v1260 = vmax.f32 %v1190, 0.0
    %v1261 = vmax.f32 %v1195, 0.0
    %v1262 = vmax.f32 %v1200, 0.0
    %v1263 = vmax.f32 %v1205, 0.0
    %v1264 = vmax.f32 %v1210, 0.0
    %v1265 = vmax.f32 %v1215, 0.0
    %v1266 = vmax.f32 %v1220, 0.0
    %v1267 = vmax.f32 %v1225, 0.0
    %v1268 = vmax.f32 %v1230, 0.0
    %v1269 = vmax.f32 %v1235, 0.0
    %v1270 = vmax.f32 %v1240, 0.0
    %v1271 = vmax.f32 %v1245, 0.0
    %v1272 = vmax.f32 %v1250, 0.0
    %v1273 = vmax.f32 %v1255, 0.0
    %1274 = vst [vmem:[#allocation2] sm:$0xff] %v1258
    %1275 = vst [vmem:[#allocation2 + $0x8] sm:$0xff] %v1259
    %1276 = vst [vmem:[#allocation2 + $0x10] sm:$0xff] %v1260
    %1277 = vst [vmem:[#allocation2 + $0x18] sm:$0xff] %v1261
    %1278 = vst [vmem:[#allocation2 + $0x20] sm:$0xff] %v1262
    %1279 = vst [vmem:[#allocation2 + $0x28] sm:$0xff] %v1263
    %1280 = vst [vmem:[#allocation2 + $0x30] sm:$0xff] %v1264
    %1281 = vst [vmem:[#allocation2 + $0x38] sm:$0xff] %v1265
    %1282 = vst [vmem:[#allocation2 + $0x40] sm:$0xff] %v1266
    %1283 = vst [vmem:[#allocation2 + $0x48] sm:$0xff] %v1267
    %1284 = vst [vmem:[#allocation2 + $0x50] sm:$0xff] %v1268
    %1285 = vst [vmem:[#allocation2 + $0x58] sm:$0xff] %v1269
    %1286 = vst [vmem:[#allocation2 + $0x60] sm:$0xff] %v1270
    %1287 = vst [vmem:[#allocation2 + $0x68] sm:$0xff] %v1271
    %1288 = vst [vmem:[#allocation2 + $0x70] sm:$0xff] %v1272
    %1289 = vst [vmem:[#allocation2 + $0x78] sm:$0xff] %v1273
    %v1290 = vld [vmem:[#allocation16] sm:$0xff]
    %v1291 = vld [vmem:[#allocation16 + $0x8] sm:$0xff]
    %v1292 = vld [vmem:[#allocation16 + $0x10] sm:$0xff]
    %v1293 = vld [vmem:[#allocation16 + $0x18] sm:$0xff]
    %v1294 = vld [vmem:[#allocation16 + $0x20] sm:$0xff]
    %v1295 = vld [vmem:[#allocation16 + $0x28] sm:$0xff]
    %v1296 = vld [vmem:[#allocation16 + $0x30] sm:$0xff]
    %v1297 = vld [vmem:[#allocation16 + $0x38] sm:$0xff]
    %v1298 = vld [vmem:[#allocation16 + $0x40] sm:$0xff]
    %v1299 = vld [vmem:[#allocation16 + $0x48] sm:$0xff]
    %v1300 = vld [vmem:[#allocation16 + $0x50] sm:$0xff]
    %v1301 = vld [vmem:[#allocation16 + $0x58] sm:$0xff]
    %v1302 = vld [vmem:[#allocation16 + $0x60] sm:$0xff]
    %v1303 = vld [vmem:[#allocation16 + $0x68] sm:$0xff]
    %v1304 = vld [vmem:[#allocation16 + $0x70] sm:$0xff]
    %v1305 = vld [vmem:[#allocation16 + $0x78] sm:$0xff]
    %v1306 = vld [vmem:[#allocation16 + $0x80] sm:$0xff]
    %v1307 = vld [vmem:[#allocation16 + $0x88] sm:$0xff]
    %v1308 = vld [vmem:[#allocation16 + $0x90] sm:$0xff]
    %v1309 = vld [vmem:[#allocation16 + $0x98] sm:$0xff]
    %v1310 = vld [vmem:[#allocation16 + $0xa0] sm:$0xff]
    %v1311 = vld [vmem:[#allocation16 + $0xa8] sm:$0xff]
    %v1312 = vld [vmem:[#allocation16 + $0xb0] sm:$0xff]
    %v1313 = vld [vmem:[#allocation16 + $0xb8] sm:$0xff]
    %v1314 = vld [vmem:[#allocation16 + $0xc0] sm:$0xff]
    %v1315 = vld [vmem:[#allocation16 + $0xc8] sm:$0xff]
    %v1316 = vld [vmem:[#allocation16 + $0xd0] sm:$0xff]
    %v1317 = vld [vmem:[#allocation16 + $0xd8] sm:$0xff]
    %v1318 = vld [vmem:[#allocation16 + $0xe0] sm:$0xff]
    %v1319 = vld [vmem:[#allocation16 + $0xe8] sm:$0xff]
    %v1320 = vld [vmem:[#allocation16 + $0xf0] sm:$0xff]
    %v1321 = vld [vmem:[#allocation16 + $0xf8] sm:$0xff]
    %v1322 = vld [vmem:[%s13] sm:$0x3]
    %v1323 = vld [vmem:[#allocation18] sm:$0xff]
    %v1324 = vld [vmem:[#allocation18 + $0x8] sm:$0xff]
    %v1325 = vld [vmem:[#allocation18 + $0x10] sm:$0xff]
    %v1326 = vld [vmem:[#allocation18 + $0x18] sm:$0xff]
    %v1327 = vld [vmem:[#allocation18 + $0x20] sm:$0xff]
    %v1328 = vld [vmem:[#allocation18 + $0x28] sm:$0xff]
    %v1329 = vld [vmem:[#allocation18 + $0x30] sm:$0xff]
    %v1330 = vld [vmem:[#allocation18 + $0x38] sm:$0xff]
    %v1331 = vld [vmem:[#allocation18 + $0x40] sm:$0xff]
    %v1332 = vld [vmem:[#allocation18 + $0x48] sm:$0xff]
    %v1333 = vld [vmem:[#allocation18 + $0x50] sm:$0xff]
    %v1334 = vld [vmem:[#allocation18 + $0x58] sm:$0xff]
    %v1335 = vld [vmem:[#allocation18 + $0x60] sm:$0xff]
    %v1336 = vld [vmem:[#allocation18 + $0x68] sm:$0xff]
    %v1337 = vld [vmem:[#allocation18 + $0x70] sm:$0xff]
    %v1338 = vld [vmem:[#allocation18 + $0x78] sm:$0xff]
    %v1339 = vld [vmem:[#allocation18 + $0x80] sm:$0xff]
    %v1340 = vld [vmem:[#allocation18 + $0x88] sm:$0xff]
    %v1341 = vld [vmem:[#allocation18 + $0x90] sm:$0xff]
    %v1342 = vld [vmem:[#allocation18 + $0x98] sm:$0xff]
    %v1343 = vld [vmem:[#allocation18 + $0xa0] sm:$0xff]
    %v1344 = vld [vmem:[#allocation18 + $0xa8] sm:$0xff]
    %v1345 = vld [vmem:[#allocation18 + $0xb0] sm:$0xff]
    %v1346 = vld [vmem:[#allocation18 + $0xb8] sm:$0xff]
    %v1347 = vld [vmem:[#allocation18 + $0xc0] sm:$0xff]
    %v1348 = vld [vmem:[#allocation18 + $0xc8] sm:$0xff]
    %v1349 = vld [vmem:[#allocation18 + $0xd0] sm:$0xff]
    %v1350 = vld [vmem:[#allocation18 + $0xd8] sm:$0xff]
    %v1351 = vld [vmem:[#allocation18 + $0xe0] sm:$0xff]
    %v1352 = vld [vmem:[#allocation18 + $0xe8] sm:$0xff]
    %v1353 = vld [vmem:[#allocation18 + $0xf0] sm:$0xff]
    %v1354 = vld [vmem:[#allocation18 + $0xf8] sm:$0xff]
    %v1355 = vld [vmem:[%s15] sm:$0x1]
    %s1356 = sld [smem:[#allocation5]]
    %s1357 = scalar_lea.vmem [#allocation2], %s1356
    %v1358 = vld [vmem:[%s1357] sm:$0x1]
    %1359 = vst [vmem:[#allocation3] sm:$0x1] %v1358
    %s1360 = sld [smem:[#allocation5 + $0x1]]
    %s1361 = scalar_lea.vmem [#allocation2], %s1360
    %v1362 = vld [vmem:[%s1361] sm:$0x1]
    %1363 = vst [vmem:[#allocation3 + $0x1] sm:$0x1] %v1362
    %s1364 = sld [smem:[#allocation5 + $0x2]]
    %s1365 = scalar_lea.vmem [#allocation2], %s1364
    %v1366 = vld [vmem:[%s1365] sm:$0x1]
    %1367 = vst [vmem:[#allocation3 + $0x2] sm:$0x1] %v1366
    %s1368 = sld [smem:[#allocation5 + $0x3]]
    %s1369 = scalar_lea.vmem [#allocation2], %s1368
    %v1370 = vld [vmem:[%s1369] sm:$0x1]
    %1371 = vst [vmem:[#allocation3 + $0x3] sm:$0x1] %v1370
    %s1372 = sld [smem:[#allocation5 + $0x4]]
    %s1373 = scalar_lea.vmem [#allocation2], %s1372
    %v1374 = vld [vmem:[%s1373] sm:$0x1]
    %1375 = vst [vmem:[#allocation3 + $0x4] sm:$0x1] %v1374
    %s1376 = sld [smem:[#allocation5 + $0x5]]
    %s1377 = scalar_lea.vmem [#allocation2], %s1376
    %v1378 = vld [vmem:[%s1377] sm:$0x1]
    %1379 = vst [vmem:[#allocation3 + $0x5] sm:$0x1] %v1378
    %s1380 = sld [smem:[#allocation5 + $0x6]]
    %s1381 = scalar_lea.vmem [#allocation2], %s1380
    %v1382 = vld [vmem:[%s1381] sm:$0x1]
    %1383 = vst [vmem:[#allocation3 + $0x6] sm:$0x1] %v1382
    %s1384 = sld [smem:[#allocation5 + $0x7]]
    %s1385 = scalar_lea.vmem [#allocation2], %s1384
    %v1386 = vld [vmem:[%s1385] sm:$0x1]
    %1387 = vst [vmem:[#allocation3 + $0x7] sm:$0x1] %v1386
    %s1388 = sld [smem:[#allocation5 + $0x8]]
    %s1389 = scalar_lea.vmem [#allocation2], %s1388
    %v1390 = vld [vmem:[%s1389] sm:$0x1]
    %1391 = vst [vmem:[#allocation3 + $0x8] sm:$0x1] %v1390
    %s1392 = sld [smem:[#allocation5 + $0x9]]
    %s1393 = scalar_lea.vmem [#allocation2], %s1392
    %v1394 = vld [vmem:[%s1393] sm:$0x1]
    %1395 = vst [vmem:[#allocation3 + $0x9] sm:$0x1] %v1394
    %s1396 = sld [smem:[#allocation5 + $0xa]]
    %s1397 = scalar_lea.vmem [#allocation2], %s1396
    %v1398 = vld [vmem:[%s1397] sm:$0x1]
    %1399 = vst [vmem:[#allocation3 + $0xa] sm:$0x1] %v1398
    %s1400 = sld [smem:[#allocation5 + $0xb]]
    %s1401 = scalar_lea.vmem [#allocation2], %s1400
    %v1402 = vld [vmem:[%s1401] sm:$0x1]
    %1403 = vst [vmem:[#allocation3 + $0xb] sm:$0x1] %v1402
    %s1404 = sld [smem:[#allocation5 + $0xc]]
    %s1405 = scalar_lea.vmem [#allocation2], %s1404
    %v1406 = vld [vmem:[%s1405] sm:$0x1]
    %1407 = vst [vmem:[#allocation3 + $0xc] sm:$0x1] %v1406
    %s1408 = sld [smem:[#allocation5 + $0xd]]
    %s1409 = scalar_lea.vmem [#allocation2], %s1408
    %v1410 = vld [vmem:[%s1409] sm:$0x1]
    %1411 = vst [vmem:[#allocation3 + $0xd] sm:$0x1] %v1410
    %s1412 = sld [smem:[#allocation5 + $0xe]]
    %s1413 = scalar_lea.vmem [#allocation2], %s1412
    %v1414 = vld [vmem:[%s1413] sm:$0x1]
    %1415 = vst [vmem:[#allocation3 + $0xe] sm:$0x1] %v1414
    %s1416 = sld [smem:[#allocation5 + $0xf]]
    %s1417 = scalar_lea.vmem [#allocation2], %s1416
    %v1418 = vld [vmem:[%s1417] sm:$0x1]
    %1419 = vst [vmem:[#allocation3 + $0xf] sm:$0x1] %v1418
    %s1420 = sld [smem:[#allocation5 + $0x10]]
    %s1421 = scalar_lea.vmem [#allocation2], %s1420
    %v1422 = vld [vmem:[%s1421] sm:$0x1]
    %1423 = vst [vmem:[#allocation3 + $0x10] sm:$0x1] %v1422
    %s1424 = sld [smem:[#allocation5 + $0x11]]
    %s1425 = scalar_lea.vmem [#allocation2], %s1424
    %v1426 = vld [vmem:[%s1425] sm:$0x1]
    %1427 = vst [vmem:[#allocation3 + $0x11] sm:$0x1] %v1426
    %s1428 = sld [smem:[#allocation5 + $0x12]]
    %s1429 = scalar_lea.vmem [#allocation2], %s1428
    %v1430 = vld [vmem:[%s1429] sm:$0x1]
    %1431 = vst [vmem:[#allocation3 + $0x12] sm:$0x1] %v1430
    %s1432 = sld [smem:[#allocation5 + $0x13]]
    %s1433 = scalar_lea.vmem [#allocation2], %s1432
    %v1434 = vld [vmem:[%s1433] sm:$0x1]
    %1435 = vst [vmem:[#allocation3 + $0x13] sm:$0x1] %v1434
    %s1436 = sld [smem:[#allocation5 + $0x14]]
    %s1437 = scalar_lea.vmem [#allocation2], %s1436
    %v1438 = vld [vmem:[%s1437] sm:$0x1]
    %1439 = vst [vmem:[#allocation3 + $0x14] sm:$0x1] %v1438
    %s1440 = sld [smem:[#allocation5 + $0x15]]
    %s1441 = scalar_lea.vmem [#allocation2], %s1440
    %v1442 = vld [vmem:[%s1441] sm:$0x1]
    %1443 = vst [vmem:[#allocation3 + $0x15] sm:$0x1] %v1442
    %s1444 = sld [smem:[#allocation5 + $0x16]]
    %s1445 = scalar_lea.vmem [#allocation2], %s1444
    %v1446 = vld [vmem:[%s1445] sm:$0x1]
    %1447 = vst [vmem:[#allocation3 + $0x16] sm:$0x1] %v1446
    %s1448 = sld [smem:[#allocation5 + $0x17]]
    %s1449 = scalar_lea.vmem [#allocation2], %s1448
    %v1450 = vld [vmem:[%s1449] sm:$0x1]
    %1451 = vst [vmem:[#allocation3 + $0x17] sm:$0x1] %v1450
    %s1452 = sld [smem:[#allocation5 + $0x18]]
    %s1453 = scalar_lea.vmem [#allocation2], %s1452
    %v1454 = vld [vmem:[%s1453] sm:$0x1]
    %1455 = vst [vmem:[#allocation3 + $0x18] sm:$0x1] %v1454
    %s1456 = sld [smem:[#allocation5 + $0x19]]
    %s1457 = scalar_lea.vmem [#allocation2], %s1456
    %v1458 = vld [vmem:[%s1457] sm:$0x1]
    %1459 = vst [vmem:[#allocation3 + $0x19] sm:$0x1] %v1458
    %s1460 = sld [smem:[#allocation5 + $0x1a]]
    %s1461 = scalar_lea.vmem [#allocation2], %s1460
    %v1462 = vld [vmem:[%s1461] sm:$0x1]
    %1463 = vst [vmem:[#allocation3 + $0x1a] sm:$0x1] %v1462
    %s1464 = sld [smem:[#allocation5 + $0x1b]]
    %s1465 = scalar_lea.vmem [#allocation2], %s1464
    %v1466 = vld [vmem:[%s1465] sm:$0x1]
    %1467 = vst [vmem:[#allocation3 + $0x1b] sm:$0x1] %v1466
    %s1468 = sld [smem:[#allocation5 + $0x1c]]
    %s1469 = scalar_lea.vmem [#allocation2], %s1468
    %v1470 = vld [vmem:[%s1469] sm:$0x1]
    %1471 = vst [vmem:[#allocation3 + $0x1c] sm:$0x1] %v1470
    %s1472 = sld [smem:[#allocation5 + $0x1d]]
    %s1473 = scalar_lea.vmem [#allocation2], %s1472
    %v1474 = vld [vmem:[%s1473] sm:$0x1]
    %1475 = vst [vmem:[#allocation3 + $0x1d] sm:$0x1] %v1474
    %s1476 = sld [smem:[#allocation5 + $0x1e]]
    %s1477 = scalar_lea.vmem [#allocation2], %s1476
    %v1478 = vld [vmem:[%s1477] sm:$0x1]
    %1479 = vst [vmem:[#allocation3 + $0x1e] sm:$0x1] %v1478
    %s1480 = sld [smem:[#allocation5 + $0x1f]]
    %s1481 = scalar_lea.vmem [#allocation2], %s1480
    %v1482 = vld [vmem:[%s1481] sm:$0x1]
    %1483 = vst [vmem:[#allocation3 + $0x1f] sm:$0x1] %v1482
    %v1484 = vld [vmem:[#allocation3] sm:$0xff]
    %v1485 = vld [vmem:[#allocation3 + $0x8] sm:$0xff]
    %v1486 = vld [vmem:[#allocation3 + $0x10] sm:$0xff]
    %v1487 = vld [vmem:[#allocation3 + $0x18] sm:$0xff]
    %v1488 = vld [vmem:[#allocation3 + $0x20] sm:$0xff]
    %v1489 = vld [vmem:[#allocation3 + $0x28] sm:$0xff]
    %v1490 = vld [vmem:[#allocation3 + $0x30] sm:$0xff]
    %v1491 = vld [vmem:[#allocation3 + $0x38] sm:$0xff]
    %v1492 = vld [vmem:[#allocation3 + $0x40] sm:$0xff]
    %v1493 = vld [vmem:[#allocation3 + $0x48] sm:$0xff]
    %v1494 = vld [vmem:[#allocation3 + $0x50] sm:$0xff]
    %v1495 = vld [vmem:[#allocation3 + $0x58] sm:$0xff]
    %v1496 = vld [vmem:[#allocation3 + $0x60] sm:$0xff]
    %v1497 = vld [vmem:[#allocation3 + $0x68] sm:$0xff]
    %v1498 = vld [vmem:[#allocation3 + $0x70] sm:$0xff]
    %v1499 = vld [vmem:[#allocation3 + $0x78] sm:$0xff]
    %v1500 = vadd.f32 %v1484, %v429
    %v1501 = vadd.f32 %v1485, %v435
    %v1502 = vadd.f32 %v1486, %v441
    %v1503 = vadd.f32 %v1487, %v447
    %v1504 = vadd.f32 %v1488, %v453
    %v1505 = vadd.f32 %v1489, %v459
    %v1506 = vadd.f32 %v1490, %v465
    %v1507 = vadd.f32 %v1491, %v471
    %v1508 = vadd.f32 %v1492, %v477
    %v1509 = vadd.f32 %v1493, %v483
    %v1510 = vadd.f32 %v1494, %v489
    %v1511 = vadd.f32 %v1495, %v495
    %v1512 = vadd.f32 %v1496, %v501
    %v1513 = vadd.f32 %v1497, %v507
    %v1514 = vadd.f32 %v1498, %v513
    %v1515 = vadd.f32 %v1499, %v519
    %v1516 = vmax.f32 %v1500, 0.0
    %v1517 = vmax.f32 %v1501, 0.0
    %v1518 = vmax.f32 %v1502, 0.0
    %v1519 = vmax.f32 %v1503, 0.0
    %v1520 = vmax.f32 %v1504, 0.0
    %v1521 = vmax.f32 %v1505, 0.0
    %v1522 = vmax.f32 %v1506, 0.0
    %v1523 = vmax.f32 %v1507, 0.0
    %v1524 = vmax.f32 %v1508, 0.0
    %v1525 = vmax.f32 %v1509, 0.0
    %v1526 = vmax.f32 %v1510, 0.0
    %v1527 = vmax.f32 %v1511, 0.0
    %v1528 = vmax.f32 %v1512, 0.0
    %v1529 = vmax.f32 %v1513, 0.0
    %v1530 = vmax.f32 %v1514, 0.0
    %v1531 = vmax.f32 %v1515, 0.0
    %v1532 = vld [vmem:[#allocation2] sm:$0xff]
    %v1533 = vld [vmem:[#allocation2 + $0x8] sm:$0xff]
    %v1534 = vld [vmem:[#allocation2 + $0x10] sm:$0xff]
    %v1535 = vld [vmem:[#allocation2 + $0x18] sm:$0xff]
    %v1536 = vld [vmem:[#allocation2 + $0x20] sm:$0xff]
    %v1537 = vld [vmem:[#allocation2 + $0x28] sm:$0xff]
    %v1538 = vld [vmem:[#allocation2 + $0x30] sm:$0xff]
    %v1539 = vld [vmem:[#allocation2 + $0x38] sm:$0xff]
    %v1540 = vld [vmem:[#allocation2 + $0x40] sm:$0xff]
    %v1541 = vld [vmem:[#allocation2 + $0x48] sm:$0xff]
    %v1542 = vld [vmem:[#allocation2 + $0x50] sm:$0xff]
    %v1543 = vld [vmem:[#allocation2 + $0x58] sm:$0xff]
    %v1544 = vld [vmem:[#allocation2 + $0x60] sm:$0xff]
    %v1545 = vld [vmem:[#allocation2 + $0x68] sm:$0xff]
    %v1546 = vld [vmem:[#allocation2 + $0x70] sm:$0xff]
    %v1547 = vld [vmem:[#allocation2 + $0x78] sm:$0xff]
    %1548 = vmatprep.subr.mxu0 0.0
    %1549 = vmatpush1.msra.mxu0 %v1516
    %1550 = vmatprep.subr.mxu0 0.0
    %1551 = vmatpush1.msra.mxu0 %v1517
    %1552 = vmatprep.subr.mxu0 0.0
    %1553 = vmatpush1.msra.mxu0 %v1518
    %1554 = vmatprep.subr.mxu0 0.0
    %1555 = vmatpush1.msra.mxu0 %v1519
    %1556 = vmatprep.subr.mxu0 0.0
    %1557 = vmatpush1.msra.mxu0 %v1520
    %1558 = vmatprep.subr.mxu0 0.0
    %1559 = vmatpush1.msra.mxu0 %v1521
    %1560 = vmatprep.subr.mxu0 0.0
    %1561 = vmatpush1.msra.mxu0 %v1522
    %1562 = vmatprep.subr.mxu0 0.0
    %1563 = vmatpush1.msra.mxu0 %v1523
    %1564 = vmatprep.subr.mxu0 0.0
    %1565 = vmatpush1.msra.mxu0 %v1524
    %1566 = vmatprep.subr.mxu0 0.0
    %1567 = vmatpush1.msra.mxu0 %v1525
    %1568 = vmatprep.subr.mxu0 0.0
    %1569 = vmatpush1.msra.mxu0 %v1526
    %1570 = vmatprep.subr.mxu0 0.0
    %1571 = vmatpush1.msra.mxu0 %v1527
    %1572 = vmatprep.subr.mxu0 0.0
    %1573 = vmatpush1.msra.mxu0 %v1528
    %1574 = vmatprep.subr.mxu0 0.0
    %1575 = vmatpush1.msra.mxu0 %v1529
    %1576 = vmatprep.subr.mxu0 0.0
    %1577 = vmatpush1.msra.mxu0 %v1530
    %1578 = vmatprep.subr.mxu0 0.0
    %1579 = vmatpush1.msra.mxu0 %v1531
    %1580 = vmatprep.subr.mxu0 0.0
    %1581 = vmatpush1.msra.mxu0 0.0
    %1582 = vmatprep.subr.mxu0 0.0
    %1583 = vmatpush1.msra.mxu0 0.0
    %1584 = vmatprep.subr.mxu0 0.0
    %1585 = vmatpush1.msra.mxu0 0.0
    %1586 = vmatprep.subr.mxu0 0.0
    %1587 = vmatpush1.msra.mxu0 0.0
    %1588 = vmatprep.subr.mxu0 0.0
    %1589 = vmatpush1.msra.mxu0 0.0
    %1590 = vmatprep.subr.mxu0 0.0
    %1591 = vmatpush1.msra.mxu0 0.0
    %1592 = vmatprep.subr.mxu0 0.0
    %1593 = vmatpush1.msra.mxu0 0.0
    %1594 = vmatprep.subr.mxu0 0.0
    %1595 = vmatpush1.msra.mxu0 0.0
    %1596 = vmatprep.subr.mxu0 0.0
    %1597 = vmatpush1.msra.mxu0 0.0
    %1598 = vmatprep.subr.mxu0 0.0
    %1599 = vmatpush1.msra.mxu0 0.0
    %1600 = vmatprep.subr.mxu0 0.0
    %1601 = vmatpush1.msra.mxu0 0.0
    %1602 = vmatprep.subr.mxu0 0.0
    %1603 = vmatpush1.msra.mxu0 0.0
    %1604 = vmatprep.subr.mxu0 0.0
    %1605 = vmatpush1.msra.mxu0 0.0
    %1606 = vmatprep.subr.mxu0 0.0
    %1607 = vmatpush1.msra.mxu0 0.0
    %1608 = vmatprep.subr.mxu0 0.0
    %1609 = vmatpush1.msra.mxu0 0.0
    %1610 = vmatprep.subr.mxu0 0.0
    %1611 = vmatpush1.msra.mxu0 0.0
    %1612 = vmatprep.mubr.f32.mxu0 0.0
    %1613 = vmatmul.mubr.f32.gmra.mrb[0].mxu0 %v276
    %v1614 = vpop.f32.mrb[0].mxu0
    %v1615 = vadd.f32 %v1532, %v1614
    %v1616 = vpop.f32.mrb[0].mxu0
    %1617 = vmatprep.mubr.f32.mxu0 0.0
    %1618 = vmatmul.mubr.f32.gmra.mrb[0].mxu0 %v277
    %v1619 = vpop.f32.mrb[0].mxu0
    %v1620 = vadd.f32 %v1533, %v1619
    %v1621 = vpop.f32.mrb[0].mxu0
    %1622 = vmatprep.mubr.f32.mxu0 0.0
    %1623 = vmatmul.mubr.f32.gmra.mrb[0].mxu0 %v278
    %v1624 = vpop.f32.mrb[0].mxu0
    %v1625 = vadd.f32 %v1534, %v1624
    %v1626 = vpop.f32.mrb[0].mxu0
    %1627 = vmatprep.mubr.f32.mxu0 0.0
    %1628 = vmatmul.mubr.f32.gmra.mrb[0].mxu0 %v279
    %v1629 = vpop.f32.mrb[0].mxu0
    %v1630 = vadd.f32 %v1535, %v1629
    %v1631 = vpop.f32.mrb[0].mxu0
    %1632 = vmatprep.mubr.f32.mxu0 0.0
    %1633 = vmatmul.mubr.f32.gmra.mrb[0].mxu0 %v280
    %v1634 = vpop.f32.mrb[0].mxu0
    %v1635 = vadd.f32 %v1536, %v1634
    %v1636 = vpop.f32.mrb[0].mxu0
    %1637 = vmatprep.mubr.f32.mxu0 0.0
    %1638 = vmatmul.mubr.f32.gmra.mrb[0].mxu0 %v281
    %v1639 = vpop.f32.mrb[0].mxu0
    %v1640 = vadd.f32 %v1537, %v1639
    %v1641 = vpop.f32.mrb[0].mxu0
    %1642 = vmatprep.mubr.f32.mxu0 0.0
    %1643 = vmatmul.mubr.f32.gmra.mrb[0].mxu0 %v282
    %v1644 = vpop.f32.mrb[0].mxu0
    %v1645 = vadd.f32 %v1538, %v1644
    %v1646 = vpop.f32.mrb[0].mxu0
    %1647 = vmatprep.mubr.f32.mxu0 0.0
    %1648 = vmatmul.mubr.f32.gmra.mrb[0].mxu0 %v283
    %v1649 = vpop.f32.mrb[0].mxu0
    %v1650 = vadd.f32 %v1539, %v1649
    %v1651 = vpop.f32.mrb[0].mxu0
    %1652 = vmatprep.mubr.f32.mxu0 0.0
    %1653 = vmatmul.mubr.f32.gmra.mrb[0].mxu0 %v284
    %v1654 = vpop.f32.mrb[0].mxu0
    %v1655 = vadd.f32 %v1540, %v1654
    %v1656 = vpop.f32.mrb[0].mxu0
    %1657 = vmatprep.mubr.f32.mxu0 0.0
    %1658 = vmatmul.mubr.f32.gmra.mrb[0].mxu0 %v285
    %v1659 = vpop.f32.mrb[0].mxu0
    %v1660 = vadd.f32 %v1541, %v1659
    %v1661 = vpop.f32.mrb[0].mxu0
    %1662 = vmatprep.mubr.f32.mxu0 0.0
    %1663 = vmatmul.mubr.f32.gmra.mrb[0].mxu0 %v286
    %v1664 = vpop.f32.mrb[0].mxu0
    %v1665 = vadd.f32 %v1542, %v1664
    %v1666 = vpop.f32.mrb[0].mxu0
    %1667 = vmatprep.mubr.f32.mxu0 0.0
    %1668 = vmatmul.mubr.f32.gmra.mrb[0].mxu0 %v287
    %v1669 = vpop.f32.mrb[0].mxu0
    %v1670 = vadd.f32 %v1543, %v1669
    %v1671 = vpop.f32.mrb[0].mxu0
    %1672 = vmatprep.mubr.f32.mxu0 0.0
    %1673 = vmatmul.mubr.f32.gmra.mrb[0].mxu0 %v288
    %v1674 = vpop.f32.mrb[0].mxu0
    %v1675 = vadd.f32 %v1544, %v1674
    %v1676 = vpop.f32.mrb[0].mxu0
    %1677 = vmatprep.mubr.f32.mxu0 0.0
    %1678 = vmatmul.mubr.f32.gmra.mrb[0].mxu0 %v289
    %v1679 = vpop.f32.mrb[0].mxu0
    %v1680 = vadd.f32 %v1545, %v1679
    %v1681 = vpop.f32.mrb[0].mxu0
    %1682 = vmatprep.mubr.f32.mxu0 0.0
    %1683 = vmatmul.mubr.f32.gmra.mrb[0].mxu0 %v290
    %v1684 = vpop.f32.mrb[0].mxu0
    %v1685 = vadd.f32 %v1546, %v1684
    %v1686 = vpop.f32.mrb[0].mxu0
    %1687 = vmatprep.mubr.f32.mxu0 0.0
    %1688 = vmatmul.mubr.f32.gmra.mrb[0].mxu0 %v291
    %v1689 = vpop.f32.mrb[0].mxu0
    %v1690 = vadd.f32 %v1547, %v1689
    %v1691 = vpop.f32.mrb[0].mxu0
    %1692 = vdwg.mxu0
    %v1694 = vlaneseq
    %v1695 = vshrl.u32 %v1694, 7
    %v1696 = vsub.s32 0, %v1695
    %v1697 = vrot.slane %v1322, %v1696
    %v1698 = vlaneseq
    %v1699 = vshrl.u32 %v1698, 7
    %v1700 = vsub.s32 1, %v1699
    %v1701 = vrot.slane %v1322, %v1700
    %1704 = vmatprep.subr.mxu0 %v1291
    %1705 = vmatpush1.msra.mxu0 %v1290
    %1706 = vmatprep.subr.mxu0 %v1293
    %1707 = vmatpush1.msra.mxu0 %v1292
    %1708 = vmatprep.subr.mxu0 %v1295
    %1709 = vmatpush1.msra.mxu0 %v1294
    %1710 = vmatprep.subr.mxu0 %v1297
    %1711 = vmatpush1.msra.mxu0 %v1296
    %1712 = vmatprep.subr.mxu0 %v1299
    %1713 = vmatpush1.msra.mxu0 %v1298
    %1714 = vmatprep.subr.mxu0 %v1301
    %1715 = vmatpush1.msra.mxu0 %v1300
    %1716 = vmatprep.subr.mxu0 %v1303
    %1717 = vmatpush1.msra.mxu0 %v1302
    %1718 = vmatprep.subr.mxu0 %v1305
    %1719 = vmatpush1.msra.mxu0 %v1304
    %1720 = vmatprep.subr.mxu0 %v1307
    %1721 = vmatpush1.msra.mxu0 %v1306
    %1722 = vmatprep.subr.mxu0 %v1309
    %1723 = vmatpush1.msra.mxu0 %v1308
    %1724 = vmatprep.subr.mxu0 %v1311
    %1725 = vmatpush1.msra.mxu0 %v1310
    %1726 = vmatprep.subr.mxu0 %v1313
    %1727 = vmatpush1.msra.mxu0 %v1312
    %1728 = vmatprep.subr.mxu0 %v1315
    %1729 = vmatpush1.msra.mxu0 %v1314
    %1730 = vmatprep.subr.mxu0 %v1317
    %1731 = vmatpush1.msra.mxu0 %v1316
    %1732 = vmatprep.subr.mxu0 %v1319
    %1733 = vmatpush1.msra.mxu0 %v1318
    %1734 = vmatprep.subr.mxu0 %v1321
    %1735 = vmatpush1.msra.mxu0 %v1320
    %1736 = vmatprep.subr.mxu0 0.0
    %1737 = vmatpush1.msra.mxu0 0.0
    %1738 = vmatprep.subr.mxu0 0.0
    %1739 = vmatpush1.msra.mxu0 0.0
    %1740 = vmatprep.subr.mxu0 0.0
    %1741 = vmatpush1.msra.mxu0 0.0
    %1742 = vmatprep.subr.mxu0 0.0
    %1743 = vmatpush1.msra.mxu0 0.0
    %1744 = vmatprep.subr.mxu0 0.0
    %1745 = vmatpush1.msra.mxu0 0.0
    %1746 = vmatprep.subr.mxu0 0.0
    %1747 = vmatpush1.msra.mxu0 0.0
    %1748 = vmatprep.subr.mxu0 0.0
    %1749 = vmatpush1.msra.mxu0 0.0
    %1750 = vmatprep.subr.mxu0 0.0
    %1751 = vmatpush1.msra.mxu0 0.0
    %1752 = vmatprep.subr.mxu0 0.0
    %1753 = vmatpush1.msra.mxu0 0.0
    %1754 = vmatprep.subr.mxu0 0.0
    %1755 = vmatpush1.msra.mxu0 0.0
    %1756 = vmatprep.subr.mxu0 0.0
    %1757 = vmatpush1.msra.mxu0 0.0
    %1758 = vmatprep.subr.mxu0 0.0
    %1759 = vmatpush1.msra.mxu0 0.0
    %1760 = vmatprep.subr.mxu0 0.0
    %1761 = vmatpush1.msra.mxu0 0.0
    %1762 = vmatprep.subr.mxu0 0.0
    %1763 = vmatpush1.msra.mxu0 0.0
    %1764 = vmatprep.subr.mxu0 0.0
    %1765 = vmatpush1.msra.mxu0 0.0
    %1766 = vmatprep.subr.mxu0 0.0
    %1767 = vmatpush1.msra.mxu0 0.0
    %1768 = vmatprep.mubr.f32.mxu0 0.0
    %1769 = vmatmul.mubr.f32.gmra.mrb[0].mxu0 %v1615
    %v1770 = vpop.f32.mrb[0].mxu0
    %v1771 = vadd.f32 %v1697, %v1770
    %v1772 = vpop.f32.mrb[0].mxu0
    %v1773 = vadd.f32 %v1701, %v1772
    %1774 = vmatprep.mubr.f32.mxu0 0.0
    %1775 = vmatmul.mubr.f32.gmra.mrb[0].mxu0 %v1620
    %v1776 = vpop.f32.mrb[0].mxu0
    %v1777 = vadd.f32 %v1697, %v1776
    %v1778 = vpop.f32.mrb[0].mxu0
    %v1779 = vadd.f32 %v1701, %v1778
    %1780 = vmatprep.mubr.f32.mxu0 0.0
    %1781 = vmatmul.mubr.f32.gmra.mrb[0].mxu0 %v1625
    %v1782 = vpop.f32.mrb[0].mxu0
    %v1783 = vadd.f32 %v1697, %v1782
    %v1784 = vpop.f32.mrb[0].mxu0
    %v1785 = vadd.f32 %v1701, %v1784
    %1786 = vmatprep.mubr.f32.mxu0 0.0
    %1787 = vmatmul.mubr.f32.gmra.mrb[0].mxu0 %v1630
    %v1788 = vpop.f32.mrb[0].mxu0
    %v1789 = vadd.f32 %v1697, %v1788
    %v1790 = vpop.f32.mrb[0].mxu0
    %v1791 = vadd.f32 %v1701, %v1790
    %1792 = vmatprep.mubr.f32.mxu0 0.0
    %1793 = vmatmul.mubr.f32.gmra.mrb[0].mxu0 %v1635
    %v1794 = vpop.f32.mrb[0].mxu0
    %v1795 = vadd.f32 %v1697, %v1794
    %v1796 = vpop.f32.mrb[0].mxu0
    %v1797 = vadd.f32 %v1701, %v1796
    %1798 = vmatprep.mubr.f32.mxu0 0.0
    %1799 = vmatmul.mubr.f32.gmra.mrb[0].mxu0 %v1640
    %v1800 = vpop.f32.mrb[0].mxu0
    %v1801 = vadd.f32 %v1697, %v1800
    %v1802 = vpop.f32.mrb[0].mxu0
    %v1803 = vadd.f32 %v1701, %v1802
    %1804 = vmatprep.mubr.f32.mxu0 0.0
    %1805 = vmatmul.mubr.f32.gmra.mrb[0].mxu0 %v1645
    %v1806 = vpop.f32.mrb[0].mxu0
    %v1807 = vadd.f32 %v1697, %v1806
    %v1808 = vpop.f32.mrb[0].mxu0
    %v1809 = vadd.f32 %v1701, %v1808
    %1810 = vmatprep.mubr.f32.mxu0 0.0
    %1811 = vmatmul.mubr.f32.gmra.mrb[0].mxu0 %v1650
    %v1812 = vpop.f32.mrb[0].mxu0
    %v1813 = vadd.f32 %v1697, %v1812
    %v1814 = vpop.f32.mrb[0].mxu0
    %v1815 = vadd.f32 %v1701, %v1814
    %1816 = vmatprep.mubr.f32.mxu0 0.0
    %1817 = vmatmul.mubr.f32.gmra.mrb[0].mxu0 %v1655
    %v1818 = vpop.f32.mrb[0].mxu0
    %v1819 = vadd.f32 %v1697, %v1818
    %v1820 = vpop.f32.mrb[0].mxu0
    %v1821 = vadd.f32 %v1701, %v1820
    %1822 = vmatprep.mubr.f32.mxu0 0.0
    %1823 = vmatmul.mubr.f32.gmra.mrb[0].mxu0 %v1660
    %v1824 = vpop.f32.mrb[0].mxu0
    %v1825 = vadd.f32 %v1697, %v1824
    %v1826 = vpop.f32.mrb[0].mxu0
    %v1827 = vadd.f32 %v1701, %v1826
    %1828 = vmatprep.mubr.f32.mxu0 0.0
    %1829 = vmatmul.mubr.f32.gmra.mrb[0].mxu0 %v1665
    %v1830 = vpop.f32.mrb[0].mxu0
    %v1831 = vadd.f32 %v1697, %v1830
    %v1832 = vpop.f32.mrb[0].mxu0
    %v1833 = vadd.f32 %v1701, %v1832
    %1834 = vmatprep.mubr.f32.mxu0 0.0
    %1835 = vmatmul.mubr.f32.gmra.mrb[0].mxu0 %v1670
    %v1836 = vpop.f32.mrb[0].mxu0
    %v1837 = vadd.f32 %v1697, %v1836
    %v1838 = vpop.f32.mrb[0].mxu0
    %v1839 = vadd.f32 %v1701, %v1838
    %1840 = vmatprep.mubr.f32.mxu0 0.0
    %1841 = vmatmul.mubr.f32.gmra.mrb[0].mxu0 %v1675
    %v1842 = vpop.f32.mrb[0].mxu0
    %v1843 = vadd.f32 %v1697, %v1842
    %v1844 = vpop.f32.mrb[0].mxu0
    %v1845 = vadd.f32 %v1701, %v1844
    %1846 = vmatprep.mubr.f32.mxu0 0.0
    %1847 = vmatmul.mubr.f32.gmra.mrb[0].mxu0 %v1680
    %v1848 = vpop.f32.mrb[0].mxu0
    %v1849 = vadd.f32 %v1697, %v1848
    %v1850 = vpop.f32.mrb[0].mxu0
    %v1851 = vadd.f32 %v1701, %v1850
    %1852 = vmatprep.mubr.f32.mxu0 0.0
    %1853 = vmatmul.mubr.f32.gmra.mrb[0].mxu0 %v1685
    %v1854 = vpop.f32.mrb[0].mxu0
    %v1855 = vadd.f32 %v1697, %v1854
    %v1856 = vpop.f32.mrb[0].mxu0
    %v1857 = vadd.f32 %v1701, %v1856
    %1858 = vmatprep.mubr.f32.mxu0 0.0
    %1859 = vmatmul.mubr.f32.gmra.mrb[0].mxu0 %v1690
    %v1860 = vpop.f32.mrb[0].mxu0
    %v1861 = vadd.f32 %v1697, %v1860
    %v1862 = vpop.f32.mrb[0].mxu0
    %v1863 = vadd.f32 %v1701, %v1862
    %1864 = vdwg.mxu0
    %v1865 = vmax.f32 %v1771, 0.0
    %v1866 = vmax.f32 %v1773, 0.0
    %v1867 = vmax.f32 %v1777, 0.0
    %v1868 = vmax.f32 %v1779, 0.0
    %v1869 = vmax.f32 %v1783, 0.0
    %v1870 = vmax.f32 %v1785, 0.0
    %v1871 = vmax.f32 %v1789, 0.0
    %v1872 = vmax.f32 %v1791, 0.0
    %v1873 = vmax.f32 %v1795, 0.0
    %v1874 = vmax.f32 %v1797, 0.0
    %v1875 = vmax.f32 %v1801, 0.0
    %v1876 = vmax.f32 %v1803, 0.0
    %v1877 = vmax.f32 %v1807, 0.0
    %v1878 = vmax.f32 %v1809, 0.0
    %v1879 = vmax.f32 %v1813, 0.0
    %v1880 = vmax.f32 %v1815, 0.0
    %v1881 = vmax.f32 %v1819, 0.0
    %v1882 = vmax.f32 %v1821, 0.0
    %v1883 = vmax.f32 %v1825, 0.0
    %v1884 = vmax.f32 %v1827, 0.0
    %v1885 = vmax.f32 %v1831, 0.0
    %v1886 = vmax.f32 %v1833, 0.0
    %v1887 = vmax.f32 %v1837, 0.0
    %v1888 = vmax.f32 %v1839, 0.0
    %v1889 = vmax.f32 %v1843, 0.0
    %v1890 = vmax.f32 %v1845, 0.0
    %v1891 = vmax.f32 %v1849, 0.0
    %v1892 = vmax.f32 %v1851, 0.0
    %v1893 = vmax.f32 %v1855, 0.0
    %v1894 = vmax.f32 %v1857, 0.0
    %v1895 = vmax.f32 %v1861, 0.0
    %v1896 = vmax.f32 %v1863, 0.0
    %v1898 = vlaneseq
    %v1899 = vshrl.u32 %v1898, 7
    %v1900 = vsub.s32 0, %v1899
    %v1901 = vrot.slane %v1355, %v1900
    %1903 = vmatprep.subr.mxu0 0.0
    %1904 = vmatpush1.msra.mxu0 %v1323
    %1905 = vmatprep.subr.mxu0 0.0
    %1906 = vmatpush1.msra.mxu0 %v1324
    %1907 = vmatprep.subr.mxu0 0.0
    %1908 = vmatpush1.msra.mxu0 %v1325
    %1909 = vmatprep.subr.mxu0 0.0
    %1910 = vmatpush1.msra.mxu0 %v1326
    %1911 = vmatprep.subr.mxu0 0.0
    %1912 = vmatpush1.msra.mxu0 %v1327
    %1913 = vmatprep.subr.mxu0 0.0
    %1914 = vmatpush1.msra.mxu0 %v1328
    %1915 = vmatprep.subr.mxu0 0.0
    %1916 = vmatpush1.msra.mxu0 %v1329
    %1917 = vmatprep.subr.mxu0 0.0
    %1918 = vmatpush1.msra.mxu0 %v1330
    %1919 = vmatprep.subr.mxu0 0.0
    %1920 = vmatpush1.msra.mxu0 %v1331
    %1921 = vmatprep.subr.mxu0 0.0
    %1922 = vmatpush1.msra.mxu0 %v1332
    %1923 = vmatprep.subr.mxu0 0.0
    %1924 = vmatpush1.msra.mxu0 %v1333
    %1925 = vmatprep.subr.mxu0 0.0
    %1926 = vmatpush1.msra.mxu0 %v1334
    %1927 = vmatprep.subr.mxu0 0.0
    %1928 = vmatpush1.msra.mxu0 %v1335
    %1929 = vmatprep.subr.mxu0 0.0
    %1930 = vmatpush1.msra.mxu0 %v1336
    %1931 = vmatprep.subr.mxu0 0.0
    %1932 = vmatpush1.msra.mxu0 %v1337
    %1933 = vmatprep.subr.mxu0 0.0
    %1934 = vmatpush1.msra.mxu0 %v1338
    %1935 = vmatprep.subr.mxu0 0.0
    %1936 = vmatpush1.msra.mxu0 %v1339
    %1937 = vmatprep.subr.mxu0 0.0
    %1938 = vmatpush1.msra.mxu0 %v1340
    %1939 = vmatprep.subr.mxu0 0.0
    %1940 = vmatpush1.msra.mxu0 %v1341
    %1941 = vmatprep.subr.mxu0 0.0
    %1942 = vmatpush1.msra.mxu0 %v1342
    %1943 = vmatprep.subr.mxu0 0.0
    %1944 = vmatpush1.msra.mxu0 %v1343
    %1945 = vmatprep.subr.mxu0 0.0
    %1946 = vmatpush1.msra.mxu0 %v1344
    %1947 = vmatprep.subr.mxu0 0.0
    %1948 = vmatpush1.msra.mxu0 %v1345
    %1949 = vmatprep.subr.mxu0 0.0
    %1950 = vmatpush1.msra.mxu0 %v1346
    %1951 = vmatprep.subr.mxu0 0.0
    %1952 = vmatpush1.msra.mxu0 %v1347
    %1953 = vmatprep.subr.mxu0 0.0
    %1954 = vmatpush1.msra.mxu0 %v1348
    %1955 = vmatprep.subr.mxu0 0.0
    %1956 = vmatpush1.msra.mxu0 %v1349
    %1957 = vmatprep.subr.mxu0 0.0
    %1958 = vmatpush1.msra.mxu0 %v1350
    %1959 = vmatprep.subr.mxu0 0.0
    %1960 = vmatpush1.msra.mxu0 %v1351
    %1961 = vmatprep.subr.mxu0 0.0
    %1962 = vmatpush1.msra.mxu0 %v1352
    %1963 = vmatprep.subr.mxu0 0.0
    %1964 = vmatpush1.msra.mxu0 %v1353
    %1965 = vmatprep.subr.mxu0 0.0
    %1966 = vmatpush1.msra.mxu0 %v1354
    %1967 = vmatprep.mubr.f32.mxu0 %v1866
    %1968 = vmatmul.mubr.f32.gmra.mrb[0].mxu0 %v1865
    %v1969 = vpop.f32.mrb[0].mxu0
    %v1970 = vadd.f32 %v1901, %v1969
    %v1971 = vpop.f32.mrb[0].mxu0
    %1972 = vmatprep.mubr.f32.mxu0 %v1868
    %1973 = vmatmul.mubr.f32.gmra.mrb[0].mxu0 %v1867
    %v1974 = vpop.f32.mrb[0].mxu0
    %v1975 = vadd.f32 %v1901, %v1974
    %v1976 = vpop.f32.mrb[0].mxu0
    %1977 = vmatprep.mubr.f32.mxu0 %v1870
    %1978 = vmatmul.mubr.f32.gmra.mrb[0].mxu0 %v1869
    %v1979 = vpop.f32.mrb[0].mxu0
    %v1980 = vadd.f32 %v1901, %v1979
    %v1981 = vpop.f32.mrb[0].mxu0
    %1982 = vmatprep.mubr.f32.mxu0 %v1872
    %1983 = vmatmul.mubr.f32.gmra.mrb[0].mxu0 %v1871
    %v1984 = vpop.f32.mrb[0].mxu0
    %v1985 = vadd.f32 %v1901, %v1984
    %v1986 = vpop.f32.mrb[0].mxu0
    %1987 = vmatprep.mubr.f32.mxu0 %v1874
    %1988 = vmatmul.mubr.f32.gmra.mrb[0].mxu0 %v1873
    %v1989 = vpop.f32.mrb[0].mxu0
    %v1990 = vadd.f32 %v1901, %v1989
    %v1991 = vpop.f32.mrb[0].mxu0
    %1992 = vmatprep.mubr.f32.mxu0 %v1876
    %1993 = vmatmul.mubr.f32.gmra.mrb[0].mxu0 %v1875
    %v1994 = vpop.f32.mrb[0].mxu0
    %v1995 = vadd.f32 %v1901, %v1994
    %v1996 = vpop.f32.mrb[0].mxu0
    %1997 = vmatprep.mubr.f32.mxu0 %v1878
    %1998 = vmatmul.mubr.f32.gmra.mrb[0].mxu0 %v1877
    %v1999 = vpop.f32.mrb[0].mxu0
    %v2000 = vadd.f32 %v1901, %v1999
    %v2001 = vpop.f32.mrb[0].mxu0
    %2002 = vmatprep.mubr.f32.mxu0 %v1880
    %2003 = vmatmul.mubr.f32.gmra.mrb[0].mxu0 %v1879
    %v2004 = vpop.f32.mrb[0].mxu0
    %v2005 = vadd.f32 %v1901, %v2004
    %v2006 = vpop.f32.mrb[0].mxu0
    %2007 = vmatprep.mubr.f32.mxu0 %v1882
    %2008 = vmatmul.mubr.f32.gmra.mrb[0].mxu0 %v1881
    %v2009 = vpop.f32.mrb[0].mxu0
    %v2010 = vadd.f32 %v1901, %v2009
    %v2011 = vpop.f32.mrb[0].mxu0
    %2012 = vmatprep.mubr.f32.mxu0 %v1884
    %2013 = vmatmul.mubr.f32.gmra.mrb[0].mxu0 %v1883
    %v2014 = vpop.f32.mrb[0].mxu0
    %v2015 = vadd.f32 %v1901, %v2014
    %v2016 = vpop.f32.mrb[0].mxu0
    %2017 = vmatprep.mubr.f32.mxu0 %v1886
    %2018 = vmatmul.mubr.f32.gmra.mrb[0].mxu0 %v1885
    %v2019 = vpop.f32.mrb[0].mxu0
    %v2020 = vadd.f32 %v1901, %v2019
    %v2021 = vpop.f32.mrb[0].mxu0
    %2022 = vmatprep.mubr.f32.mxu0 %v1888
    %2023 = vmatmul.mubr.f32.gmra.mrb[0].mxu0 %v1887
    %v2024 = vpop.f32.mrb[0].mxu0
    %v2025 = vadd.f32 %v1901, %v2024
    %v2026 = vpop.f32.mrb[0].mxu0
    %2027 = vmatprep.mubr.f32.mxu0 %v1890
    %2028 = vmatmul.mubr.f32.gmra.mrb[0].mxu0 %v1889
    %v2029 = vpop.f32.mrb[0].mxu0
    %v2030 = vadd.f32 %v1901, %v2029
    %v2031 = vpop.f32.mrb[0].mxu0
    %2032 = vmatprep.mubr.f32.mxu0 %v1892
    %2033 = vmatmul.mubr.f32.gmra.mrb[0].mxu0 %v1891
    %v2034 = vpop.f32.mrb[0].mxu0
    %v2035 = vadd.f32 %v1901, %v2034
    %v2036 = vpop.f32.mrb[0].mxu0
    %2037 = vmatprep.mubr.f32.mxu0 %v1894
    %2038 = vmatmul.mubr.f32.gmra.mrb[0].mxu0 %v1893
    %v2039 = vpop.f32.mrb[0].mxu0
    %v2040 = vadd.f32 %v1901, %v2039
    %v2041 = vpop.f32.mrb[0].mxu0
    %2042 = vmatprep.mubr.f32.mxu0 %v1896
    %2043 = vmatmul.mubr.f32.gmra.mrb[0].mxu0 %v1895
    %v2044 = vpop.f32.mrb[0].mxu0
    %v2045 = vadd.f32 %v1901, %v2044
    %v2046 = vpop.f32.mrb[0].mxu0
    %2047 = vdwg.mxu0
    %v2048 = vmax.f32 %v1970, 0.0
    %v2049 = vmax.f32 %v1975, 0.0
    %v2050 = vmax.f32 %v1980, 0.0
    %v2051 = vmax.f32 %v1985, 0.0
    %v2052 = vmax.f32 %v1990, 0.0
    %v2053 = vmax.f32 %v1995, 0.0
    %v2054 = vmax.f32 %v2000, 0.0
    %v2055 = vmax.f32 %v2005, 0.0
    %v2056 = vmax.f32 %v2010, 0.0
    %v2057 = vmax.f32 %v2015, 0.0
    %v2058 = vmax.f32 %v2020, 0.0
    %v2059 = vmax.f32 %v2025, 0.0
    %v2060 = vmax.f32 %v2030, 0.0
    %v2061 = vmax.f32 %v2035, 0.0
    %v2062 = vmax.f32 %v2040, 0.0
    %v2063 = vmax.f32 %v2045, 0.0
    %2064 = vst [vmem:[#allocation2] sm:$0xff] %v2048
    %2065 = vst [vmem:[#allocation2 + $0x8] sm:$0xff] %v2049
    %2066 = vst [vmem:[#allocation2 + $0x10] sm:$0xff] %v2050
    %2067 = vst [vmem:[#allocation2 + $0x18] sm:$0xff] %v2051
    %2068 = vst [vmem:[#allocation2 + $0x20] sm:$0xff] %v2052
    %2069 = vst [vmem:[#allocation2 + $0x28] sm:$0xff] %v2053
    %2070 = vst [vmem:[#allocation2 + $0x30] sm:$0xff] %v2054
    %2071 = vst [vmem:[#allocation2 + $0x38] sm:$0xff] %v2055
    %2072 = vst [vmem:[#allocation2 + $0x40] sm:$0xff] %v2056
    %2073 = vst [vmem:[#allocation2 + $0x48] sm:$0xff] %v2057
    %2074 = vst [vmem:[#allocation2 + $0x50] sm:$0xff] %v2058
    %2075 = vst [vmem:[#allocation2 + $0x58] sm:$0xff] %v2059
    %2076 = vst [vmem:[#allocation2 + $0x60] sm:$0xff] %v2060
    %2077 = vst [vmem:[#allocation2 + $0x68] sm:$0xff] %v2061
    %2078 = vst [vmem:[#allocation2 + $0x70] sm:$0xff] %v2062
    %2079 = vst [vmem:[#allocation2 + $0x78] sm:$0xff] %v2063
    %v2080 = vld [vmem:[#allocation2] sm:$0xff]
    %v2081 = vld [vmem:[#allocation2 + $0x8] sm:$0xff]
    %v2082 = vld [vmem:[#allocation2 + $0x10] sm:$0xff]
    %v2083 = vld [vmem:[#allocation2 + $0x18] sm:$0xff]
    %v2084 = vld [vmem:[#allocation2 + $0x20] sm:$0xff]
    %v2085 = vld [vmem:[#allocation2 + $0x28] sm:$0xff]
    %v2086 = vld [vmem:[#allocation2 + $0x30] sm:$0xff]
    %v2087 = vld [vmem:[#allocation2 + $0x38] sm:$0xff]
    %v2088 = vld [vmem:[#allocation2 + $0x40] sm:$0xff]
    %v2089 = vld [vmem:[#allocation2 + $0x48] sm:$0xff]
    %v2090 = vld [vmem:[#allocation2 + $0x50] sm:$0xff]
    %v2091 = vld [vmem:[#allocation2 + $0x58] sm:$0xff]
    %v2092 = vld [vmem:[#allocation2 + $0x60] sm:$0xff]
    %v2093 = vld [vmem:[#allocation2 + $0x68] sm:$0xff]
    %v2094 = vld [vmem:[#allocation2 + $0x70] sm:$0xff]
    %v2095 = vld [vmem:[#allocation2 + $0x78] sm:$0xff]
    %2096 = vmatprep.subr.mxu0 0.0
    %2097 = vmatpush1.msra.mxu0 %v2080
    %2098 = vmatprep.subr.mxu0 0.0
    %2099 = vmatpush1.msra.mxu0 %v2081
    %2100 = vmatprep.subr.mxu0 0.0
    %2101 = vmatpush1.msra.mxu0 %v2082
    %2102 = vmatprep.subr.mxu0 0.0
    %2103 = vmatpush1.msra.mxu0 %v2083
    %2104 = vmatprep.subr.mxu0 0.0
    %2105 = vmatpush1.msra.mxu0 %v2084
    %2106 = vmatprep.subr.mxu0 0.0
    %2107 = vmatpush1.msra.mxu0 %v2085
    %2108 = vmatprep.subr.mxu0 0.0
    %2109 = vmatpush1.msra.mxu0 %v2086
    %2110 = vmatprep.subr.mxu0 0.0
    %2111 = vmatpush1.msra.mxu0 %v2087
    %2112 = vmatprep.subr.mxu0 0.0
    %2113 = vmatpush1.msra.mxu0 %v2088
    %2114 = vmatprep.subr.mxu0 0.0
    %2115 = vmatpush1.msra.mxu0 %v2089
    %2116 = vmatprep.subr.mxu0 0.0
    %2117 = vmatpush1.msra.mxu0 %v2090
    %2118 = vmatprep.subr.mxu0 0.0
    %2119 = vmatpush1.msra.mxu0 %v2091
    %2120 = vmatprep.subr.mxu0 0.0
    %2121 = vmatpush1.msra.mxu0 %v2092
    %2122 = vmatprep.subr.mxu0 0.0
    %2123 = vmatpush1.msra.mxu0 %v2093
    %2124 = vmatprep.subr.mxu0 0.0
    %2125 = vmatpush1.msra.mxu0 %v2094
    %2126 = vmatprep.subr.mxu0 0.0
    %2127 = vmatpush1.msra.mxu0 %v2095
    %2128 = vmatprep.subr.mxu0 0.0
    %2129 = vmatpush1.msra.mxu0 0.0
    %2130 = vmatprep.subr.mxu0 0.0
    %2131 = vmatpush1.msra.mxu0 0.0
    %2132 = vmatprep.subr.mxu0 0.0
    %2133 = vmatpush1.msra.mxu0 0.0
    %2134 = vmatprep.subr.mxu0 0.0
    %2135 = vmatpush1.msra.mxu0 0.0
    %2136 = vmatprep.subr.mxu0 0.0
    %2137 = vmatpush1.msra.mxu0 0.0
    %2138 = vmatprep.subr.mxu0 0.0
    %2139 = vmatpush1.msra.mxu0 0.0
    %2140 = vmatprep.subr.mxu0 0.0
    %2141 = vmatpush1.msra.mxu0 0.0
    %2142 = vmatprep.subr.mxu0 0.0
    %2143 = vmatpush1.msra.mxu0 0.0
    %2144 = vmatprep.subr.mxu0 0.0
    %2145 = vmatpush1.msra.mxu0 0.0
    %2146 = vmatprep.subr.mxu0 0.0
    %2147 = vmatpush1.msra.mxu0 0.0
    %2148 = vmatprep.subr.mxu0 0.0
    %2149 = vmatpush1.msra.mxu0 0.0
    %2150 = vmatprep.subr.mxu0 0.0
    %2151 = vmatpush1.msra.mxu0 0.0
    %2152 = vmatprep.subr.mxu0 0.0
    %2153 = vmatpush1.msra.mxu0 0.0
    %2154 = vmatprep.subr.mxu0 0.0
    %2155 = vmatpush1.msra.mxu0 0.0
    %2156 = vmatprep.subr.mxu0 0.0
    %2157 = vmatpush1.msra.mxu0 0.0
    %2158 = vmatprep.subr.mxu0 0.0
    %2159 = vmatpush1.msra.mxu0 0.0
    %2160 = vmatprep.mubr.f32.mxu0 0.0
    %2161 = vmatmul.mubr.f32.gmra.mrb[0].mxu0 %v299
    %v2162 = vpop.f32.mrb[0].mxu0
    %v2163 = vadd.f32 0.0, %v2162
    %v2164 = vpop.f32.mrb[0].mxu0
    %2165 = vdwg.mxu0
    %v2166 = vld [vmem:[#allocation19] sm:$0xff]
    %v2167 = vld [vmem:[#allocation19 + $0x8] sm:$0xff]
    %v2168 = vld [vmem:[#allocation19 + $0x10] sm:$0xff]
    %v2169 = vld [vmem:[#allocation19 + $0x18] sm:$0xff]
    %v2170 = vld [vmem:[#allocation19 + $0x20] sm:$0xff]
    %v2171 = vld [vmem:[#allocation19 + $0x28] sm:$0xff]
    %v2172 = vld [vmem:[#allocation19 + $0x30] sm:$0xff]
    %v2173 = vld [vmem:[#allocation19 + $0x38] sm:$0xff]
    %v2174 = vld [vmem:[#allocation19 + $0x40] sm:$0xff]
    %v2175 = vld [vmem:[#allocation19 + $0x48] sm:$0xff]
    %v2176 = vld [vmem:[#allocation19 + $0x50] sm:$0xff]
    %v2177 = vld [vmem:[#allocation19 + $0x58] sm:$0xff]
    %v2178 = vld [vmem:[#allocation19 + $0x60] sm:$0xff]
    %v2179 = vld [vmem:[#allocation19 + $0x68] sm:$0xff]
    %v2180 = vld [vmem:[#allocation19 + $0x70] sm:$0xff]
    %v2181 = vld [vmem:[#allocation19 + $0x78] sm:$0xff]
    %v2182 = vld [vmem:[%s17] sm:$0x1]
    %v2184 = vlaneseq
    %v2185 = vshrl.u32 %v2184, 7
    %v2186 = vsub.s32 0, %v2185
    %v2187 = vrot.slane %v2182, %v2186
    %2189 = vmatprep.subr.mxu0 0.0
    %2190 = vmatpush1.msra.mxu0 %v2166
    %2191 = vmatprep.subr.mxu0 0.0
    %2192 = vmatpush1.msra.mxu0 %v2167
    %2193 = vmatprep.subr.mxu0 0.0
    %2194 = vmatpush1.msra.mxu0 %v2168
    %2195 = vmatprep.subr.mxu0 0.0
    %2196 = vmatpush1.msra.mxu0 %v2169
    %2197 = vmatprep.subr.mxu0 0.0
    %2198 = vmatpush1.msra.mxu0 %v2170
    %2199 = vmatprep.subr.mxu0 0.0
    %2200 = vmatpush1.msra.mxu0 %v2171
    %2201 = vmatprep.subr.mxu0 0.0
    %2202 = vmatpush1.msra.mxu0 %v2172
    %2203 = vmatprep.subr.mxu0 0.0
    %2204 = vmatpush1.msra.mxu0 %v2173
    %2205 = vmatprep.subr.mxu0 0.0
    %2206 = vmatpush1.msra.mxu0 %v2174
    %2207 = vmatprep.subr.mxu0 0.0
    %2208 = vmatpush1.msra.mxu0 %v2175
    %2209 = vmatprep.subr.mxu0 0.0
    %2210 = vmatpush1.msra.mxu0 %v2176
    %2211 = vmatprep.subr.mxu0 0.0
    %2212 = vmatpush1.msra.mxu0 %v2177
    %2213 = vmatprep.subr.mxu0 0.0
    %2214 = vmatpush1.msra.mxu0 %v2178
    %2215 = vmatprep.subr.mxu0 0.0
    %2216 = vmatpush1.msra.mxu0 %v2179
    %2217 = vmatprep.subr.mxu0 0.0
    %2218 = vmatpush1.msra.mxu0 %v2180
    %2219 = vmatprep.subr.mxu0 0.0
    %2220 = vmatpush1.msra.mxu0 %v2181
    %2221 = vmatprep.subr.mxu0 0.0
    %2222 = vmatpush1.msra.mxu0 0.0
    %2223 = vmatprep.subr.mxu0 0.0
    %2224 = vmatpush1.msra.mxu0 0.0
    %2225 = vmatprep.subr.mxu0 0.0
    %2226 = vmatpush1.msra.mxu0 0.0
    %2227 = vmatprep.subr.mxu0 0.0
    %2228 = vmatpush1.msra.mxu0 0.0
    %2229 = vmatprep.subr.mxu0 0.0
    %2230 = vmatpush1.msra.mxu0 0.0
    %2231 = vmatprep.subr.mxu0 0.0
    %2232 = vmatpush1.msra.mxu0 0.0
    %2233 = vmatprep.subr.mxu0 0.0
    %2234 = vmatpush1.msra.mxu0 0.0
    %2235 = vmatprep.subr.mxu0 0.0
    %2236 = vmatpush1.msra.mxu0 0.0
    %2237 = vmatprep.subr.mxu0 0.0
    %2238 = vmatpush1.msra.mxu0 0.0
    %2239 = vmatprep.subr.mxu0 0.0
    %2240 = vmatpush1.msra.mxu0 0.0
    %2241 = vmatprep.subr.mxu0 0.0
    %2242 = vmatpush1.msra.mxu0 0.0
    %2243 = vmatprep.subr.mxu0 0.0
    %2244 = vmatpush1.msra.mxu0 0.0
    %2245 = vmatprep.subr.mxu0 0.0
    %2246 = vmatpush1.msra.mxu0 0.0
    %2247 = vmatprep.subr.mxu0 0.0
    %2248 = vmatpush1.msra.mxu0 0.0
    %2249 = vmatprep.subr.mxu0 0.0
    %2250 = vmatpush1.msra.mxu0 0.0
    %2251 = vmatprep.subr.mxu0 0.0
    %2252 = vmatpush1.msra.mxu0 0.0
    %2253 = vmatprep.mubr.f32.mxu0 0.0
    %2254 = vmatmul.mubr.f32.gmra.mrb[0].mxu0 %v2163
    %v2255 = vpop.f32.mrb[0].mxu0
    %v2256 = vadd.f32 %v2187, %v2255
    %v2257 = vpop.f32.mrb[0].mxu0
    %2258 = vdwg.mxu0
    %v2259 = vmax.f32 %v2256, 0.0
    %v2260 = vld [vmem:[#allocation21] sm:$0xff]
    %v2261 = vld [vmem:[#allocation21 + $0x8] sm:$0xff]
    %v2262 = vld [vmem:[#allocation21 + $0x10] sm:$0xff]
    %v2263 = vld [vmem:[#allocation21 + $0x18] sm:$0xff]
    %v2264 = vld [vmem:[#allocation21 + $0x20] sm:$0xff]
    %v2265 = vld [vmem:[#allocation21 + $0x28] sm:$0xff]
    %v2266 = vld [vmem:[#allocation21 + $0x30] sm:$0xff]
    %v2267 = vld [vmem:[#allocation21 + $0x38] sm:$0xff]
    %v2268 = vld [vmem:[#allocation21 + $0x40] sm:$0xff]
    %v2269 = vld [vmem:[#allocation21 + $0x48] sm:$0xff]
    %v2270 = vld [vmem:[#allocation21 + $0x50] sm:$0xff]
    %v2271 = vld [vmem:[#allocation21 + $0x58] sm:$0xff]
    %v2272 = vld [vmem:[#allocation21 + $0x60] sm:$0xff]
    %v2273 = vld [vmem:[#allocation21 + $0x68] sm:$0xff]
    %v2274 = vld [vmem:[#allocation21 + $0x70] sm:$0xff]
    %v2275 = vld [vmem:[#allocation21 + $0x78] sm:$0xff]
    %v2276 = vld [vmem:[%s19] sm:$0x1]
    %v2278 = vlaneseq
    %v2279 = vshrl.u32 %v2278, 7
    %v2280 = vsub.s32 0, %v2279
    %v2281 = vrot.slane %v2276, %v2280
    %2283 = vmatprep.subr.mxu0 0.0
    %2284 = vmatpush1.msra.mxu0 %v2260
    %2285 = vmatprep.subr.mxu0 0.0
    %2286 = vmatpush1.msra.mxu0 %v2261
    %2287 = vmatprep.subr.mxu0 0.0
    %2288 = vmatpush1.msra.mxu0 %v2262
    %2289 = vmatprep.subr.mxu0 0.0
    %2290 = vmatpush1.msra.mxu0 %v2263
    %2291 = vmatprep.subr.mxu0 0.0
    %2292 = vmatpush1.msra.mxu0 %v2264
    %2293 = vmatprep.subr.mxu0 0.0
    %2294 = vmatpush1.msra.mxu0 %v2265
    %2295 = vmatprep.subr.mxu0 0.0
    %2296 = vmatpush1.msra.mxu0 %v2266
    %2297 = vmatprep.subr.mxu0 0.0
    %2298 = vmatpush1.msra.mxu0 %v2267
    %2299 = vmatprep.subr.mxu0 0.0
    %2300 = vmatpush1.msra.mxu0 %v2268
    %2301 = vmatprep.subr.mxu0 0.0
    %2302 = vmatpush1.msra.mxu0 %v2269
    %2303 = vmatprep.subr.mxu0 0.0
    %2304 = vmatpush1.msra.mxu0 %v2270
    %2305 = vmatprep.subr.mxu0 0.0
    %2306 = vmatpush1.msra.mxu0 %v2271
    %2307 = vmatprep.subr.mxu0 0.0
    %2308 = vmatpush1.msra.mxu0 %v2272
    %2309 = vmatprep.subr.mxu0 0.0
    %2310 = vmatpush1.msra.mxu0 %v2273
    %2311 = vmatprep.subr.mxu0 0.0
    %2312 = vmatpush1.msra.mxu0 %v2274
    %2313 = vmatprep.subr.mxu0 0.0
    %2314 = vmatpush1.msra.mxu0 %v2275
    %2315 = vmatprep.subr.mxu0 0.0
    %2316 = vmatpush1.msra.mxu0 0.0
    %2317 = vmatprep.subr.mxu0 0.0
    %2318 = vmatpush1.msra.mxu0 0.0
    %2319 = vmatprep.subr.mxu0 0.0
    %2320 = vmatpush1.msra.mxu0 0.0
    %2321 = vmatprep.subr.mxu0 0.0
    %2322 = vmatpush1.msra.mxu0 0.0
    %2323 = vmatprep.subr.mxu0 0.0
    %2324 = vmatpush1.msra.mxu0 0.0
    %2325 = vmatprep.subr.mxu0 0.0
    %2326 = vmatpush1.msra.mxu0 0.0
    %2327 = vmatprep.subr.mxu0 0.0
    %2328 = vmatpush1.msra.mxu0 0.0
    %2329 = vmatprep.subr.mxu0 0.0
    %2330 = vmatpush1.msra.mxu0 0.0
    %2331 = vmatprep.subr.mxu0 0.0
    %2332 = vmatpush1.msra.mxu0 0.0
    %2333 = vmatprep.subr.mxu0 0.0
    %2334 = vmatpush1.msra.mxu0 0.0
    %2335 = vmatprep.subr.mxu0 0.0
    %2336 = vmatpush1.msra.mxu0 0.0
    %2337 = vmatprep.subr.mxu0 0.0
    %2338 = vmatpush1.msra.mxu0 0.0
    %2339 = vmatprep.subr.mxu0 0.0
    %2340 = vmatpush1.msra.mxu0 0.0
    %2341 = vmatprep.subr.mxu0 0.0
    %2342 = vmatpush1.msra.mxu0 0.0
    %2343 = vmatprep.subr.mxu0 0.0
    %2344 = vmatpush1.msra.mxu0 0.0
    %2345 = vmatprep.subr.mxu0 0.0
    %2346 = vmatpush1.msra.mxu0 0.0
    %2347 = vmatprep.mubr.f32.mxu0 0.0
    %2348 = vmatmul.mubr.f32.gmra.mrb[0].mxu0 %v2259
    %v2349 = vpop.f32.mrb[0].mxu0
    %v2350 = vadd.f32 %v2281, %v2349
    %v2351 = vpop.f32.mrb[0].mxu0
    %2352 = vdwg.mxu0
    %v2353 = vmax.f32 %v2350, 0.0
    %v2354 = vld [vmem:[#allocation22] sm:$0xff]
    %v2355 = vld [vmem:[#allocation22 + $0x8] sm:$0xff]
    %v2356 = vld [vmem:[#allocation22 + $0x10] sm:$0xff]
    %v2357 = vld [vmem:[#allocation22 + $0x18] sm:$0xff]
    %v2358 = vld [vmem:[#allocation22 + $0x20] sm:$0xff]
    %v2359 = vld [vmem:[#allocation22 + $0x28] sm:$0xff]
    %v2360 = vld [vmem:[#allocation22 + $0x30] sm:$0xff]
    %v2361 = vld [vmem:[#allocation22 + $0x38] sm:$0xff]
    %v2362 = vld [vmem:[#allocation22 + $0x40] sm:$0xff]
    %v2363 = vld [vmem:[#allocation22 + $0x48] sm:$0xff]
    %v2364 = vld [vmem:[#allocation22 + $0x50] sm:$0xff]
    %v2365 = vld [vmem:[#allocation22 + $0x58] sm:$0xff]
    %v2366 = vld [vmem:[#allocation22 + $0x60] sm:$0xff]
    %v2367 = vld [vmem:[#allocation22 + $0x68] sm:$0xff]
    %v2368 = vld [vmem:[#allocation22 + $0x70] sm:$0xff]
    %v2369 = vld [vmem:[#allocation22 + $0x78] sm:$0xff]
    %v2370 = vld [vmem:[%s21] sm:$0x1]
    %v2372 = vlaneseq
    %v2373 = vshrl.u32 %v2372, 7
    %v2374 = vsub.s32 0, %v2373
    %v2375 = vrot.slane %v2370, %v2374
    %2377 = vmatprep.subr.mxu0 0.0
    %2378 = vmatpush1.msra.mxu0 %v2354
    %2379 = vmatprep.subr.mxu0 0.0
    %2380 = vmatpush1.msra.mxu0 %v2355
    %2381 = vmatprep.subr.mxu0 0.0
    %2382 = vmatpush1.msra.mxu0 %v2356
    %2383 = vmatprep.subr.mxu0 0.0
    %2384 = vmatpush1.msra.mxu0 %v2357
    %2385 = vmatprep.subr.mxu0 0.0
    %2386 = vmatpush1.msra.mxu0 %v2358
    %2387 = vmatprep.subr.mxu0 0.0
    %2388 = vmatpush1.msra.mxu0 %v2359
    %2389 = vmatprep.subr.mxu0 0.0
    %2390 = vmatpush1.msra.mxu0 %v2360
    %2391 = vmatprep.subr.mxu0 0.0
    %2392 = vmatpush1.msra.mxu0 %v2361
    %2393 = vmatprep.subr.mxu0 0.0
    %2394 = vmatpush1.msra.mxu0 %v2362
    %2395 = vmatprep.subr.mxu0 0.0
    %2396 = vmatpush1.msra.mxu0 %v2363
    %2397 = vmatprep.subr.mxu0 0.0
    %2398 = vmatpush1.msra.mxu0 %v2364
    %2399 = vmatprep.subr.mxu0 0.0
    %2400 = vmatpush1.msra.mxu0 %v2365
    %2401 = vmatprep.subr.mxu0 0.0
    %2402 = vmatpush1.msra.mxu0 %v2366
    %2403 = vmatprep.subr.mxu0 0.0
    %2404 = vmatpush1.msra.mxu0 %v2367
    %2405 = vmatprep.subr.mxu0 0.0
    %2406 = vmatpush1.msra.mxu0 %v2368
    %2407 = vmatprep.subr.mxu0 0.0
    %2408 = vmatpush1.msra.mxu0 %v2369
    %2409 = vmatprep.subr.mxu0 0.0
    %2410 = vmatpush1.msra.mxu0 0.0
    %2411 = vmatprep.subr.mxu0 0.0
    %2412 = vmatpush1.msra.mxu0 0.0
    %2413 = vmatprep.subr.mxu0 0.0
    %2414 = vmatpush1.msra.mxu0 0.0
    %2415 = vmatprep.subr.mxu0 0.0
    %2416 = vmatpush1.msra.mxu0 0.0
    %2417 = vmatprep.subr.mxu0 0.0
    %2418 = vmatpush1.msra.mxu0 0.0
    %2419 = vmatprep.subr.mxu0 0.0
    %2420 = vmatpush1.msra.mxu0 0.0
    %2421 = vmatprep.subr.mxu0 0.0
    %2422 = vmatpush1.msra.mxu0 0.0
    %2423 = vmatprep.subr.mxu0 0.0
    %2424 = vmatpush1.msra.mxu0 0.0
    %2425 = vmatprep.subr.mxu0 0.0
    %2426 = vmatpush1.msra.mxu0 0.0
    %2427 = vmatprep.subr.mxu0 0.0
    %2428 = vmatpush1.msra.mxu0 0.0
    %2429 = vmatprep.subr.mxu0 0.0
    %2430 = vmatpush1.msra.mxu0 0.0
    %2431 = vmatprep.subr.mxu0 0.0
    %2432 = vmatpush1.msra.mxu0 0.0
    %2433 = vmatprep.subr.mxu0 0.0
    %2434 = vmatpush1.msra.mxu0 0.0
    %2435 = vmatprep.subr.mxu0 0.0
    %2436 = vmatpush1.msra.mxu0 0.0
    %2437 = vmatprep.subr.mxu0 0.0
    %2438 = vmatpush1.msra.mxu0 0.0
    %2439 = vmatprep.subr.mxu0 0.0
    %2440 = vmatpush1.msra.mxu0 0.0
    %2441 = vmatprep.mubr.f32.mxu0 0.0
    %2442 = vmatmul.mubr.f32.gmra.mrb[0].mxu0 %v2353
    %v2443 = vpop.f32.mrb[0].mxu0
    %v2444 = vadd.f32 %v2375, %v2443
    %v2445 = vpop.f32.mrb[0].mxu0
    %2446 = vdwg.mxu0
    %v2447 = vxor.u32 %v2444, 2147483648
    %v2448 = vmul.f32 %v2447, 1.442695
    %v2449 = vpow.pop %v2448
    %v2450 = vadd.f32 %v2449, 1.0
    %v2451 = vrcp.pop %v2450
    %v2452 = vmul.f32 1.0, %v2451
    %2453 = vst [vmem:[#allocation24] sm:$0xff] %v2452
    // Predicated region
    $region134: #{tpu_custom_call.1} parent=1 // pred_check
      _
    $region135: #{tpu_custom_call.1} parent=1 // pred_check_branch
      %2455 = sbr.rel (0) target = $region137
    $region136: #{tpu_custom_call.1} parent=1 // pred_region
      %s2457 = ssub.s32 128, 128
      %2458 = vsyncadd [#allocation7], %s2457
      %s2460 = sshll.u32 [#allocation24], 4
      %s2461 = int_to_ptr.vmem [resolvable:$true] %s2460
      %2463 = dma.vmem_to_hbm [thread:$0]  %s2461, 128, %s22, [#allocation7]
    $region137: #{tpu_custom_call.1} parent=1 // pred_fallthru
      _
    // Predicated region
    $region138: #{tpu_custom_call.1} parent=1 // pred_check
      _
    $region139: #{tpu_custom_call.1} parent=1 // pred_check_branch
      %2465 = sbr.rel (0) target = $region141
    $region140: #{tpu_custom_call.1} parent=1 // pred_region
      %2466 = dma.done [#allocation7], 128
    $region141: #{tpu_custom_call.1} parent=1 // pred_fallthru
      _
    %2467 = vsyncpa [#allocation6], 1
    %2468 = vsyncpa [#allocation11], 1
    %2469 = vsyncpa [#allocation14], 1
    %2470 = vsyncpa [#allocation17], 1
    %2471 = vsyncpa [#allocation20], 1
    %2472 = vsyncpa [#allocation23], 1
    %2473 = vsyncpa [#allocation7], 1
    %2474 = vsyncpa [#allocation8], 1

</llo_original>
